<compile_context>
chip_gen: v7x
topology: tpu7x:2x2x1
jax: 0.10.0
libtpu: 0.0.40
codegen_flags: <defaults>
</compile_context>

<pallas_src>
import functools

import jax
import jax.numpy as jnp
from jax import lax
from jax.experimental import pallas as pl
from jax.experimental.pallas import tpu as pltpu


def _round_up(x, m):
    return (x + m - 1) // m * m


# ----------------------------------------------------------------------------
# Device-generation heuristics (static, trace-time)
# ----------------------------------------------------------------------------
def _device_kind():
    try:
        return jax.devices()[0].device_kind.lower()
    except Exception:
        return ""


def _vmem_budget_bytes():
    kind = _device_kind()
    if any(g in kind for g in ("v4", "v5", "v6")):
        return 96 * 1024 * 1024          # 128 MiB physical VMEM chips
    return 48 * 1024 * 1024              # v7x-safe default (64 MiB physical)


def _gate_dtype():
    kind = _device_kind()
    # bf16 EUP (2x transcendental throughput) exists on v6e/v7x; not on v5e.
    if ("v6" in kind) or ("v7" in kind) or ("7x" in kind):
        return jnp.bfloat16
    return jnp.float32


# ----------------------------------------------------------------------------
# Fused Pallas kernel: 2-layer GRU + FC head for one batch tile.
# ----------------------------------------------------------------------------
def emotion_gru_kernel(x_ref,                                    # (T, BT, Ep) bf16
                       w_ih0_ref, w_hh0_ref, b_gi0_ref, b_hn0_ref,
                       w_ih1_ref, w_hh1_ref, b_gi1_ref, b_hn1_ref,
                       fc_w_ref, fc_b_ref,
                       o_ref,                                    # (BT, Op) f32
                       gi_s,                                     # (T, BT, 3Hp) bf16
                       seq_s,                                    # (T, BT, Hp)  bf16
                       *, gate_dtype, unroll):
    T, BT, _ = x_ref.shape
    Hp = w_hh0_ref.shape[0]
    G3 = 3 * Hp

    def input_projection(get_x, w_ih_ref, b_gi_ref):
        # Hoisted out of the recurrence (no dependence on h); computed per
        # timestep so no (T*BT, 3Hp) f32 intermediate is materialized.
        w_ih = w_ih_ref[...]                                     # bf16, resident
        b_gi = b_gi_ref[...]                                     # f32 (b_ih + b_hh[rz])

        def body(t, carry):
            gi = jnp.dot(get_x(t), w_ih,
                         preferred_element_type=jnp.float32) + b_gi
            gi_s[t] = gi.astype(gi_s.dtype)
            return carry

        lax.fori_loop(0, T, body, 0, unroll=unroll)

    def recurrence(w_hh_ref, b_hn_ref, store_seq):
        w_hh = w_hh_ref[...]                                     # bf16, resident
        b_hn = jnp.broadcast_to(b_hn_ref[...], (BT, Hp))         # hoisted bcast

        def step(t, h):
            gi = gi_s[t]                                         # (BT, 3Hp) bf16
            gh = jnp.dot(h.astype(jnp.bfloat16), w_hh,
                         preferred_element_type=jnp.float32)     # no per-step bias
            # PyTorch GRU equations, gate order (r, z, n):
            rz = jax.nn.sigmoid(
                (gi[:, 0:2 * Hp] + gh[:, 0:2 * Hp]).astype(gate_dtype))
            r = rz[:, 0:Hp]
            z = rz[:, Hp:2 * Hp]
            # b_hn must stay inside r*(...) -> cannot be folded into gi.
            n = jnp.tanh((gi[:, 2 * Hp:G3]
                          + r * (gh[:, 2 * Hp:G3] + b_hn)).astype(gate_dtype))
            h_new = n + z * (h - n)                              # stays f32
            if store_seq:
                seq_s[t] = h_new.astype(seq_s.dtype)
            return h_new

        h0 = jnp.zeros((BT, Hp), jnp.float32)                    # init_hidden(): zeros
        return lax.fori_loop(0, T, step, h0, unroll=unroll)

    # ----- layer 0 -----------------------------------------------------------
    input_projection(lambda t: x_ref[t], w_ih0_ref, b_gi0_ref)
    recurrence(w_hh0_ref, b_hn0_ref, store_seq=True)

    # ----- layer 1 (inputs = layer-0 hidden states, kept in VMEM as bf16) ----
    input_projection(lambda t: seq_s[t], w_ih1_ref, b_gi1_ref)
    h_last = recurrence(w_hh1_ref, b_hn1_ref, store_seq=False)

    # ----- dropout (identity in eval mode) + FC head --------------------------
    o_ref[...] = jnp.dot(h_last.astype(jnp.bfloat16), fc_w_ref[...],
                         preferred_element_type=jnp.float32) + fc_b_ref[...]


# ----------------------------------------------------------------------------
# Wrapper: tiling / VMEM-aware batch-tile selection
# ----------------------------------------------------------------------------
def _vmem_usage_bytes(T, BT, Ep, Hp, Op, weight_bytes):
    G3 = 3 * Hp
    Ep_l = _round_up(Ep, 128)             # lane padding of the x block in VMEM
    gi = T * BT * G3 * 2                  # bf16 gate-input scratch
    seq = T * BT * Hp * 2                 # bf16 layer-0 hidden-sequence scratch
    x_blk = 2 * T * BT * Ep_l * 2         # double-buffered bf16 input block
    o_blk = 2 * BT * Op * 4               # double-buffered f32 output block
    margin = 2 * 1024 * 1024              # compiler-internal scratch headroom
    return gi + seq + x_blk + o_blk + 2 * weight_bytes + margin


def _pick_batch_tile(B, T, Ep, Hp, Op, weight_bytes, vmem_limit):
    SUB = 16                              # bf16 sublane-packing granularity
    B8 = _round_up(B, 8)
    if B8 <= 8:
        BT = B8
    else:
        # >=2 batch tiles whenever possible so both v7x TensorCores get work.
        BT = min(128, _round_up(-(-B8 // 2), SUB))
    # Shrink BT until the per-grid-step VMEM footprint fits the budget.
    while BT > SUB and _vmem_usage_bytes(T, BT, Ep, Hp, Op, weight_bytes) > vmem_limit:
        BT = max(SUB, _round_up(BT // 2, SUB))
    # TODO(synk): for extremely long T even the minimum tile may not fit; the
    # gi/seq scratch would then additionally need chunking over the time axis.
    B_pad = _round_up(B8, BT)
    return BT, B_pad, B_pad // BT


def emotion_gru_forward(tokens, padded, *, output_size):
    """tokens: int32 [B, T].  Returns logits [B, output_size] (float32)."""
    assert len(padded["layers"]) == 2, "kernel is specialized to 2 GRU layers"
    B, T = tokens.shape
    Ep = padded["embedding"].shape[1]
    Hp = padded["layers"][0]["w_hh"].shape[0]
    Op = padded["fc_w"].shape[1]
    G3 = 3 * Hp

    l0, l1 = padded["layers"]
    weight_arrays = [l0["w_ih"], l0["w_hh"], l0["b_gi"], l0["b_hn"],
                     l1["w_ih"], l1["w_hh"], l1["b_gi"], l1["b_hn"],
                     padded["fc_w"], padded["fc_b"]]
    weight_bytes = sum(int(a.size) * a.dtype.itemsize for a in weight_arrays)

    vmem_limit = _vmem_budget_bytes()
    BT, B_pad, nb = _pick_batch_tile(B, T, Ep, Hp, Op, weight_bytes, vmem_limit)

    # Embedding gather, directly in sequence-major (T, B, Ep) bf16 layout.
    # TODO(synk): fuse the gather into the kernel (scalar-prefetch token ids +
    # per-row DMA); kept as an XLA gather here.
    x = jnp.take(padded["embedding"], tokens.T, axis=0)          # (T, B, Ep) bf16
    x = jnp.pad(x, ((0, 0), (0, B_pad - B), (0, 0)))             # zero batch pad

    gate_dtype = _gate_dtype()
    unroll = T if T <= 16 else 4          # bounded unroll for realistic T

    def wspec(shape):
        return pl.BlockSpec(shape, lambda b: (0,) * len(shape))  # resident weights

    kernel = functools.partial(emotion_gru_kernel,
                               gate_dtype=gate_dtype, unroll=unroll)

    logits_pad = pl.pallas_call(
        kernel,
        out_shape=jax.ShapeDtypeStruct((B_pad, Op), jnp.float32),
        grid=(nb,),
        in_specs=[
            pl.BlockSpec((T, BT, Ep), lambda b: (0, b, 0)),      # batch-tiled x
            wspec((Ep, G3)), wspec((Hp, G3)), wspec((1, G3)), wspec((1, Hp)),
            wspec((Hp, G3)), wspec((Hp, G3)), wspec((1, G3)), wspec((1, Hp)),
            wspec((Hp, Op)), wspec((1, Op)),
        ],
        out_specs=pl.BlockSpec((BT, Op), lambda b: (b, 0)),      # lane-dense out
        scratch_shapes=[
            pltpu.VMEM((T, BT, G3), jnp.bfloat16),   # hoisted gate inputs gi
            pltpu.VMEM((T, BT, Hp), jnp.bfloat16),   # layer-0 hidden sequence
        ],
        compiler_params=pltpu.CompilerParams(
            dimension_semantics=("parallel",),       # shard batch on v7x megacore
            vmem_limit_bytes=vmem_limit,             # generation-dependent budget
        ),
    )(x, l0["w_ih"], l0["w_hh"], l0["b_gi"], l0["b_hn"],
      l1["w_ih"], l1["w_hh"], l1["b_gi"], l1["b_hn"],
      padded["fc_w"], padded["fc_b"])

    return logits_pad[:B, :output_size]


# ----------------------------------------------------------------------------
# Parameter construction (PyTorch-equivalent, unpadded) + TPU padding/relayout
# ----------------------------------------------------------------------------
def make_params(key, vocab_size, embedding_dim, hidden_units, output_size,
                num_layers):
    keys = jax.random.split(key, 3 + 4 * num_layers)
    k = 1.0 / jnp.sqrt(hidden_units)

    params = {
        "num_layers": num_layers,
        "embedding": jax.random.normal(
            keys[0], (vocab_size, embedding_dim), jnp.float32) * 0.1,
        "fc_w": jax.random.uniform(
            keys[1], (hidden_units, output_size), jnp.float32, -k, k),
        "fc_b": jax.random.uniform(
            keys[2], (1, output_size), jnp.float32, -k, k),
        "gru": [],
    }
    for layer in range(num_layers):
        d_in = embedding_dim if layer == 0 else hidden_units
        kk = keys[3 + 4 * layer: 3 + 4 * (layer + 1)]
        params["gru"].append({
            "w_ih": jax.random.uniform(
                kk[0], (d_in, 3 * hidden_units), jnp.float32, -k, k),
            "w_hh": jax.random.uniform(
                kk[1], (hidden_units, 3 * hidden_units), jnp.float32, -k, k),
            "b_ih": jax.random.uniform(
                kk[2], (1, 3 * hidden_units), jnp.float32, -k, k),
            "b_hh": jax.random.uniform(
                kk[3], (1, 3 * hidden_units), jnp.float32, -k, k),
        })
    return params


def prepare_padded_params(params, *, lane=128, sub=8):
    """Pad/relayout params for the TPU kernel.

    H and O are zero-padded to 128 lanes (each GRU gate gets its own
    128-aligned block of the 3*H_pad axis); the streamed embedding dim E is
    only padded to a multiple of 8 to keep HBM traffic low.  Matmul weights
    and the embedding table are bf16, biases stay f32.  The r/z components of
    b_hh are folded into the projection bias b_gi; the n component stays
    separate (b_hn) because PyTorch applies it inside r*(...).  Padded lanes
    are exactly zero, which keeps padded hidden lanes zero through the
    recurrence.
    """
    E = params["embedding"].shape[1]
    H = params["gru"][0]["w_hh"].shape[0]
    O = params["fc_w"].shape[1]
    Ep = _round_up(E, sub)
    Hp = _round_up(H, lane)
    Op = _round_up(O, lane)

    def pad_gate_w(w, rows_pad):
        d = w.shape[0]
        w3 = w.reshape(d, 3, H)
        w3 = jnp.pad(w3, ((0, rows_pad - d), (0, 0), (0, Hp - H)))
        return w3.reshape(rows_pad, 3 * Hp).astype(jnp.bfloat16)

    layers = []
    for i, p in enumerate(params["gru"]):
        rows = Ep if i == 0 else Hp
        b_ih3 = p["b_ih"].reshape(1, 3, H)
        b_hh3 = p["b_hh"].reshape(1, 3, H)
        # Exact bias fold: r/z take b_ih + b_hh up-front; n keeps only b_ih.
        b_gi3 = jnp.concatenate(
            [b_ih3[:, 0:2, :] + b_hh3[:, 0:2, :], b_ih3[:, 2:3, :]], axis=1)
        b_gi3 = jnp.pad(b_gi3, ((0, 0), (0, 0), (0, Hp - H)))
        b_hn = jnp.pad(b_hh3[:, 2, :], ((0, 0), (0, Hp - H)))
        layers.append({
            "w_ih": pad_gate_w(p["w_ih"], rows),
            "w_hh": pad_gate_w(p["w_hh"], Hp),
            "b_gi": b_gi3.reshape(1, 3 * Hp).astype(jnp.float32),
            "b_hn": b_hn.astype(jnp.float32),
        })

    return {
        "embedding": jnp.pad(params["embedding"],
                             ((0, 0), (0, Ep - E))).astype(jnp.bfloat16),
        "layers": layers,
        "fc_w": jnp.pad(params["fc_w"],
                        ((0, Hp - H), (0, Op - O))).astype(jnp.bfloat16),
        "fc_b": jnp.pad(params["fc_b"], ((0, 0), (0, Op - O))).astype(jnp.float32),
    }


# ----------------------------------------------------------------------------
# Pure-JAX f32 reference (PyTorch semantics) for a correctness sanity check
# ----------------------------------------------------------------------------
def reference_forward(tokens, params):
    emb = jnp.take(params["embedding"], tokens, axis=0)
    x_seq = jnp.transpose(emb, (1, 0, 2)).astype(jnp.float32)
    T, B, _ = x_seq.shape
    h_seq = x_seq
    for layer in range(params["num_layers"]):
        p = params["gru"][layer]
        H = p["w_hh"].shape[0]
        h = jnp.zeros((B, H), jnp.float32)
        outs = []
        for t in range(T):
            gi = h_seq[t] @ p["w_ih"] + p["b_ih"]
            gh = h @ p["w_hh"] + p["b_hh"]
            r = jax.nn.sigmoid(gi[:, :H] + gh[:, :H])
            z = jax.nn.sigmoid(gi[:, H:2 * H] + gh[:, H:2 * H])
            n = jnp.tanh(gi[:, 2 * H:] + r * gh[:, 2 * H:])
            h = (1.0 - z) * n + z * h
            outs.append(h)
        h_seq = jnp.stack(outs, axis=0)
    return h_seq[-1] @ params["fc_w"] + params["fc_b"]


# ----------------------------------------------------------------------------
if __name__ == "__main__":
    vocab_size = 100
    embedding_dim = 32
    hidden_units = 32
    output_size = 4
    num_layers = 2
    batch = 2
    seq = 8

    root = jax.random.PRNGKey(0)
    pkey, tkey = jax.random.split(root)

    params = make_params(pkey, vocab_size, embedding_dim, hidden_units,
                         output_size, num_layers)
    padded = prepare_padded_params(params)
    tokens = jax.random.randint(tkey, (batch, seq), 0, vocab_size,
                                dtype=jnp.int32)

    fwd = jax.jit(emotion_gru_forward, static_argnames=("output_size",))
    logits = jax.block_until_ready(fwd(tokens, padded, output_size=output_size))

    ref = jax.block_until_ready(reference_forward(tokens, params))
    assert logits.shape == (batch, output_size)
    # bf16 matmul operands / bf16 scratch / (on v6e+) bf16 gate transcendentals
    # with f32 accumulation -> relaxed tolerance vs. the f32 reference.
    err = float(jnp.max(jnp.abs(logits - ref)))
    assert jnp.allclose(logits, ref, atol=3e-2, rtol=3e-2), (
        f"Pallas output does not match reference: max abs diff {err}")

    print("KERNEL_OK")
</pallas_src>

<mosaic_0001>
module attributes {stable_mosaic.version = 11 : i64} {
  func.func @emotion_gru_kernel(%arg0: i32, %arg1: memref<8x8x32xbf16, #tpu.memory_space<vmem>>, %arg2: memref<32x384xbf16, #tpu.memory_space<vmem>>, %arg3: memref<128x384xbf16, #tpu.memory_space<vmem>>, %arg4: memref<1x384xf32, #tpu.memory_space<vmem>>, %arg5: memref<1x128xf32, #tpu.memory_space<vmem>>, %arg6: memref<128x384xbf16, #tpu.memory_space<vmem>>, %arg7: memref<128x384xbf16, #tpu.memory_space<vmem>>, %arg8: memref<1x384xf32, #tpu.memory_space<vmem>>, %arg9: memref<1x128xf32, #tpu.memory_space<vmem>>, %arg10: memref<128x128xbf16, #tpu.memory_space<vmem>>, %arg11: memref<1x128xf32, #tpu.memory_space<vmem>>, %arg12: memref<8x128xf32, #tpu.memory_space<vmem>>, %arg13: memref<8x8x384xbf16, #tpu.memory_space<vmem>>, %arg14: memref<8x8x128xbf16, #tpu.memory_space<vmem>>) attributes {dimension_semantics = [#tpu.dimension_semantics<parallel>], iteration_bounds = array<i64: 1>, scalar_prefetch = 0 : i64, scratch_operands = 2 : i64, tpu.core_type = #tpu.core_type<tc>, window_params = [{transform_indices = @transform_0, window_bounds = array<i64: 8, 8, 32>}, {pipeline_mode = #tpu.pipeline_mode<synchronous>, transform_indices = @transform_1, window_bounds = array<i64: 32, 384>}, {pipeline_mode = #tpu.pipeline_mode<synchronous>, transform_indices = @transform_2, window_bounds = array<i64: 128, 384>}, {pipeline_mode = #tpu.pipeline_mode<synchronous>, transform_indices = @transform_3, window_bounds = array<i64: 1, 384>}, {pipeline_mode = #tpu.pipeline_mode<synchronous>, transform_indices = @transform_4, window_bounds = array<i64: 1, 128>}, {pipeline_mode = #tpu.pipeline_mode<synchronous>, transform_indices = @transform_5, window_bounds = array<i64: 128, 384>}, {pipeline_mode = #tpu.pipeline_mode<synchronous>, transform_indices = @transform_6, window_bounds = array<i64: 128, 384>}, {pipeline_mode = #tpu.pipeline_mode<synchronous>, transform_indices = @transform_7, window_bounds = array<i64: 1, 384>}, {pipeline_mode = #tpu.pipeline_mode<synchronous>, transform_indices = @transform_8, window_bounds = array<i64: 1, 128>}, {pipeline_mode = #tpu.pipeline_mode<synchronous>, transform_indices = @transform_9, window_bounds = array<i64: 128, 128>}, {pipeline_mode = #tpu.pipeline_mode<synchronous>, transform_indices = @transform_10, window_bounds = array<i64: 1, 128>}, {transform_indices = @transform_11, window_bounds = array<i64: 8, 128>}]} {
    %c0 = arith.constant 0 : index
    %c0_0 = arith.constant 0 : index
    %0 = vector.load %arg2[%c0, %c0_0] : memref<32x384xbf16, #tpu.memory_space<vmem>>, vector<32x384xbf16>
    %c0_1 = arith.constant 0 : index
    %c0_2 = arith.constant 0 : index
    %1 = vector.load %arg4[%c0_1, %c0_2] : memref<1x384xf32, #tpu.memory_space<vmem>>, vector<1x384xf32>
    %c0_i32 = arith.constant 0 : i32
    %2 = arith.index_cast %c0_i32 : i32 to index
    %c0_3 = arith.constant 0 : index
    %c0_4 = arith.constant 0 : index
    %3 = vector.load %arg1[%2, %c0_3, %c0_4] : memref<8x8x32xbf16, #tpu.memory_space<vmem>>, vector<1x8x32xbf16>
    %4 = vector.shape_cast %3 : vector<1x8x32xbf16> to vector<8x32xbf16>
    %cst = arith.constant dense<0.000000e+00> : vector<8x384xf32>
    %5 = tpu.matmul %4, %0, %cst {dimension_numbers = #tpu.dot_dimension_numbers<[1], [0], [0], [1], [0, 0, 1, 1], [], []>} : vector<8x32xbf16>, vector<32x384xbf16>, vector<8x384xf32> -> vector<8x384xf32>
    %6 = vector.broadcast %1 : vector<1x384xf32> to vector<8x384xf32>
    %7 = arith.addf %5, %6 : vector<8x384xf32>
    %8 = arith.truncf %7 : vector<8x384xf32> to vector<8x384xbf16>
    %9 = arith.index_cast %c0_i32 : i32 to index
    %c0_5 = arith.constant 0 : index
    %c0_6 = arith.constant 0 : index
    %10 = vector.load %arg13[%9, %c0_5, %c0_6] : memref<8x8x384xbf16, #tpu.memory_space<vmem>>, vector<1x8x384xbf16>
    %11 = vector.shape_cast %10 : vector<1x8x384xbf16> to vector<8x384xbf16>
    %12 = vector.shape_cast %8 : vector<8x384xbf16> to vector<1x8x384xbf16>
    tpu.vector_store %arg13[%9, %c0_5, %c0_6], %12 {strides = array<i32>} : memref<8x8x384xbf16, #tpu.memory_space<vmem>>, vector<1x8x384xbf16>,
    %c1_i32 = arith.constant 1 : i32
    %13 = arith.index_cast %c1_i32 : i32 to index
    %c0_7 = arith.constant 0 : index
    %c0_8 = arith.constant 0 : index
    %14 = vector.load %arg1[%13, %c0_7, %c0_8] : memref<8x8x32xbf16, #tpu.memory_space<vmem>>, vector<1x8x32xbf16>
    %15 = vector.shape_cast %14 : vector<1x8x32xbf16> to vector<8x32xbf16>
    %cst_9 = arith.constant dense<0.000000e+00> : vector<8x384xf32>
    %16 = tpu.matmul %15, %0, %cst_9 {dimension_numbers = #tpu.dot_dimension_numbers<[1], [0], [0], [1], [0, 0, 1, 1], [], []>} : vector<8x32xbf16>, vector<32x384xbf16>, vector<8x384xf32> -> vector<8x384xf32>
    %17 = vector.broadcast %1 : vector<1x384xf32> to vector<8x384xf32>
    %18 = arith.addf %16, %17 : vector<8x384xf32>
    %19 = arith.truncf %18 : vector<8x384xf32> to vector<8x384xbf16>
    %20 = arith.index_cast %c1_i32 : i32 to index
    %c0_10 = arith.constant 0 : index
    %c0_11 = arith.constant 0 : index
    %21 = vector.load %arg13[%20, %c0_10, %c0_11] : memref<8x8x384xbf16, #tpu.memory_space<vmem>>, vector<1x8x384xbf16>
    %22 = vector.shape_cast %21 : vector<1x8x384xbf16> to vector<8x384xbf16>
    %23 = vector.shape_cast %19 : vector<8x384xbf16> to vector<1x8x384xbf16>
    tpu.vector_store %arg13[%20, %c0_10, %c0_11], %23 {strides = array<i32>} : memref<8x8x384xbf16, #tpu.memory_space<vmem>>, vector<1x8x384xbf16>,
    %c2_i32 = arith.constant 2 : i32
    %24 = arith.index_cast %c2_i32 : i32 to index
    %c0_12 = arith.constant 0 : index
    %c0_13 = arith.constant 0 : index
    %25 = vector.load %arg1[%24, %c0_12, %c0_13] : memref<8x8x32xbf16, #tpu.memory_space<vmem>>, vector<1x8x32xbf16>
    %26 = vector.shape_cast %25 : vector<1x8x32xbf16> to vector<8x32xbf16>
    %cst_14 = arith.constant dense<0.000000e+00> : vector<8x384xf32>
    %27 = tpu.matmul %26, %0, %cst_14 {dimension_numbers = #tpu.dot_dimension_numbers<[1], [0], [0], [1], [0, 0, 1, 1], [], []>} : vector<8x32xbf16>, vector<32x384xbf16>, vector<8x384xf32> -> vector<8x384xf32>
    %28 = vector.broadcast %1 : vector<1x384xf32> to vector<8x384xf32>
    %29 = arith.addf %27, %28 : vector<8x384xf32>
    %30 = arith.truncf %29 : vector<8x384xf32> to vector<8x384xbf16>
    %31 = arith.index_cast %c2_i32 : i32 to index
    %c0_15 = arith.constant 0 : index
    %c0_16 = arith.constant 0 : index
    %32 = vector.load %arg13[%31, %c0_15, %c0_16] : memref<8x8x384xbf16, #tpu.memory_space<vmem>>, vector<1x8x384xbf16>
    %33 = vector.shape_cast %32 : vector<1x8x384xbf16> to vector<8x384xbf16>
    %34 = vector.shape_cast %30 : vector<8x384xbf16> to vector<1x8x384xbf16>
    tpu.vector_store %arg13[%31, %c0_15, %c0_16], %34 {strides = array<i32>} : memref<8x8x384xbf16, #tpu.memory_space<vmem>>, vector<1x8x384xbf16>,
    %c3_i32 = arith.constant 3 : i32
    %35 = arith.index_cast %c3_i32 : i32 to index
    %c0_17 = arith.constant 0 : index
    %c0_18 = arith.constant 0 : index
    %36 = vector.load %arg1[%35, %c0_17, %c0_18] : memref<8x8x32xbf16, #tpu.memory_space<vmem>>, vector<1x8x32xbf16>
    %37 = vector.shape_cast %36 : vector<1x8x32xbf16> to vector<8x32xbf16>
    %cst_19 = arith.constant dense<0.000000e+00> : vector<8x384xf32>
    %38 = tpu.matmul %37, %0, %cst_19 {dimension_numbers = #tpu.dot_dimension_numbers<[1], [0], [0], [1], [0, 0, 1, 1], [], []>} : vector<8x32xbf16>, vector<32x384xbf16>, vector<8x384xf32> -> vector<8x384xf32>
    %39 = vector.broadcast %1 : vector<1x384xf32> to vector<8x384xf32>
    %40 = arith.addf %38, %39 : vector<8x384xf32>
    %41 = arith.truncf %40 : vector<8x384xf32> to vector<8x384xbf16>
    %42 = arith.index_cast %c3_i32 : i32 to index
    %c0_20 = arith.constant 0 : index
    %c0_21 = arith.constant 0 : index
    %43 = vector.load %arg13[%42, %c0_20, %c0_21] : memref<8x8x384xbf16, #tpu.memory_space<vmem>>, vector<1x8x384xbf16>
    %44 = vector.shape_cast %43 : vector<1x8x384xbf16> to vector<8x384xbf16>
    %45 = vector.shape_cast %41 : vector<8x384xbf16> to vector<1x8x384xbf16>
    tpu.vector_store %arg13[%42, %c0_20, %c0_21], %45 {strides = array<i32>} : memref<8x8x384xbf16, #tpu.memory_space<vmem>>, vector<1x8x384xbf16>,
    %c4_i32 = arith.constant 4 : i32
    %46 = arith.index_cast %c4_i32 : i32 to index
    %c0_22 = arith.constant 0 : index
    %c0_23 = arith.constant 0 : index
    %47 = vector.load %arg1[%46, %c0_22, %c0_23] : memref<8x8x32xbf16, #tpu.memory_space<vmem>>, vector<1x8x32xbf16>
    %48 = vector.shape_cast %47 : vector<1x8x32xbf16> to vector<8x32xbf16>
    %cst_24 = arith.constant dense<0.000000e+00> : vector<8x384xf32>
    %49 = tpu.matmul %48, %0, %cst_24 {dimension_numbers = #tpu.dot_dimension_numbers<[1], [0], [0], [1], [0, 0, 1, 1], [], []>} : vector<8x32xbf16>, vector<32x384xbf16>, vector<8x384xf32> -> vector<8x384xf32>
    %50 = vector.broadcast %1 : vector<1x384xf32> to vector<8x384xf32>
    %51 = arith.addf %49, %50 : vector<8x384xf32>
    %52 = arith.truncf %51 : vector<8x384xf32> to vector<8x384xbf16>
    %53 = arith.index_cast %c4_i32 : i32 to index
    %c0_25 = arith.constant 0 : index
    %c0_26 = arith.constant 0 : index
    %54 = vector.load %arg13[%53, %c0_25, %c0_26] : memref<8x8x384xbf16, #tpu.memory_space<vmem>>, vector<1x8x384xbf16>
    %55 = vector.shape_cast %54 : vector<1x8x384xbf16> to vector<8x384xbf16>
    %56 = vector.shape_cast %52 : vector<8x384xbf16> to vector<1x8x384xbf16>
    tpu.vector_store %arg13[%53, %c0_25, %c0_26], %56 {strides = array<i32>} : memref<8x8x384xbf16, #tpu.memory_space<vmem>>, vector<1x8x384xbf16>,
    %c5_i32 = arith.constant 5 : i32
    %57 = arith.index_cast %c5_i32 : i32 to index
    %c0_27 = arith.constant 0 : index
    %c0_28 = arith.constant 0 : index
    %58 = vector.load %arg1[%57, %c0_27, %c0_28] : memref<8x8x32xbf16, #tpu.memory_space<vmem>>, vector<1x8x32xbf16>
    %59 = vector.shape_cast %58 : vector<1x8x32xbf16> to vector<8x32xbf16>
    %cst_29 = arith.constant dense<0.000000e+00> : vector<8x384xf32>
    %60 = tpu.matmul %59, %0, %cst_29 {dimension_numbers = #tpu.dot_dimension_numbers<[1], [0], [0], [1], [0, 0, 1, 1], [], []>} : vector<8x32xbf16>, vector<32x384xbf16>, vector<8x384xf32> -> vector<8x384xf32>
    %61 = vector.broadcast %1 : vector<1x384xf32> to vector<8x384xf32>
    %62 = arith.addf %60, %61 : vector<8x384xf32>
    %63 = arith.truncf %62 : vector<8x384xf32> to vector<8x384xbf16>
    %64 = arith.index_cast %c5_i32 : i32 to index
    %c0_30 = arith.constant 0 : index
    %c0_31 = arith.constant 0 : index
    %65 = vector.load %arg13[%64, %c0_30, %c0_31] : memref<8x8x384xbf16, #tpu.memory_space<vmem>>, vector<1x8x384xbf16>
    %66 = vector.shape_cast %65 : vector<1x8x384xbf16> to vector<8x384xbf16>
    %67 = vector.shape_cast %63 : vector<8x384xbf16> to vector<1x8x384xbf16>
    tpu.vector_store %arg13[%64, %c0_30, %c0_31], %67 {strides = array<i32>} : memref<8x8x384xbf16, #tpu.memory_space<vmem>>, vector<1x8x384xbf16>,
    %c6_i32 = arith.constant 6 : i32
    %68 = arith.index_cast %c6_i32 : i32 to index
    %c0_32 = arith.constant 0 : index
    %c0_33 = arith.constant 0 : index
    %69 = vector.load %arg1[%68, %c0_32, %c0_33] : memref<8x8x32xbf16, #tpu.memory_space<vmem>>, vector<1x8x32xbf16>
    %70 = vector.shape_cast %69 : vector<1x8x32xbf16> to vector<8x32xbf16>
    %cst_34 = arith.constant dense<0.000000e+00> : vector<8x384xf32>
    %71 = tpu.matmul %70, %0, %cst_34 {dimension_numbers = #tpu.dot_dimension_numbers<[1], [0], [0], [1], [0, 0, 1, 1], [], []>} : vector<8x32xbf16>, vector<32x384xbf16>, vector<8x384xf32> -> vector<8x384xf32>
    %72 = vector.broadcast %1 : vector<1x384xf32> to vector<8x384xf32>
    %73 = arith.addf %71, %72 : vector<8x384xf32>
    %74 = arith.truncf %73 : vector<8x384xf32> to vector<8x384xbf16>
    %75 = arith.index_cast %c6_i32 : i32 to index
    %c0_35 = arith.constant 0 : index
    %c0_36 = arith.constant 0 : index
    %76 = vector.load %arg13[%75, %c0_35, %c0_36] : memref<8x8x384xbf16, #tpu.memory_space<vmem>>, vector<1x8x384xbf16>
    %77 = vector.shape_cast %76 : vector<1x8x384xbf16> to vector<8x384xbf16>
    %78 = vector.shape_cast %74 : vector<8x384xbf16> to vector<1x8x384xbf16>
    tpu.vector_store %arg13[%75, %c0_35, %c0_36], %78 {strides = array<i32>} : memref<8x8x384xbf16, #tpu.memory_space<vmem>>, vector<1x8x384xbf16>,
    %c7_i32 = arith.constant 7 : i32
    %79 = arith.index_cast %c7_i32 : i32 to index
    %c0_37 = arith.constant 0 : index
    %c0_38 = arith.constant 0 : index
    %80 = vector.load %arg1[%79, %c0_37, %c0_38] : memref<8x8x32xbf16, #tpu.memory_space<vmem>>, vector<1x8x32xbf16>
    %81 = vector.shape_cast %80 : vector<1x8x32xbf16> to vector<8x32xbf16>
    %cst_39 = arith.constant dense<0.000000e+00> : vector<8x384xf32>
    %82 = tpu.matmul %81, %0, %cst_39 {dimension_numbers = #tpu.dot_dimension_numbers<[1], [0], [0], [1], [0, 0, 1, 1], [], []>} : vector<8x32xbf16>, vector<32x384xbf16>, vector<8x384xf32> -> vector<8x384xf32>
    %83 = vector.broadcast %1 : vector<1x384xf32> to vector<8x384xf32>
    %84 = arith.addf %82, %83 : vector<8x384xf32>
    %85 = arith.truncf %84 : vector<8x384xf32> to vector<8x384xbf16>
    %86 = arith.index_cast %c7_i32 : i32 to index
    %c0_40 = arith.constant 0 : index
    %c0_41 = arith.constant 0 : index
    %87 = vector.load %arg13[%86, %c0_40, %c0_41] : memref<8x8x384xbf16, #tpu.memory_space<vmem>>, vector<1x8x384xbf16>
    %88 = vector.shape_cast %87 : vector<1x8x384xbf16> to vector<8x384xbf16>
    %89 = vector.shape_cast %85 : vector<8x384xbf16> to vector<1x8x384xbf16>
    tpu.vector_store %arg13[%86, %c0_40, %c0_41], %89 {strides = array<i32>} : memref<8x8x384xbf16, #tpu.memory_space<vmem>>, vector<1x8x384xbf16>,
    %c8_i32 = arith.constant 8 : i32
    %c0_42 = arith.constant 0 : index
    %c0_43 = arith.constant 0 : index
    %90 = vector.load %arg3[%c0_42, %c0_43] : memref<128x384xbf16, #tpu.memory_space<vmem>>, vector<128x384xbf16>
    %c0_44 = arith.constant 0 : index
    %c0_45 = arith.constant 0 : index
    %91 = vector.load %arg5[%c0_44, %c0_45] : memref<1x128xf32, #tpu.memory_space<vmem>>, vector<1x128xf32>
    %92 = vector.shape_cast %91 : vector<1x128xf32> to vector<1x128xf32>
    %93 = vector.broadcast %92 : vector<1x128xf32> to vector<8x128xf32>
    %cst_46 = arith.constant 0.000000e+00 : f32
    %94 = vector.broadcast %cst_46 : f32 to vector<8x128xf32>
    %c0_i32_47 = arith.constant 0 : i32
    %95 = arith.index_cast %c0_i32_47 : i32 to index
    %c0_48 = arith.constant 0 : index
    %c0_49 = arith.constant 0 : index
    %96 = vector.load %arg13[%95, %c0_48, %c0_49] : memref<8x8x384xbf16, #tpu.memory_space<vmem>>, vector<1x8x384xbf16>
    %97 = vector.shape_cast %96 : vector<1x8x384xbf16> to vector<8x384xbf16>
    %98 = arith.truncf %94 : vector<8x128xf32> to vector<8x128xbf16>
    %cst_50 = arith.constant dense<0.000000e+00> : vector<8x384xf32>
    %99 = tpu.matmul %98, %90, %cst_50 {dimension_numbers = #tpu.dot_dimension_numbers<[1], [0], [0], [1], [0, 0, 1, 1], [], []>} : vector<8x128xbf16>, vector<128x384xbf16>, vector<8x384xf32> -> vector<8x384xf32>
    %100 = vector.extract_strided_slice %97 {offsets = [0, 0], sizes = [8, 256], strides = [1, 1]} : vector<8x384xbf16> to vector<8x256xbf16>
    %101 = vector.extract_strided_slice %99 {offsets = [0, 0], sizes = [8, 256], strides = [1, 1]} : vector<8x384xf32> to vector<8x256xf32>
    %102 = arith.extf %100 : vector<8x256xbf16> to vector<8x256xf32>
    %103 = arith.addf %102, %101 : vector<8x256xf32>
    %104 = arith.negf %103 : vector<8x256xf32>
    %105 = math.exp %104 : vector<8x256xf32>
    %cst_51 = arith.constant 1.000000e+00 : f32
    %106 = vector.broadcast %cst_51 : f32 to vector<8x256xf32>
    %107 = arith.addf %106, %105 : vector<8x256xf32>
    %108 = arith.divf %106, %107 : vector<8x256xf32>
    %109 = vector.extract_strided_slice %108 {offsets = [0, 0], sizes = [8, 128], strides = [1, 1]} : vector<8x256xf32> to vector<8x128xf32>
    %110 = vector.extract_strided_slice %108 {offsets = [0, 128], sizes = [8, 128], strides = [1, 1]} : vector<8x256xf32> to vector<8x128xf32>
    %111 = vector.extract_strided_slice %97 {offsets = [0, 256], sizes = [8, 128], strides = [1, 1]} : vector<8x384xbf16> to vector<8x128xbf16>
    %112 = vector.extract_strided_slice %99 {offsets = [0, 256], sizes = [8, 128], strides = [1, 1]} : vector<8x384xf32> to vector<8x128xf32>
    %113 = arith.addf %112, %93 : vector<8x128xf32>
    %114 = arith.mulf %109, %113 : vector<8x128xf32>
    %115 = arith.extf %111 : vector<8x128xbf16> to vector<8x128xf32>
    %116 = arith.addf %115, %114 : vector<8x128xf32>
    %117 = math.tanh %116 : vector<8x128xf32>
    %118 = arith.subf %94, %117 : vector<8x128xf32>
    %119 = arith.mulf %110, %118 : vector<8x128xf32>
    %120 = arith.addf %117, %119 : vector<8x128xf32>
    %121 = arith.truncf %120 : vector<8x128xf32> to vector<8x128xbf16>
    %122 = arith.index_cast %c0_i32_47 : i32 to index
    %c0_52 = arith.constant 0 : index
    %c0_53 = arith.constant 0 : index
    %123 = vector.load %arg14[%122, %c0_52, %c0_53] : memref<8x8x128xbf16, #tpu.memory_space<vmem>>, vector<1x8x128xbf16>
    %124 = vector.shape_cast %123 : vector<1x8x128xbf16> to vector<8x128xbf16>
    %125 = vector.shape_cast %121 : vector<8x128xbf16> to vector<1x8x128xbf16>
    tpu.vector_store %arg14[%122, %c0_52, %c0_53], %125 {strides = array<i32>} : memref<8x8x128xbf16, #tpu.memory_space<vmem>>, vector<1x8x128xbf16>,
    %c1_i32_54 = arith.constant 1 : i32
    %126 = arith.index_cast %c1_i32_54 : i32 to index
    %c0_55 = arith.constant 0 : index
    %c0_56 = arith.constant 0 : index
    %127 = vector.load %arg13[%126, %c0_55, %c0_56] : memref<8x8x384xbf16, #tpu.memory_space<vmem>>, vector<1x8x384xbf16>
    %128 = vector.shape_cast %127 : vector<1x8x384xbf16> to vector<8x384xbf16>
    %129 = arith.truncf %120 : vector<8x128xf32> to vector<8x128xbf16>
    %cst_57 = arith.constant dense<0.000000e+00> : vector<8x384xf32>
    %130 = tpu.matmul %129, %90, %cst_57 {dimension_numbers = #tpu.dot_dimension_numbers<[1], [0], [0], [1], [0, 0, 1, 1], [], []>} : vector<8x128xbf16>, vector<128x384xbf16>, vector<8x384xf32> -> vector<8x384xf32>
    %131 = vector.extract_strided_slice %128 {offsets = [0, 0], sizes = [8, 256], strides = [1, 1]} : vector<8x384xbf16> to vector<8x256xbf16>
    %132 = vector.extract_strided_slice %130 {offsets = [0, 0], sizes = [8, 256], strides = [1, 1]} : vector<8x384xf32> to vector<8x256xf32>
    %133 = arith.extf %131 : vector<8x256xbf16> to vector<8x256xf32>
    %134 = arith.addf %133, %132 : vector<8x256xf32>
    %135 = arith.negf %134 : vector<8x256xf32>
    %136 = math.exp %135 : vector<8x256xf32>
    %cst_58 = arith.constant 1.000000e+00 : f32
    %137 = vector.broadcast %cst_58 : f32 to vector<8x256xf32>
    %138 = arith.addf %137, %136 : vector<8x256xf32>
    %139 = arith.divf %137, %138 : vector<8x256xf32>
    %140 = vector.extract_strided_slice %139 {offsets = [0, 0], sizes = [8, 128], strides = [1, 1]} : vector<8x256xf32> to vector<8x128xf32>
    %141 = vector.extract_strided_slice %139 {offsets = [0, 128], sizes = [8, 128], strides = [1, 1]} : vector<8x256xf32> to vector<8x128xf32>
    %142 = vector.extract_strided_slice %128 {offsets = [0, 256], sizes = [8, 128], strides = [1, 1]} : vector<8x384xbf16> to vector<8x128xbf16>
    %143 = vector.extract_strided_slice %130 {offsets = [0, 256], sizes = [8, 128], strides = [1, 1]} : vector<8x384xf32> to vector<8x128xf32>
    %144 = arith.addf %143, %93 : vector<8x128xf32>
    %145 = arith.mulf %140, %144 : vector<8x128xf32>
    %146 = arith.extf %142 : vector<8x128xbf16> to vector<8x128xf32>
    %147 = arith.addf %146, %145 : vector<8x128xf32>
    %148 = math.tanh %147 : vector<8x128xf32>
    %149 = arith.subf %120, %148 : vector<8x128xf32>
    %150 = arith.mulf %141, %149 : vector<8x128xf32>
    %151 = arith.addf %148, %150 : vector<8x128xf32>
    %152 = arith.truncf %151 : vector<8x128xf32> to vector<8x128xbf16>
    %153 = arith.index_cast %c1_i32_54 : i32 to index
    %c0_59 = arith.constant 0 : index
    %c0_60 = arith.constant 0 : index
    %154 = vector.load %arg14[%153, %c0_59, %c0_60] : memref<8x8x128xbf16, #tpu.memory_space<vmem>>, vector<1x8x128xbf16>
    %155 = vector.shape_cast %154 : vector<1x8x128xbf16> to vector<8x128xbf16>
    %156 = vector.shape_cast %152 : vector<8x128xbf16> to vector<1x8x128xbf16>
    tpu.vector_store %arg14[%153, %c0_59, %c0_60], %156 {strides = array<i32>} : memref<8x8x128xbf16, #tpu.memory_space<vmem>>, vector<1x8x128xbf16>,
    %c2_i32_61 = arith.constant 2 : i32
    %157 = arith.index_cast %c2_i32_61 : i32 to index
    %c0_62 = arith.constant 0 : index
    %c0_63 = arith.constant 0 : index
    %158 = vector.load %arg13[%157, %c0_62, %c0_63] : memref<8x8x384xbf16, #tpu.memory_space<vmem>>, vector<1x8x384xbf16>
    %159 = vector.shape_cast %158 : vector<1x8x384xbf16> to vector<8x384xbf16>
    %160 = arith.truncf %151 : vector<8x128xf32> to vector<8x128xbf16>
    %cst_64 = arith.constant dense<0.000000e+00> : vector<8x384xf32>
    %161 = tpu.matmul %160, %90, %cst_64 {dimension_numbers = #tpu.dot_dimension_numbers<[1], [0], [0], [1], [0, 0, 1, 1], [], []>} : vector<8x128xbf16>, vector<128x384xbf16>, vector<8x384xf32> -> vector<8x384xf32>
    %162 = vector.extract_strided_slice %159 {offsets = [0, 0], sizes = [8, 256], strides = [1, 1]} : vector<8x384xbf16> to vector<8x256xbf16>
    %163 = vector.extract_strided_slice %161 {offsets = [0, 0], sizes = [8, 256], strides = [1, 1]} : vector<8x384xf32> to vector<8x256xf32>
    %164 = arith.extf %162 : vector<8x256xbf16> to vector<8x256xf32>
    %165 = arith.addf %164, %163 : vector<8x256xf32>
    %166 = arith.negf %165 : vector<8x256xf32>
    %167 = math.exp %166 : vector<8x256xf32>
    %cst_65 = arith.constant 1.000000e+00 : f32
    %168 = vector.broadcast %cst_65 : f32 to vector<8x256xf32>
    %169 = arith.addf %168, %167 : vector<8x256xf32>
    %170 = arith.divf %168, %169 : vector<8x256xf32>
    %171 = vector.extract_strided_slice %170 {offsets = [0, 0], sizes = [8, 128], strides = [1, 1]} : vector<8x256xf32> to vector<8x128xf32>
    %172 = vector.extract_strided_slice %170 {offsets = [0, 128], sizes = [8, 128], strides = [1, 1]} : vector<8x256xf32> to vector<8x128xf32>
    %173 = vector.extract_strided_slice %159 {offsets = [0, 256], sizes = [8, 128], strides = [1, 1]} : vector<8x384xbf16> to vector<8x128xbf16>
    %174 = vector.extract_strided_slice %161 {offsets = [0, 256], sizes = [8, 128], strides = [1, 1]} : vector<8x384xf32> to vector<8x128xf32>
    %175 = arith.addf %174, %93 : vector<8x128xf32>
    %176 = arith.mulf %171, %175 : vector<8x128xf32>
    %177 = arith.extf %173 : vector<8x128xbf16> to vector<8x128xf32>
    %178 = arith.addf %177, %176 : vector<8x128xf32>
    %179 = math.tanh %178 : vector<8x128xf32>
    %180 = arith.subf %151, %179 : vector<8x128xf32>
    %181 = arith.mulf %172, %180 : vector<8x128xf32>
    %182 = arith.addf %179, %181 : vector<8x128xf32>
    %183 = arith.truncf %182 : vector<8x128xf32> to vector<8x128xbf16>
    %184 = arith.index_cast %c2_i32_61 : i32 to index
    %c0_66 = arith.constant 0 : index
    %c0_67 = arith.constant 0 : index
    %185 = vector.load %arg14[%184, %c0_66, %c0_67] : memref<8x8x128xbf16, #tpu.memory_space<vmem>>, vector<1x8x128xbf16>
    %186 = vector.shape_cast %185 : vector<1x8x128xbf16> to vector<8x128xbf16>
    %187 = vector.shape_cast %183 : vector<8x128xbf16> to vector<1x8x128xbf16>
    tpu.vector_store %arg14[%184, %c0_66, %c0_67], %187 {strides = array<i32>} : memref<8x8x128xbf16, #tpu.memory_space<vmem>>, vector<1x8x128xbf16>,
    %c3_i32_68 = arith.constant 3 : i32
    %188 = arith.index_cast %c3_i32_68 : i32 to index
    %c0_69 = arith.constant 0 : index
    %c0_70 = arith.constant 0 : index
    %189 = vector.load %arg13[%188, %c0_69, %c0_70] : memref<8x8x384xbf16, #tpu.memory_space<vmem>>, vector<1x8x384xbf16>
    %190 = vector.shape_cast %189 : vector<1x8x384xbf16> to vector<8x384xbf16>
    %191 = arith.truncf %182 : vector<8x128xf32> to vector<8x128xbf16>
    %cst_71 = arith.constant dense<0.000000e+00> : vector<8x384xf32>
    %192 = tpu.matmul %191, %90, %cst_71 {dimension_numbers = #tpu.dot_dimension_numbers<[1], [0], [0], [1], [0, 0, 1, 1], [], []>} : vector<8x128xbf16>, vector<128x384xbf16>, vector<8x384xf32> -> vector<8x384xf32>
    %193 = vector.extract_strided_slice %190 {offsets = [0, 0], sizes = [8, 256], strides = [1, 1]} : vector<8x384xbf16> to vector<8x256xbf16>
    %194 = vector.extract_strided_slice %192 {offsets = [0, 0], sizes = [8, 256], strides = [1, 1]} : vector<8x384xf32> to vector<8x256xf32>
    %195 = arith.extf %193 : vector<8x256xbf16> to vector<8x256xf32>
    %196 = arith.addf %195, %194 : vector<8x256xf32>
    %197 = arith.negf %196 : vector<8x256xf32>
    %198 = math.exp %197 : vector<8x256xf32>
    %cst_72 = arith.constant 1.000000e+00 : f32
    %199 = vector.broadcast %cst_72 : f32 to vector<8x256xf32>
    %200 = arith.addf %199, %198 : vector<8x256xf32>
    %201 = arith.divf %199, %200 : vector<8x256xf32>
    %202 = vector.extract_strided_slice %201 {offsets = [0, 0], sizes = [8, 128], strides = [1, 1]} : vector<8x256xf32> to vector<8x128xf32>
    %203 = vector.extract_strided_slice %201 {offsets = [0, 128], sizes = [8, 128], strides = [1, 1]} : vector<8x256xf32> to vector<8x128xf32>
    %204 = vector.extract_strided_slice %190 {offsets = [0, 256], sizes = [8, 128], strides = [1, 1]} : vector<8x384xbf16> to vector<8x128xbf16>
    %205 = vector.extract_strided_slice %192 {offsets = [0, 256], sizes = [8, 128], strides = [1, 1]} : vector<8x384xf32> to vector<8x128xf32>
    %206 = arith.addf %205, %93 : vector<8x128xf32>
    %207 = arith.mulf %202, %206 : vector<8x128xf32>
    %208 = arith.extf %204 : vector<8x128xbf16> to vector<8x128xf32>
    %209 = arith.addf %208, %207 : vector<8x128xf32>
    %210 = math.tanh %209 : vector<8x128xf32>
    %211 = arith.subf %182, %210 : vector<8x128xf32>
    %212 = arith.mulf %203, %211 : vector<8x128xf32>
    %213 = arith.addf %210, %212 : vector<8x128xf32>
    %214 = arith.truncf %213 : vector<8x128xf32> to vector<8x128xbf16>
    %215 = arith.index_cast %c3_i32_68 : i32 to index
    %c0_73 = arith.constant 0 : index
    %c0_74 = arith.constant 0 : index
    %216 = vector.load %arg14[%215, %c0_73, %c0_74] : memref<8x8x128xbf16, #tpu.memory_space<vmem>>, vector<1x8x128xbf16>
    %217 = vector.shape_cast %216 : vector<1x8x128xbf16> to vector<8x128xbf16>
    %218 = vector.shape_cast %214 : vector<8x128xbf16> to vector<1x8x128xbf16>
    tpu.vector_store %arg14[%215, %c0_73, %c0_74], %218 {strides = array<i32>} : memref<8x8x128xbf16, #tpu.memory_space<vmem>>, vector<1x8x128xbf16>,
    %c4_i32_75 = arith.constant 4 : i32
    %219 = arith.index_cast %c4_i32_75 : i32 to index
    %c0_76 = arith.constant 0 : index
    %c0_77 = arith.constant 0 : index
    %220 = vector.load %arg13[%219, %c0_76, %c0_77] : memref<8x8x384xbf16, #tpu.memory_space<vmem>>, vector<1x8x384xbf16>
    %221 = vector.shape_cast %220 : vector<1x8x384xbf16> to vector<8x384xbf16>
    %222 = arith.truncf %213 : vector<8x128xf32> to vector<8x128xbf16>
    %cst_78 = arith.constant dense<0.000000e+00> : vector<8x384xf32>
    %223 = tpu.matmul %222, %90, %cst_78 {dimension_numbers = #tpu.dot_dimension_numbers<[1], [0], [0], [1], [0, 0, 1, 1], [], []>} : vector<8x128xbf16>, vector<128x384xbf16>, vector<8x384xf32> -> vector<8x384xf32>
    %224 = vector.extract_strided_slice %221 {offsets = [0, 0], sizes = [8, 256], strides = [1, 1]} : vector<8x384xbf16> to vector<8x256xbf16>
    %225 = vector.extract_strided_slice %223 {offsets = [0, 0], sizes = [8, 256], strides = [1, 1]} : vector<8x384xf32> to vector<8x256xf32>
    %226 = arith.extf %224 : vector<8x256xbf16> to vector<8x256xf32>
    %227 = arith.addf %226, %225 : vector<8x256xf32>
    %228 = arith.negf %227 : vector<8x256xf32>
    %229 = math.exp %228 : vector<8x256xf32>
    %cst_79 = arith.constant 1.000000e+00 : f32
    %230 = vector.broadcast %cst_79 : f32 to vector<8x256xf32>
    %231 = arith.addf %230, %229 : vector<8x256xf32>
    %232 = arith.divf %230, %231 : vector<8x256xf32>
    %233 = vector.extract_strided_slice %232 {offsets = [0, 0], sizes = [8, 128], strides = [1, 1]} : vector<8x256xf32> to vector<8x128xf32>
    %234 = vector.extract_strided_slice %232 {offsets = [0, 128], sizes = [8, 128], strides = [1, 1]} : vector<8x256xf32> to vector<8x128xf32>
    %235 = vector.extract_strided_slice %221 {offsets = [0, 256], sizes = [8, 128], strides = [1, 1]} : vector<8x384xbf16> to vector<8x128xbf16>
    %236 = vector.extract_strided_slice %223 {offsets = [0, 256], sizes = [8, 128], strides = [1, 1]} : vector<8x384xf32> to vector<8x128xf32>
    %237 = arith.addf %236, %93 : vector<8x128xf32>
    %238 = arith.mulf %233, %237 : vector<8x128xf32>
    %239 = arith.extf %235 : vector<8x128xbf16> to vector<8x128xf32>
    %240 = arith.addf %239, %238 : vector<8x128xf32>
    %241 = math.tanh %240 : vector<8x128xf32>
    %242 = arith.subf %213, %241 : vector<8x128xf32>
    %243 = arith.mulf %234, %242 : vector<8x128xf32>
    %244 = arith.addf %241, %243 : vector<8x128xf32>
    %245 = arith.truncf %244 : vector<8x128xf32> to vector<8x128xbf16>
    %246 = arith.index_cast %c4_i32_75 : i32 to index
    %c0_80 = arith.constant 0 : index
    %c0_81 = arith.constant 0 : index
    %247 = vector.load %arg14[%246, %c0_80, %c0_81] : memref<8x8x128xbf16, #tpu.memory_space<vmem>>, vector<1x8x128xbf16>
    %248 = vector.shape_cast %247 : vector<1x8x128xbf16> to vector<8x128xbf16>
    %249 = vector.shape_cast %245 : vector<8x128xbf16> to vector<1x8x128xbf16>
    tpu.vector_store %arg14[%246, %c0_80, %c0_81], %249 {strides = array<i32>} : memref<8x8x128xbf16, #tpu.memory_space<vmem>>, vector<1x8x128xbf16>,
    %c5_i32_82 = arith.constant 5 : i32
    %250 = arith.index_cast %c5_i32_82 : i32 to index
    %c0_83 = arith.constant 0 : index
    %c0_84 = arith.constant 0 : index
    %251 = vector.load %arg13[%250, %c0_83, %c0_84] : memref<8x8x384xbf16, #tpu.memory_space<vmem>>, vector<1x8x384xbf16>
    %252 = vector.shape_cast %251 : vector<1x8x384xbf16> to vector<8x384xbf16>
    %253 = arith.truncf %244 : vector<8x128xf32> to vector<8x128xbf16>
    %cst_85 = arith.constant dense<0.000000e+00> : vector<8x384xf32>
    %254 = tpu.matmul %253, %90, %cst_85 {dimension_numbers = #tpu.dot_dimension_numbers<[1], [0], [0], [1], [0, 0, 1, 1], [], []>} : vector<8x128xbf16>, vector<128x384xbf16>, vector<8x384xf32> -> vector<8x384xf32>
    %255 = vector.extract_strided_slice %252 {offsets = [0, 0], sizes = [8, 256], strides = [1, 1]} : vector<8x384xbf16> to vector<8x256xbf16>
    %256 = vector.extract_strided_slice %254 {offsets = [0, 0], sizes = [8, 256], strides = [1, 1]} : vector<8x384xf32> to vector<8x256xf32>
    %257 = arith.extf %255 : vector<8x256xbf16> to vector<8x256xf32>
    %258 = arith.addf %257, %256 : vector<8x256xf32>
    %259 = arith.negf %258 : vector<8x256xf32>
    %260 = math.exp %259 : vector<8x256xf32>
    %cst_86 = arith.constant 1.000000e+00 : f32
    %261 = vector.broadcast %cst_86 : f32 to vector<8x256xf32>
    %262 = arith.addf %261, %260 : vector<8x256xf32>
    %263 = arith.divf %261, %262 : vector<8x256xf32>
    %264 = vector.extract_strided_slice %263 {offsets = [0, 0], sizes = [8, 128], strides = [1, 1]} : vector<8x256xf32> to vector<8x128xf32>
    %265 = vector.extract_strided_slice %263 {offsets = [0, 128], sizes = [8, 128], strides = [1, 1]} : vector<8x256xf32> to vector<8x128xf32>
    %266 = vector.extract_strided_slice %252 {offsets = [0, 256], sizes = [8, 128], strides = [1, 1]} : vector<8x384xbf16> to vector<8x128xbf16>
    %267 = vector.extract_strided_slice %254 {offsets = [0, 256], sizes = [8, 128], strides = [1, 1]} : vector<8x384xf32> to vector<8x128xf32>
    %268 = arith.addf %267, %93 : vector<8x128xf32>
    %269 = arith.mulf %264, %268 : vector<8x128xf32>
    %270 = arith.extf %266 : vector<8x128xbf16> to vector<8x128xf32>
    %271 = arith.addf %270, %269 : vector<8x128xf32>
    %272 = math.tanh %271 : vector<8x128xf32>
    %273 = arith.subf %244, %272 : vector<8x128xf32>
    %274 = arith.mulf %265, %273 : vector<8x128xf32>
    %275 = arith.addf %272, %274 : vector<8x128xf32>
    %276 = arith.truncf %275 : vector<8x128xf32> to vector<8x128xbf16>
    %277 = arith.index_cast %c5_i32_82 : i32 to index
    %c0_87 = arith.constant 0 : index
    %c0_88 = arith.constant 0 : index
    %278 = vector.load %arg14[%277, %c0_87, %c0_88] : memref<8x8x128xbf16, #tpu.memory_space<vmem>>, vector<1x8x128xbf16>
    %279 = vector.shape_cast %278 : vector<1x8x128xbf16> to vector<8x128xbf16>
    %280 = vector.shape_cast %276 : vector<8x128xbf16> to vector<1x8x128xbf16>
    tpu.vector_store %arg14[%277, %c0_87, %c0_88], %280 {strides = array<i32>} : memref<8x8x128xbf16, #tpu.memory_space<vmem>>, vector<1x8x128xbf16>,
    %c6_i32_89 = arith.constant 6 : i32
    %281 = arith.index_cast %c6_i32_89 : i32 to index
    %c0_90 = arith.constant 0 : index
    %c0_91 = arith.constant 0 : index
    %282 = vector.load %arg13[%281, %c0_90, %c0_91] : memref<8x8x384xbf16, #tpu.memory_space<vmem>>, vector<1x8x384xbf16>
    %283 = vector.shape_cast %282 : vector<1x8x384xbf16> to vector<8x384xbf16>
    %284 = arith.truncf %275 : vector<8x128xf32> to vector<8x128xbf16>
    %cst_92 = arith.constant dense<0.000000e+00> : vector<8x384xf32>
    %285 = tpu.matmul %284, %90, %cst_92 {dimension_numbers = #tpu.dot_dimension_numbers<[1], [0], [0], [1], [0, 0, 1, 1], [], []>} : vector<8x128xbf16>, vector<128x384xbf16>, vector<8x384xf32> -> vector<8x384xf32>
    %286 = vector.extract_strided_slice %283 {offsets = [0, 0], sizes = [8, 256], strides = [1, 1]} : vector<8x384xbf16> to vector<8x256xbf16>
    %287 = vector.extract_strided_slice %285 {offsets = [0, 0], sizes = [8, 256], strides = [1, 1]} : vector<8x384xf32> to vector<8x256xf32>
    %288 = arith.extf %286 : vector<8x256xbf16> to vector<8x256xf32>
    %289 = arith.addf %288, %287 : vector<8x256xf32>
    %290 = arith.negf %289 : vector<8x256xf32>
    %291 = math.exp %290 : vector<8x256xf32>
    %cst_93 = arith.constant 1.000000e+00 : f32
    %292 = vector.broadcast %cst_93 : f32 to vector<8x256xf32>
    %293 = arith.addf %292, %291 : vector<8x256xf32>
    %294 = arith.divf %292, %293 : vector<8x256xf32>
    %295 = vector.extract_strided_slice %294 {offsets = [0, 0], sizes = [8, 128], strides = [1, 1]} : vector<8x256xf32> to vector<8x128xf32>
    %296 = vector.extract_strided_slice %294 {offsets = [0, 128], sizes = [8, 128], strides = [1, 1]} : vector<8x256xf32> to vector<8x128xf32>
    %297 = vector.extract_strided_slice %283 {offsets = [0, 256], sizes = [8, 128], strides = [1, 1]} : vector<8x384xbf16> to vector<8x128xbf16>
    %298 = vector.extract_strided_slice %285 {offsets = [0, 256], sizes = [8, 128], strides = [1, 1]} : vector<8x384xf32> to vector<8x128xf32>
    %299 = arith.addf %298, %93 : vector<8x128xf32>
    %300 = arith.mulf %295, %299 : vector<8x128xf32>
    %301 = arith.extf %297 : vector<8x128xbf16> to vector<8x128xf32>
    %302 = arith.addf %301, %300 : vector<8x128xf32>
    %303 = math.tanh %302 : vector<8x128xf32>
    %304 = arith.subf %275, %303 : vector<8x128xf32>
    %305 = arith.mulf %296, %304 : vector<8x128xf32>
    %306 = arith.addf %303, %305 : vector<8x128xf32>
    %307 = arith.truncf %306 : vector<8x128xf32> to vector<8x128xbf16>
    %308 = arith.index_cast %c6_i32_89 : i32 to index
    %c0_94 = arith.constant 0 : index
    %c0_95 = arith.constant 0 : index
    %309 = vector.load %arg14[%308, %c0_94, %c0_95] : memref<8x8x128xbf16, #tpu.memory_space<vmem>>, vector<1x8x128xbf16>
    %310 = vector.shape_cast %309 : vector<1x8x128xbf16> to vector<8x128xbf16>
    %311 = vector.shape_cast %307 : vector<8x128xbf16> to vector<1x8x128xbf16>
    tpu.vector_store %arg14[%308, %c0_94, %c0_95], %311 {strides = array<i32>} : memref<8x8x128xbf16, #tpu.memory_space<vmem>>, vector<1x8x128xbf16>,
    %c7_i32_96 = arith.constant 7 : i32
    %312 = arith.index_cast %c7_i32_96 : i32 to index
    %c0_97 = arith.constant 0 : index
    %c0_98 = arith.constant 0 : index
    %313 = vector.load %arg13[%312, %c0_97, %c0_98] : memref<8x8x384xbf16, #tpu.memory_space<vmem>>, vector<1x8x384xbf16>
    %314 = vector.shape_cast %313 : vector<1x8x384xbf16> to vector<8x384xbf16>
    %315 = arith.truncf %306 : vector<8x128xf32> to vector<8x128xbf16>
    %cst_99 = arith.constant dense<0.000000e+00> : vector<8x384xf32>
    %316 = tpu.matmul %315, %90, %cst_99 {dimension_numbers = #tpu.dot_dimension_numbers<[1], [0], [0], [1], [0, 0, 1, 1], [], []>} : vector<8x128xbf16>, vector<128x384xbf16>, vector<8x384xf32> -> vector<8x384xf32>
    %317 = vector.extract_strided_slice %314 {offsets = [0, 0], sizes = [8, 256], strides = [1, 1]} : vector<8x384xbf16> to vector<8x256xbf16>
    %318 = vector.extract_strided_slice %316 {offsets = [0, 0], sizes = [8, 256], strides = [1, 1]} : vector<8x384xf32> to vector<8x256xf32>
    %319 = arith.extf %317 : vector<8x256xbf16> to vector<8x256xf32>
    %320 = arith.addf %319, %318 : vector<8x256xf32>
    %321 = arith.negf %320 : vector<8x256xf32>
    %322 = math.exp %321 : vector<8x256xf32>
    %cst_100 = arith.constant 1.000000e+00 : f32
    %323 = vector.broadcast %cst_100 : f32 to vector<8x256xf32>
    %324 = arith.addf %323, %322 : vector<8x256xf32>
    %325 = arith.divf %323, %324 : vector<8x256xf32>
    %326 = vector.extract_strided_slice %325 {offsets = [0, 0], sizes = [8, 128], strides = [1, 1]} : vector<8x256xf32> to vector<8x128xf32>
    %327 = vector.extract_strided_slice %325 {offsets = [0, 128], sizes = [8, 128], strides = [1, 1]} : vector<8x256xf32> to vector<8x128xf32>
    %328 = vector.extract_strided_slice %314 {offsets = [0, 256], sizes = [8, 128], strides = [1, 1]} : vector<8x384xbf16> to vector<8x128xbf16>
    %329 = vector.extract_strided_slice %316 {offsets = [0, 256], sizes = [8, 128], strides = [1, 1]} : vector<8x384xf32> to vector<8x128xf32>
    %330 = arith.addf %329, %93 : vector<8x128xf32>
    %331 = arith.mulf %326, %330 : vector<8x128xf32>
    %332 = arith.extf %328 : vector<8x128xbf16> to vector<8x128xf32>
    %333 = arith.addf %332, %331 : vector<8x128xf32>
    %334 = math.tanh %333 : vector<8x128xf32>
    %335 = arith.subf %306, %334 : vector<8x128xf32>
    %336 = arith.mulf %327, %335 : vector<8x128xf32>
    %337 = arith.addf %334, %336 : vector<8x128xf32>
    %338 = arith.truncf %337 : vector<8x128xf32> to vector<8x128xbf16>
    %339 = arith.index_cast %c7_i32_96 : i32 to index
    %c0_101 = arith.constant 0 : index
    %c0_102 = arith.constant 0 : index
    %340 = vector.load %arg14[%339, %c0_101, %c0_102] : memref<8x8x128xbf16, #tpu.memory_space<vmem>>, vector<1x8x128xbf16>
    %341 = vector.shape_cast %340 : vector<1x8x128xbf16> to vector<8x128xbf16>
    %342 = vector.shape_cast %338 : vector<8x128xbf16> to vector<1x8x128xbf16>
    tpu.vector_store %arg14[%339, %c0_101, %c0_102], %342 {strides = array<i32>} : memref<8x8x128xbf16, #tpu.memory_space<vmem>>, vector<1x8x128xbf16>,
    %c8_i32_103 = arith.constant 8 : i32
    %c0_104 = arith.constant 0 : index
    %c0_105 = arith.constant 0 : index
    %343 = vector.load %arg6[%c0_104, %c0_105] : memref<128x384xbf16, #tpu.memory_space<vmem>>, vector<128x384xbf16>
    %c0_106 = arith.constant 0 : index
    %c0_107 = arith.constant 0 : index
    %344 = vector.load %arg8[%c0_106, %c0_107] : memref<1x384xf32, #tpu.memory_space<vmem>>, vector<1x384xf32>
    %c0_i32_108 = arith.constant 0 : i32
    %345 = arith.index_cast %c0_i32_108 : i32 to index
    %c0_109 = arith.constant 0 : index
    %c0_110 = arith.constant 0 : index
    %346 = vector.load %arg14[%345, %c0_109, %c0_110] : memref<8x8x128xbf16, #tpu.memory_space<vmem>>, vector<1x8x128xbf16>
    %347 = vector.shape_cast %346 : vector<1x8x128xbf16> to vector<8x128xbf16>
    %cst_111 = arith.constant dense<0.000000e+00> : vector<8x384xf32>
    %348 = tpu.matmul %347, %343, %cst_111 {dimension_numbers = #tpu.dot_dimension_numbers<[1], [0], [0], [1], [0, 0, 1, 1], [], []>} : vector<8x128xbf16>, vector<128x384xbf16>, vector<8x384xf32> -> vector<8x384xf32>
    %349 = vector.broadcast %344 : vector<1x384xf32> to vector<8x384xf32>
    %350 = arith.addf %348, %349 : vector<8x384xf32>
    %351 = arith.truncf %350 : vector<8x384xf32> to vector<8x384xbf16>
    %352 = arith.index_cast %c0_i32_108 : i32 to index
    %c0_112 = arith.constant 0 : index
    %c0_113 = arith.constant 0 : index
    %353 = vector.load %arg13[%352, %c0_112, %c0_113] : memref<8x8x384xbf16, #tpu.memory_space<vmem>>, vector<1x8x384xbf16>
    %354 = vector.shape_cast %353 : vector<1x8x384xbf16> to vector<8x384xbf16>
    %355 = vector.shape_cast %351 : vector<8x384xbf16> to vector<1x8x384xbf16>
    tpu.vector_store %arg13[%352, %c0_112, %c0_113], %355 {strides = array<i32>} : memref<8x8x384xbf16, #tpu.memory_space<vmem>>, vector<1x8x384xbf16>,
    %c1_i32_114 = arith.constant 1 : i32
    %356 = arith.index_cast %c1_i32_114 : i32 to index
    %c0_115 = arith.constant 0 : index
    %c0_116 = arith.constant 0 : index
    %357 = vector.load %arg14[%356, %c0_115, %c0_116] : memref<8x8x128xbf16, #tpu.memory_space<vmem>>, vector<1x8x128xbf16>
    %358 = vector.shape_cast %357 : vector<1x8x128xbf16> to vector<8x128xbf16>
    %cst_117 = arith.constant dense<0.000000e+00> : vector<8x384xf32>
    %359 = tpu.matmul %358, %343, %cst_117 {dimension_numbers = #tpu.dot_dimension_numbers<[1], [0], [0], [1], [0, 0, 1, 1], [], []>} : vector<8x128xbf16>, vector<128x384xbf16>, vector<8x384xf32> -> vector<8x384xf32>
    %360 = vector.broadcast %344 : vector<1x384xf32> to vector<8x384xf32>
    %361 = arith.addf %359, %360 : vector<8x384xf32>
    %362 = arith.truncf %361 : vector<8x384xf32> to vector<8x384xbf16>
    %363 = arith.index_cast %c1_i32_114 : i32 to index
    %c0_118 = arith.constant 0 : index
    %c0_119 = arith.constant 0 : index
    %364 = vector.load %arg13[%363, %c0_118, %c0_119] : memref<8x8x384xbf16, #tpu.memory_space<vmem>>, vector<1x8x384xbf16>
    %365 = vector.shape_cast %364 : vector<1x8x384xbf16> to vector<8x384xbf16>
    %366 = vector.shape_cast %362 : vector<8x384xbf16> to vector<1x8x384xbf16>
    tpu.vector_store %arg13[%363, %c0_118, %c0_119], %366 {strides = array<i32>} : memref<8x8x384xbf16, #tpu.memory_space<vmem>>, vector<1x8x384xbf16>,
    %c2_i32_120 = arith.constant 2 : i32
    %367 = arith.index_cast %c2_i32_120 : i32 to index
    %c0_121 = arith.constant 0 : index
    %c0_122 = arith.constant 0 : index
    %368 = vector.load %arg14[%367, %c0_121, %c0_122] : memref<8x8x128xbf16, #tpu.memory_space<vmem>>, vector<1x8x128xbf16>
    %369 = vector.shape_cast %368 : vector<1x8x128xbf16> to vector<8x128xbf16>
    %cst_123 = arith.constant dense<0.000000e+00> : vector<8x384xf32>
    %370 = tpu.matmul %369, %343, %cst_123 {dimension_numbers = #tpu.dot_dimension_numbers<[1], [0], [0], [1], [0, 0, 1, 1], [], []>} : vector<8x128xbf16>, vector<128x384xbf16>, vector<8x384xf32> -> vector<8x384xf32>
    %371 = vector.broadcast %344 : vector<1x384xf32> to vector<8x384xf32>
    %372 = arith.addf %370, %371 : vector<8x384xf32>
    %373 = arith.truncf %372 : vector<8x384xf32> to vector<8x384xbf16>
    %374 = arith.index_cast %c2_i32_120 : i32 to index
    %c0_124 = arith.constant 0 : index
    %c0_125 = arith.constant 0 : index
    %375 = vector.load %arg13[%374, %c0_124, %c0_125] : memref<8x8x384xbf16, #tpu.memory_space<vmem>>, vector<1x8x384xbf16>
    %376 = vector.shape_cast %375 : vector<1x8x384xbf16> to vector<8x384xbf16>
    %377 = vector.shape_cast %373 : vector<8x384xbf16> to vector<1x8x384xbf16>
    tpu.vector_store %arg13[%374, %c0_124, %c0_125], %377 {strides = array<i32>} : memref<8x8x384xbf16, #tpu.memory_space<vmem>>, vector<1x8x384xbf16>,
    %c3_i32_126 = arith.constant 3 : i32
    %378 = arith.index_cast %c3_i32_126 : i32 to index
    %c0_127 = arith.constant 0 : index
    %c0_128 = arith.constant 0 : index
    %379 = vector.load %arg14[%378, %c0_127, %c0_128] : memref<8x8x128xbf16, #tpu.memory_space<vmem>>, vector<1x8x128xbf16>
    %380 = vector.shape_cast %379 : vector<1x8x128xbf16> to vector<8x128xbf16>
    %cst_129 = arith.constant dense<0.000000e+00> : vector<8x384xf32>
    %381 = tpu.matmul %380, %343, %cst_129 {dimension_numbers = #tpu.dot_dimension_numbers<[1], [0], [0], [1], [0, 0, 1, 1], [], []>} : vector<8x128xbf16>, vector<128x384xbf16>, vector<8x384xf32> -> vector<8x384xf32>
    %382 = vector.broadcast %344 : vector<1x384xf32> to vector<8x384xf32>
    %383 = arith.addf %381, %382 : vector<8x384xf32>
    %384 = arith.truncf %383 : vector<8x384xf32> to vector<8x384xbf16>
    %385 = arith.index_cast %c3_i32_126 : i32 to index
    %c0_130 = arith.constant 0 : index
    %c0_131 = arith.constant 0 : index
    %386 = vector.load %arg13[%385, %c0_130, %c0_131] : memref<8x8x384xbf16, #tpu.memory_space<vmem>>, vector<1x8x384xbf16>
    %387 = vector.shape_cast %386 : vector<1x8x384xbf16> to vector<8x384xbf16>
    %388 = vector.shape_cast %384 : vector<8x384xbf16> to vector<1x8x384xbf16>
    tpu.vector_store %arg13[%385, %c0_130, %c0_131], %388 {strides = array<i32>} : memref<8x8x384xbf16, #tpu.memory_space<vmem>>, vector<1x8x384xbf16>,
    %c4_i32_132 = arith.constant 4 : i32
    %389 = arith.index_cast %c4_i32_132 : i32 to index
    %c0_133 = arith.constant 0 : index
    %c0_134 = arith.constant 0 : index
    %390 = vector.load %arg14[%389, %c0_133, %c0_134] : memref<8x8x128xbf16, #tpu.memory_space<vmem>>, vector<1x8x128xbf16>
    %391 = vector.shape_cast %390 : vector<1x8x128xbf16> to vector<8x128xbf16>
    %cst_135 = arith.constant dense<0.000000e+00> : vector<8x384xf32>
    %392 = tpu.matmul %391, %343, %cst_135 {dimension_numbers = #tpu.dot_dimension_numbers<[1], [0], [0], [1], [0, 0, 1, 1], [], []>} : vector<8x128xbf16>, vector<128x384xbf16>, vector<8x384xf32> -> vector<8x384xf32>
    %393 = vector.broadcast %344 : vector<1x384xf32> to vector<8x384xf32>
    %394 = arith.addf %392, %393 : vector<8x384xf32>
    %395 = arith.truncf %394 : vector<8x384xf32> to vector<8x384xbf16>
    %396 = arith.index_cast %c4_i32_132 : i32 to index
    %c0_136 = arith.constant 0 : index
    %c0_137 = arith.constant 0 : index
    %397 = vector.load %arg13[%396, %c0_136, %c0_137] : memref<8x8x384xbf16, #tpu.memory_space<vmem>>, vector<1x8x384xbf16>
    %398 = vector.shape_cast %397 : vector<1x8x384xbf16> to vector<8x384xbf16>
    %399 = vector.shape_cast %395 : vector<8x384xbf16> to vector<1x8x384xbf16>
    tpu.vector_store %arg13[%396, %c0_136, %c0_137], %399 {strides = array<i32>} : memref<8x8x384xbf16, #tpu.memory_space<vmem>>, vector<1x8x384xbf16>,
    %c5_i32_138 = arith.constant 5 : i32
    %400 = arith.index_cast %c5_i32_138 : i32 to index
    %c0_139 = arith.constant 0 : index
    %c0_140 = arith.constant 0 : index
    %401 = vector.load %arg14[%400, %c0_139, %c0_140] : memref<8x8x128xbf16, #tpu.memory_space<vmem>>, vector<1x8x128xbf16>
    %402 = vector.shape_cast %401 : vector<1x8x128xbf16> to vector<8x128xbf16>
    %cst_141 = arith.constant dense<0.000000e+00> : vector<8x384xf32>
    %403 = tpu.matmul %402, %343, %cst_141 {dimension_numbers = #tpu.dot_dimension_numbers<[1], [0], [0], [1], [0, 0, 1, 1], [], []>} : vector<8x128xbf16>, vector<128x384xbf16>, vector<8x384xf32> -> vector<8x384xf32>
    %404 = vector.broadcast %344 : vector<1x384xf32> to vector<8x384xf32>
    %405 = arith.addf %403, %404 : vector<8x384xf32>
    %406 = arith.truncf %405 : vector<8x384xf32> to vector<8x384xbf16>
    %407 = arith.index_cast %c5_i32_138 : i32 to index
    %c0_142 = arith.constant 0 : index
    %c0_143 = arith.constant 0 : index
    %408 = vector.load %arg13[%407, %c0_142, %c0_143] : memref<8x8x384xbf16, #tpu.memory_space<vmem>>, vector<1x8x384xbf16>
    %409 = vector.shape_cast %408 : vector<1x8x384xbf16> to vector<8x384xbf16>
    %410 = vector.shape_cast %406 : vector<8x384xbf16> to vector<1x8x384xbf16>
    tpu.vector_store %arg13[%407, %c0_142, %c0_143], %410 {strides = array<i32>} : memref<8x8x384xbf16, #tpu.memory_space<vmem>>, vector<1x8x384xbf16>,
    %c6_i32_144 = arith.constant 6 : i32
    %411 = arith.index_cast %c6_i32_144 : i32 to index
    %c0_145 = arith.constant 0 : index
    %c0_146 = arith.constant 0 : index
    %412 = vector.load %arg14[%411, %c0_145, %c0_146] : memref<8x8x128xbf16, #tpu.memory_space<vmem>>, vector<1x8x128xbf16>
    %413 = vector.shape_cast %412 : vector<1x8x128xbf16> to vector<8x128xbf16>
    %cst_147 = arith.constant dense<0.000000e+00> : vector<8x384xf32>
    %414 = tpu.matmul %413, %343, %cst_147 {dimension_numbers = #tpu.dot_dimension_numbers<[1], [0], [0], [1], [0, 0, 1, 1], [], []>} : vector<8x128xbf16>, vector<128x384xbf16>, vector<8x384xf32> -> vector<8x384xf32>
    %415 = vector.broadcast %344 : vector<1x384xf32> to vector<8x384xf32>
    %416 = arith.addf %414, %415 : vector<8x384xf32>
    %417 = arith.truncf %416 : vector<8x384xf32> to vector<8x384xbf16>
    %418 = arith.index_cast %c6_i32_144 : i32 to index
    %c0_148 = arith.constant 0 : index
    %c0_149 = arith.constant 0 : index
    %419 = vector.load %arg13[%418, %c0_148, %c0_149] : memref<8x8x384xbf16, #tpu.memory_space<vmem>>, vector<1x8x384xbf16>
    %420 = vector.shape_cast %419 : vector<1x8x384xbf16> to vector<8x384xbf16>
    %421 = vector.shape_cast %417 : vector<8x384xbf16> to vector<1x8x384xbf16>
    tpu.vector_store %arg13[%418, %c0_148, %c0_149], %421 {strides = array<i32>} : memref<8x8x384xbf16, #tpu.memory_space<vmem>>, vector<1x8x384xbf16>,
    %c7_i32_150 = arith.constant 7 : i32
    %422 = arith.index_cast %c7_i32_150 : i32 to index
    %c0_151 = arith.constant 0 : index
    %c0_152 = arith.constant 0 : index
    %423 = vector.load %arg14[%422, %c0_151, %c0_152] : memref<8x8x128xbf16, #tpu.memory_space<vmem>>, vector<1x8x128xbf16>
    %424 = vector.shape_cast %423 : vector<1x8x128xbf16> to vector<8x128xbf16>
    %cst_153 = arith.constant dense<0.000000e+00> : vector<8x384xf32>
    %425 = tpu.matmul %424, %343, %cst_153 {dimension_numbers = #tpu.dot_dimension_numbers<[1], [0], [0], [1], [0, 0, 1, 1], [], []>} : vector<8x128xbf16>, vector<128x384xbf16>, vector<8x384xf32> -> vector<8x384xf32>
    %426 = vector.broadcast %344 : vector<1x384xf32> to vector<8x384xf32>
    %427 = arith.addf %425, %426 : vector<8x384xf32>
    %428 = arith.truncf %427 : vector<8x384xf32> to vector<8x384xbf16>
    %429 = arith.index_cast %c7_i32_150 : i32 to index
    %c0_154 = arith.constant 0 : index
    %c0_155 = arith.constant 0 : index
    %430 = vector.load %arg13[%429, %c0_154, %c0_155] : memref<8x8x384xbf16, #tpu.memory_space<vmem>>, vector<1x8x384xbf16>
    %431 = vector.shape_cast %430 : vector<1x8x384xbf16> to vector<8x384xbf16>
    %432 = vector.shape_cast %428 : vector<8x384xbf16> to vector<1x8x384xbf16>
    tpu.vector_store %arg13[%429, %c0_154, %c0_155], %432 {strides = array<i32>} : memref<8x8x384xbf16, #tpu.memory_space<vmem>>, vector<1x8x384xbf16>,
    %c8_i32_156 = arith.constant 8 : i32
    %c0_157 = arith.constant 0 : index
    %c0_158 = arith.constant 0 : index
    %433 = vector.load %arg7[%c0_157, %c0_158] : memref<128x384xbf16, #tpu.memory_space<vmem>>, vector<128x384xbf16>
    %c0_159 = arith.constant 0 : index
    %c0_160 = arith.constant 0 : index
    %434 = vector.load %arg9[%c0_159, %c0_160] : memref<1x128xf32, #tpu.memory_space<vmem>>, vector<1x128xf32>
    %435 = vector.shape_cast %434 : vector<1x128xf32> to vector<1x128xf32>
    %436 = vector.broadcast %435 : vector<1x128xf32> to vector<8x128xf32>
    %cst_161 = arith.constant 0.000000e+00 : f32
    %437 = vector.broadcast %cst_161 : f32 to vector<8x128xf32>
    %c0_i32_162 = arith.constant 0 : i32
    %438 = arith.index_cast %c0_i32_162 : i32 to index
    %c0_163 = arith.constant 0 : index
    %c0_164 = arith.constant 0 : index
    %439 = vector.load %arg13[%438, %c0_163, %c0_164] : memref<8x8x384xbf16, #tpu.memory_space<vmem>>, vector<1x8x384xbf16>
    %440 = vector.shape_cast %439 : vector<1x8x384xbf16> to vector<8x384xbf16>
    %441 = arith.truncf %437 : vector<8x128xf32> to vector<8x128xbf16>
    %cst_165 = arith.constant dense<0.000000e+00> : vector<8x384xf32>
    %442 = tpu.matmul %441, %433, %cst_165 {dimension_numbers = #tpu.dot_dimension_numbers<[1], [0], [0], [1], [0, 0, 1, 1], [], []>} : vector<8x128xbf16>, vector<128x384xbf16>, vector<8x384xf32> -> vector<8x384xf32>
    %443 = vector.extract_strided_slice %440 {offsets = [0, 0], sizes = [8, 256], strides = [1, 1]} : vector<8x384xbf16> to vector<8x256xbf16>
    %444 = vector.extract_strided_slice %442 {offsets = [0, 0], sizes = [8, 256], strides = [1, 1]} : vector<8x384xf32> to vector<8x256xf32>
    %445 = arith.extf %443 : vector<8x256xbf16> to vector<8x256xf32>
    %446 = arith.addf %445, %444 : vector<8x256xf32>
    %447 = arith.negf %446 : vector<8x256xf32>
    %448 = math.exp %447 : vector<8x256xf32>
    %cst_166 = arith.constant 1.000000e+00 : f32
    %449 = vector.broadcast %cst_166 : f32 to vector<8x256xf32>
    %450 = arith.addf %449, %448 : vector<8x256xf32>
    %451 = arith.divf %449, %450 : vector<8x256xf32>
    %452 = vector.extract_strided_slice %451 {offsets = [0, 0], sizes = [8, 128], strides = [1, 1]} : vector<8x256xf32> to vector<8x128xf32>
    %453 = vector.extract_strided_slice %451 {offsets = [0, 128], sizes = [8, 128], strides = [1, 1]} : vector<8x256xf32> to vector<8x128xf32>
    %454 = vector.extract_strided_slice %440 {offsets = [0, 256], sizes = [8, 128], strides = [1, 1]} : vector<8x384xbf16> to vector<8x128xbf16>
    %455 = vector.extract_strided_slice %442 {offsets = [0, 256], sizes = [8, 128], strides = [1, 1]} : vector<8x384xf32> to vector<8x128xf32>
    %456 = arith.addf %455, %436 : vector<8x128xf32>
    %457 = arith.mulf %452, %456 : vector<8x128xf32>
    %458 = arith.extf %454 : vector<8x128xbf16> to vector<8x128xf32>
    %459 = arith.addf %458, %457 : vector<8x128xf32>
    %460 = math.tanh %459 : vector<8x128xf32>
    %461 = arith.subf %437, %460 : vector<8x128xf32>
    %462 = arith.mulf %453, %461 : vector<8x128xf32>
    %463 = arith.addf %460, %462 : vector<8x128xf32>
    %c1_i32_167 = arith.constant 1 : i32
    %464 = arith.index_cast %c1_i32_167 : i32 to index
    %c0_168 = arith.constant 0 : index
    %c0_169 = arith.constant 0 : index
    %465 = vector.load %arg13[%464, %c0_168, %c0_169] : memref<8x8x384xbf16, #tpu.memory_space<vmem>>, vector<1x8x384xbf16>
    %466 = vector.shape_cast %465 : vector<1x8x384xbf16> to vector<8x384xbf16>
    %467 = arith.truncf %463 : vector<8x128xf32> to vector<8x128xbf16>
    %cst_170 = arith.constant dense<0.000000e+00> : vector<8x384xf32>
    %468 = tpu.matmul %467, %433, %cst_170 {dimension_numbers = #tpu.dot_dimension_numbers<[1], [0], [0], [1], [0, 0, 1, 1], [], []>} : vector<8x128xbf16>, vector<128x384xbf16>, vector<8x384xf32> -> vector<8x384xf32>
    %469 = vector.extract_strided_slice %466 {offsets = [0, 0], sizes = [8, 256], strides = [1, 1]} : vector<8x384xbf16> to vector<8x256xbf16>
    %470 = vector.extract_strided_slice %468 {offsets = [0, 0], sizes = [8, 256], strides = [1, 1]} : vector<8x384xf32> to vector<8x256xf32>
    %471 = arith.extf %469 : vector<8x256xbf16> to vector<8x256xf32>
    %472 = arith.addf %471, %470 : vector<8x256xf32>
    %473 = arith.negf %472 : vector<8x256xf32>
    %474 = math.exp %473 : vector<8x256xf32>
    %cst_171 = arith.constant 1.000000e+00 : f32
    %475 = vector.broadcast %cst_171 : f32 to vector<8x256xf32>
    %476 = arith.addf %475, %474 : vector<8x256xf32>
    %477 = arith.divf %475, %476 : vector<8x256xf32>
    %478 = vector.extract_strided_slice %477 {offsets = [0, 0], sizes = [8, 128], strides = [1, 1]} : vector<8x256xf32> to vector<8x128xf32>
    %479 = vector.extract_strided_slice %477 {offsets = [0, 128], sizes = [8, 128], strides = [1, 1]} : vector<8x256xf32> to vector<8x128xf32>
    %480 = vector.extract_strided_slice %466 {offsets = [0, 256], sizes = [8, 128], strides = [1, 1]} : vector<8x384xbf16> to vector<8x128xbf16>
    %481 = vector.extract_strided_slice %468 {offsets = [0, 256], sizes = [8, 128], strides = [1, 1]} : vector<8x384xf32> to vector<8x128xf32>
    %482 = arith.addf %481, %436 : vector<8x128xf32>
    %483 = arith.mulf %478, %482 : vector<8x128xf32>
    %484 = arith.extf %480 : vector<8x128xbf16> to vector<8x128xf32>
    %485 = arith.addf %484, %483 : vector<8x128xf32>
    %486 = math.tanh %485 : vector<8x128xf32>
    %487 = arith.subf %463, %486 : vector<8x128xf32>
    %488 = arith.mulf %479, %487 : vector<8x128xf32>
    %489 = arith.addf %486, %488 : vector<8x128xf32>
    %c2_i32_172 = arith.constant 2 : i32
    %490 = arith.index_cast %c2_i32_172 : i32 to index
    %c0_173 = arith.constant 0 : index
    %c0_174 = arith.constant 0 : index
    %491 = vector.load %arg13[%490, %c0_173, %c0_174] : memref<8x8x384xbf16, #tpu.memory_space<vmem>>, vector<1x8x384xbf16>
    %492 = vector.shape_cast %491 : vector<1x8x384xbf16> to vector<8x384xbf16>
    %493 = arith.truncf %489 : vector<8x128xf32> to vector<8x128xbf16>
    %cst_175 = arith.constant dense<0.000000e+00> : vector<8x384xf32>
    %494 = tpu.matmul %493, %433, %cst_175 {dimension_numbers = #tpu.dot_dimension_numbers<[1], [0], [0], [1], [0, 0, 1, 1], [], []>} : vector<8x128xbf16>, vector<128x384xbf16>, vector<8x384xf32> -> vector<8x384xf32>
    %495 = vector.extract_strided_slice %492 {offsets = [0, 0], sizes = [8, 256], strides = [1, 1]} : vector<8x384xbf16> to vector<8x256xbf16>
    %496 = vector.extract_strided_slice %494 {offsets = [0, 0], sizes = [8, 256], strides = [1, 1]} : vector<8x384xf32> to vector<8x256xf32>
    %497 = arith.extf %495 : vector<8x256xbf16> to vector<8x256xf32>
    %498 = arith.addf %497, %496 : vector<8x256xf32>
    %499 = arith.negf %498 : vector<8x256xf32>
    %500 = math.exp %499 : vector<8x256xf32>
    %cst_176 = arith.constant 1.000000e+00 : f32
    %501 = vector.broadcast %cst_176 : f32 to vector<8x256xf32>
    %502 = arith.addf %501, %500 : vector<8x256xf32>
    %503 = arith.divf %501, %502 : vector<8x256xf32>
    %504 = vector.extract_strided_slice %503 {offsets = [0, 0], sizes = [8, 128], strides = [1, 1]} : vector<8x256xf32> to vector<8x128xf32>
    %505 = vector.extract_strided_slice %503 {offsets = [0, 128], sizes = [8, 128], strides = [1, 1]} : vector<8x256xf32> to vector<8x128xf32>
    %506 = vector.extract_strided_slice %492 {offsets = [0, 256], sizes = [8, 128], strides = [1, 1]} : vector<8x384xbf16> to vector<8x128xbf16>
    %507 = vector.extract_strided_slice %494 {offsets = [0, 256], sizes = [8, 128], strides = [1, 1]} : vector<8x384xf32> to vector<8x128xf32>
    %508 = arith.addf %507, %436 : vector<8x128xf32>
    %509 = arith.mulf %504, %508 : vector<8x128xf32>
    %510 = arith.extf %506 : vector<8x128xbf16> to vector<8x128xf32>
    %511 = arith.addf %510, %509 : vector<8x128xf32>
    %512 = math.tanh %511 : vector<8x128xf32>
    %513 = arith.subf %489, %512 : vector<8x128xf32>
    %514 = arith.mulf %505, %513 : vector<8x128xf32>
    %515 = arith.addf %512, %514 : vector<8x128xf32>
    %c3_i32_177 = arith.constant 3 : i32
    %516 = arith.index_cast %c3_i32_177 : i32 to index
    %c0_178 = arith.constant 0 : index
    %c0_179 = arith.constant 0 : index
    %517 = vector.load %arg13[%516, %c0_178, %c0_179] : memref<8x8x384xbf16, #tpu.memory_space<vmem>>, vector<1x8x384xbf16>
    %518 = vector.shape_cast %517 : vector<1x8x384xbf16> to vector<8x384xbf16>
    %519 = arith.truncf %515 : vector<8x128xf32> to vector<8x128xbf16>
    %cst_180 = arith.constant dense<0.000000e+00> : vector<8x384xf32>
    %520 = tpu.matmul %519, %433, %cst_180 {dimension_numbers = #tpu.dot_dimension_numbers<[1], [0], [0], [1], [0, 0, 1, 1], [], []>} : vector<8x128xbf16>, vector<128x384xbf16>, vector<8x384xf32> -> vector<8x384xf32>
    %521 = vector.extract_strided_slice %518 {offsets = [0, 0], sizes = [8, 256], strides = [1, 1]} : vector<8x384xbf16> to vector<8x256xbf16>
    %522 = vector.extract_strided_slice %520 {offsets = [0, 0], sizes = [8, 256], strides = [1, 1]} : vector<8x384xf32> to vector<8x256xf32>
    %523 = arith.extf %521 : vector<8x256xbf16> to vector<8x256xf32>
    %524 = arith.addf %523, %522 : vector<8x256xf32>
    %525 = arith.negf %524 : vector<8x256xf32>
    %526 = math.exp %525 : vector<8x256xf32>
    %cst_181 = arith.constant 1.000000e+00 : f32
    %527 = vector.broadcast %cst_181 : f32 to vector<8x256xf32>
    %528 = arith.addf %527, %526 : vector<8x256xf32>
    %529 = arith.divf %527, %528 : vector<8x256xf32>
    %530 = vector.extract_strided_slice %529 {offsets = [0, 0], sizes = [8, 128], strides = [1, 1]} : vector<8x256xf32> to vector<8x128xf32>
    %531 = vector.extract_strided_slice %529 {offsets = [0, 128], sizes = [8, 128], strides = [1, 1]} : vector<8x256xf32> to vector<8x128xf32>
    %532 = vector.extract_strided_slice %518 {offsets = [0, 256], sizes = [8, 128], strides = [1, 1]} : vector<8x384xbf16> to vector<8x128xbf16>
    %533 = vector.extract_strided_slice %520 {offsets = [0, 256], sizes = [8, 128], strides = [1, 1]} : vector<8x384xf32> to vector<8x128xf32>
    %534 = arith.addf %533, %436 : vector<8x128xf32>
    %535 = arith.mulf %530, %534 : vector<8x128xf32>
    %536 = arith.extf %532 : vector<8x128xbf16> to vector<8x128xf32>
    %537 = arith.addf %536, %535 : vector<8x128xf32>
    %538 = math.tanh %537 : vector<8x128xf32>
    %539 = arith.subf %515, %538 : vector<8x128xf32>
    %540 = arith.mulf %531, %539 : vector<8x128xf32>
    %541 = arith.addf %538, %540 : vector<8x128xf32>
    %c4_i32_182 = arith.constant 4 : i32
    %542 = arith.index_cast %c4_i32_182 : i32 to index
    %c0_183 = arith.constant 0 : index
    %c0_184 = arith.constant 0 : index
    %543 = vector.load %arg13[%542, %c0_183, %c0_184] : memref<8x8x384xbf16, #tpu.memory_space<vmem>>, vector<1x8x384xbf16>
    %544 = vector.shape_cast %543 : vector<1x8x384xbf16> to vector<8x384xbf16>
    %545 = arith.truncf %541 : vector<8x128xf32> to vector<8x128xbf16>
    %cst_185 = arith.constant dense<0.000000e+00> : vector<8x384xf32>
    %546 = tpu.matmul %545, %433, %cst_185 {dimension_numbers = #tpu.dot_dimension_numbers<[1], [0], [0], [1], [0, 0, 1, 1], [], []>} : vector<8x128xbf16>, vector<128x384xbf16>, vector<8x384xf32> -> vector<8x384xf32>
    %547 = vector.extract_strided_slice %544 {offsets = [0, 0], sizes = [8, 256], strides = [1, 1]} : vector<8x384xbf16> to vector<8x256xbf16>
    %548 = vector.extract_strided_slice %546 {offsets = [0, 0], sizes = [8, 256], strides = [1, 1]} : vector<8x384xf32> to vector<8x256xf32>
    %549 = arith.extf %547 : vector<8x256xbf16> to vector<8x256xf32>
    %550 = arith.addf %549, %548 : vector<8x256xf32>
    %551 = arith.negf %550 : vector<8x256xf32>
    %552 = math.exp %551 : vector<8x256xf32>
    %cst_186 = arith.constant 1.000000e+00 : f32
    %553 = vector.broadcast %cst_186 : f32 to vector<8x256xf32>
    %554 = arith.addf %553, %552 : vector<8x256xf32>
    %555 = arith.divf %553, %554 : vector<8x256xf32>
    %556 = vector.extract_strided_slice %555 {offsets = [0, 0], sizes = [8, 128], strides = [1, 1]} : vector<8x256xf32> to vector<8x128xf32>
    %557 = vector.extract_strided_slice %555 {offsets = [0, 128], sizes = [8, 128], strides = [1, 1]} : vector<8x256xf32> to vector<8x128xf32>
    %558 = vector.extract_strided_slice %544 {offsets = [0, 256], sizes = [8, 128], strides = [1, 1]} : vector<8x384xbf16> to vector<8x128xbf16>
    %559 = vector.extract_strided_slice %546 {offsets = [0, 256], sizes = [8, 128], strides = [1, 1]} : vector<8x384xf32> to vector<8x128xf32>
    %560 = arith.addf %559, %436 : vector<8x128xf32>
    %561 = arith.mulf %556, %560 : vector<8x128xf32>
    %562 = arith.extf %558 : vector<8x128xbf16> to vector<8x128xf32>
    %563 = arith.addf %562, %561 : vector<8x128xf32>
    %564 = math.tanh %563 : vector<8x128xf32>
    %565 = arith.subf %541, %564 : vector<8x128xf32>
    %566 = arith.mulf %557, %565 : vector<8x128xf32>
    %567 = arith.addf %564, %566 : vector<8x128xf32>
    %c5_i32_187 = arith.constant 5 : i32
    %568 = arith.index_cast %c5_i32_187 : i32 to index
    %c0_188 = arith.constant 0 : index
    %c0_189 = arith.constant 0 : index
    %569 = vector.load %arg13[%568, %c0_188, %c0_189] : memref<8x8x384xbf16, #tpu.memory_space<vmem>>, vector<1x8x384xbf16>
    %570 = vector.shape_cast %569 : vector<1x8x384xbf16> to vector<8x384xbf16>
    %571 = arith.truncf %567 : vector<8x128xf32> to vector<8x128xbf16>
    %cst_190 = arith.constant dense<0.000000e+00> : vector<8x384xf32>
    %572 = tpu.matmul %571, %433, %cst_190 {dimension_numbers = #tpu.dot_dimension_numbers<[1], [0], [0], [1], [0, 0, 1, 1], [], []>} : vector<8x128xbf16>, vector<128x384xbf16>, vector<8x384xf32> -> vector<8x384xf32>
    %573 = vector.extract_strided_slice %570 {offsets = [0, 0], sizes = [8, 256], strides = [1, 1]} : vector<8x384xbf16> to vector<8x256xbf16>
    %574 = vector.extract_strided_slice %572 {offsets = [0, 0], sizes = [8, 256], strides = [1, 1]} : vector<8x384xf32> to vector<8x256xf32>
    %575 = arith.extf %573 : vector<8x256xbf16> to vector<8x256xf32>
    %576 = arith.addf %575, %574 : vector<8x256xf32>
    %577 = arith.negf %576 : vector<8x256xf32>
    %578 = math.exp %577 : vector<8x256xf32>
    %cst_191 = arith.constant 1.000000e+00 : f32
    %579 = vector.broadcast %cst_191 : f32 to vector<8x256xf32>
    %580 = arith.addf %579, %578 : vector<8x256xf32>
    %581 = arith.divf %579, %580 : vector<8x256xf32>
    %582 = vector.extract_strided_slice %581 {offsets = [0, 0], sizes = [8, 128], strides = [1, 1]} : vector<8x256xf32> to vector<8x128xf32>
    %583 = vector.extract_strided_slice %581 {offsets = [0, 128], sizes = [8, 128], strides = [1, 1]} : vector<8x256xf32> to vector<8x128xf32>
    %584 = vector.extract_strided_slice %570 {offsets = [0, 256], sizes = [8, 128], strides = [1, 1]} : vector<8x384xbf16> to vector<8x128xbf16>
    %585 = vector.extract_strided_slice %572 {offsets = [0, 256], sizes = [8, 128], strides = [1, 1]} : vector<8x384xf32> to vector<8x128xf32>
    %586 = arith.addf %585, %436 : vector<8x128xf32>
    %587 = arith.mulf %582, %586 : vector<8x128xf32>
    %588 = arith.extf %584 : vector<8x128xbf16> to vector<8x128xf32>
    %589 = arith.addf %588, %587 : vector<8x128xf32>
    %590 = math.tanh %589 : vector<8x128xf32>
    %591 = arith.subf %567, %590 : vector<8x128xf32>
    %592 = arith.mulf %583, %591 : vector<8x128xf32>
    %593 = arith.addf %590, %592 : vector<8x128xf32>
    %c6_i32_192 = arith.constant 6 : i32
    %594 = arith.index_cast %c6_i32_192 : i32 to index
    %c0_193 = arith.constant 0 : index
    %c0_194 = arith.constant 0 : index
    %595 = vector.load %arg13[%594, %c0_193, %c0_194] : memref<8x8x384xbf16, #tpu.memory_space<vmem>>, vector<1x8x384xbf16>
    %596 = vector.shape_cast %595 : vector<1x8x384xbf16> to vector<8x384xbf16>
    %597 = arith.truncf %593 : vector<8x128xf32> to vector<8x128xbf16>
    %cst_195 = arith.constant dense<0.000000e+00> : vector<8x384xf32>
    %598 = tpu.matmul %597, %433, %cst_195 {dimension_numbers = #tpu.dot_dimension_numbers<[1], [0], [0], [1], [0, 0, 1, 1], [], []>} : vector<8x128xbf16>, vector<128x384xbf16>, vector<8x384xf32> -> vector<8x384xf32>
    %599 = vector.extract_strided_slice %596 {offsets = [0, 0], sizes = [8, 256], strides = [1, 1]} : vector<8x384xbf16> to vector<8x256xbf16>
    %600 = vector.extract_strided_slice %598 {offsets = [0, 0], sizes = [8, 256], strides = [1, 1]} : vector<8x384xf32> to vector<8x256xf32>
    %601 = arith.extf %599 : vector<8x256xbf16> to vector<8x256xf32>
    %602 = arith.addf %601, %600 : vector<8x256xf32>
    %603 = arith.negf %602 : vector<8x256xf32>
    %604 = math.exp %603 : vector<8x256xf32>
    %cst_196 = arith.constant 1.000000e+00 : f32
    %605 = vector.broadcast %cst_196 : f32 to vector<8x256xf32>
    %606 = arith.addf %605, %604 : vector<8x256xf32>
    %607 = arith.divf %605, %606 : vector<8x256xf32>
    %608 = vector.extract_strided_slice %607 {offsets = [0, 0], sizes = [8, 128], strides = [1, 1]} : vector<8x256xf32> to vector<8x128xf32>
    %609 = vector.extract_strided_slice %607 {offsets = [0, 128], sizes = [8, 128], strides = [1, 1]} : vector<8x256xf32> to vector<8x128xf32>
    %610 = vector.extract_strided_slice %596 {offsets = [0, 256], sizes = [8, 128], strides = [1, 1]} : vector<8x384xbf16> to vector<8x128xbf16>
    %611 = vector.extract_strided_slice %598 {offsets = [0, 256], sizes = [8, 128], strides = [1, 1]} : vector<8x384xf32> to vector<8x128xf32>
    %612 = arith.addf %611, %436 : vector<8x128xf32>
    %613 = arith.mulf %608, %612 : vector<8x128xf32>
    %614 = arith.extf %610 : vector<8x128xbf16> to vector<8x128xf32>
    %615 = arith.addf %614, %613 : vector<8x128xf32>
    %616 = math.tanh %615 : vector<8x128xf32>
    %617 = arith.subf %593, %616 : vector<8x128xf32>
    %618 = arith.mulf %609, %617 : vector<8x128xf32>
    %619 = arith.addf %616, %618 : vector<8x128xf32>
    %c7_i32_197 = arith.constant 7 : i32
    %620 = arith.index_cast %c7_i32_197 : i32 to index
    %c0_198 = arith.constant 0 : index
    %c0_199 = arith.constant 0 : index
    %621 = vector.load %arg13[%620, %c0_198, %c0_199] : memref<8x8x384xbf16, #tpu.memory_space<vmem>>, vector<1x8x384xbf16>
    %622 = vector.shape_cast %621 : vector<1x8x384xbf16> to vector<8x384xbf16>
    %623 = arith.truncf %619 : vector<8x128xf32> to vector<8x128xbf16>
    %cst_200 = arith.constant dense<0.000000e+00> : vector<8x384xf32>
    %624 = tpu.matmul %623, %433, %cst_200 {dimension_numbers = #tpu.dot_dimension_numbers<[1], [0], [0], [1], [0, 0, 1, 1], [], []>} : vector<8x128xbf16>, vector<128x384xbf16>, vector<8x384xf32> -> vector<8x384xf32>
    %625 = vector.extract_strided_slice %622 {offsets = [0, 0], sizes = [8, 256], strides = [1, 1]} : vector<8x384xbf16> to vector<8x256xbf16>
    %626 = vector.extract_strided_slice %624 {offsets = [0, 0], sizes = [8, 256], strides = [1, 1]} : vector<8x384xf32> to vector<8x256xf32>
    %627 = arith.extf %625 : vector<8x256xbf16> to vector<8x256xf32>
    %628 = arith.addf %627, %626 : vector<8x256xf32>
    %629 = arith.negf %628 : vector<8x256xf32>
    %630 = math.exp %629 : vector<8x256xf32>
    %cst_201 = arith.constant 1.000000e+00 : f32
    %631 = vector.broadcast %cst_201 : f32 to vector<8x256xf32>
    %632 = arith.addf %631, %630 : vector<8x256xf32>
    %633 = arith.divf %631, %632 : vector<8x256xf32>
    %634 = vector.extract_strided_slice %633 {offsets = [0, 0], sizes = [8, 128], strides = [1, 1]} : vector<8x256xf32> to vector<8x128xf32>
    %635 = vector.extract_strided_slice %633 {offsets = [0, 128], sizes = [8, 128], strides = [1, 1]} : vector<8x256xf32> to vector<8x128xf32>
    %636 = vector.extract_strided_slice %622 {offsets = [0, 256], sizes = [8, 128], strides = [1, 1]} : vector<8x384xbf16> to vector<8x128xbf16>
    %637 = vector.extract_strided_slice %624 {offsets = [0, 256], sizes = [8, 128], strides = [1, 1]} : vector<8x384xf32> to vector<8x128xf32>
    %638 = arith.addf %637, %436 : vector<8x128xf32>
    %639 = arith.mulf %634, %638 : vector<8x128xf32>
    %640 = arith.extf %636 : vector<8x128xbf16> to vector<8x128xf32>
    %641 = arith.addf %640, %639 : vector<8x128xf32>
    %642 = math.tanh %641 : vector<8x128xf32>
    %643 = arith.subf %619, %642 : vector<8x128xf32>
    %644 = arith.mulf %635, %643 : vector<8x128xf32>
    %645 = arith.addf %642, %644 : vector<8x128xf32>
    %c8_i32_202 = arith.constant 8 : i32
    %646 = arith.truncf %645 : vector<8x128xf32> to vector<8x128xbf16>
    %c0_203 = arith.constant 0 : index
    %c0_204 = arith.constant 0 : index
    %647 = vector.load %arg10[%c0_203, %c0_204] : memref<128x128xbf16, #tpu.memory_space<vmem>>, vector<128x128xbf16>
    %cst_205 = arith.constant dense<0.000000e+00> : vector<8x128xf32>
    %648 = tpu.matmul %646, %647, %cst_205 {dimension_numbers = #tpu.dot_dimension_numbers<[1], [0], [0], [1], [0, 0, 1, 1], [], []>} : vector<8x128xbf16>, vector<128x128xbf16>, vector<8x128xf32> -> vector<8x128xf32>
    %c0_206 = arith.constant 0 : index
    %c0_207 = arith.constant 0 : index
    %649 = vector.load %arg11[%c0_206, %c0_207] : memref<1x128xf32, #tpu.memory_space<vmem>>, vector<1x128xf32>
    %650 = vector.broadcast %649 : vector<1x128xf32> to vector<8x128xf32>
    %651 = arith.addf %648, %650 : vector<8x128xf32>
    %c0_208 = arith.constant 0 : index
    %c0_209 = arith.constant 0 : index
    %652 = vector.load %arg12[%c0_208, %c0_209] : memref<8x128xf32, #tpu.memory_space<vmem>>, vector<8x128xf32>
    tpu.vector_store %arg12[%c0_208, %c0_209], %651 {strides = array<i32>} : memref<8x128xf32, #tpu.memory_space<vmem>>, vector<8x128xf32>,
    return
  }
  func.func @transform_0(%arg0: i32) -> (i32, i32, i32) {
    %c0_i32 = arith.constant 0 : i32
    %c0_i32_0 = arith.constant 0 : i32
    %c0_i32_1 = arith.constant 0 : i32
    return %c0_i32, %arg0, %c0_i32_0 : i32, i32, i32
  }
  func.func @transform_1(%arg0: i32) -> (i32, i32) {
    %c0_i32 = arith.constant 0 : i32
    %c0_i32_0 = arith.constant 0 : i32
    %c0_i32_1 = arith.constant 0 : i32
    return %c0_i32, %c0_i32_0 : i32, i32
  }
  func.func @transform_2(%arg0: i32) -> (i32, i32) {
    %c0_i32 = arith.constant 0 : i32
    %c0_i32_0 = arith.constant 0 : i32
    %c0_i32_1 = arith.constant 0 : i32
    return %c0_i32, %c0_i32_0 : i32, i32
  }
  func.func @transform_3(%arg0: i32) -> (i32, i32) {
    %c0_i32 = arith.constant 0 : i32
    %c0_i32_0 = arith.constant 0 : i32
    %c0_i32_1 = arith.constant 0 : i32
    return %c0_i32, %c0_i32_0 : i32, i32
  }
  func.func @transform_4(%arg0: i32) -> (i32, i32) {
    %c0_i32 = arith.constant 0 : i32
    %c0_i32_0 = arith.constant 0 : i32
    %c0_i32_1 = arith.constant 0 : i32
    return %c0_i32, %c0_i32_0 : i32, i32
  }
  func.func @transform_5(%arg0: i32) -> (i32, i32) {
    %c0_i32 = arith.constant 0 : i32
    %c0_i32_0 = arith.constant 0 : i32
    %c0_i32_1 = arith.constant 0 : i32
    return %c0_i32, %c0_i32_0 : i32, i32
  }
  func.func @transform_6(%arg0: i32) -> (i32, i32) {
    %c0_i32 = arith.constant 0 : i32
    %c0_i32_0 = arith.constant 0 : i32
    %c0_i32_1 = arith.constant 0 : i32
    return %c0_i32, %c0_i32_0 : i32, i32
  }
  func.func @transform_7(%arg0: i32) -> (i32, i32) {
    %c0_i32 = arith.constant 0 : i32
    %c0_i32_0 = arith.constant 0 : i32
    %c0_i32_1 = arith.constant 0 : i32
    return %c0_i32, %c0_i32_0 : i32, i32
  }
  func.func @transform_8(%arg0: i32) -> (i32, i32) {
    %c0_i32 = arith.constant 0 : i32
    %c0_i32_0 = arith.constant 0 : i32
    %c0_i32_1 = arith.constant 0 : i32
    return %c0_i32, %c0_i32_0 : i32, i32
  }
  func.func @transform_9(%arg0: i32) -> (i32, i32) {
    %c0_i32 = arith.constant 0 : i32
    %c0_i32_0 = arith.constant 0 : i32
    %c0_i32_1 = arith.constant 0 : i32
    return %c0_i32, %c0_i32_0 : i32, i32
  }
  func.func @transform_10(%arg0: i32) -> (i32, i32) {
    %c0_i32 = arith.constant 0 : i32
    %c0_i32_0 = arith.constant 0 : i32
    %c0_i32_1 = arith.constant 0 : i32
    return %c0_i32, %c0_i32_0 : i32, i32
  }
  func.func @transform_11(%arg0: i32) -> (i32, i32) {
    %c0_i32 = arith.constant 0 : i32
    %c0_i32_0 = arith.constant 0 : i32
    return %arg0, %c0_i32 : i32, i32
  }
}

</mosaic_0001>

<llo_original>
// kernel: emotion_gru_forward.1
$region0: #{emotion_gru_forward.1}
  #allocation0 [shape = 'u32[]', space=smem, size = 0x4, offset = 0x4, fixed_abs, tag = 'smem constant byte address 0x4 - core index']
  #allocation1 [shape = 'u32[144,128]{1,0:T(1,128)}', space=vmem, size = 0x12000, scoped, tag = 'internal scratch']
  #allocation2 [shape = 'bf16[8,8,384]{2,1,0:T(8,128)(2,1)}', space=vmem, size = 0xc000, scoped, tag = 'scratch operand']
  #allocation3 [shape = 'bf16[8,8,128]{2,1,0:T(8,128)(2,1)}', space=vmem, size = 0x4000, scoped, tag = 'scratch operand']
  %s0 = inlined_call_operand.vmem [shape: bf16[8,8,32], index: 0, kind: input, shape index: {}]
  %s1 = inlined_call_operand.hbm [shape: bf16[32,384], index: 1, kind: input, shape index: {}]
  %s2 = inlined_call_operand.vmem [shape: bf16[128,384], index: 2, kind: input, shape index: {}]
  %s3 = inlined_call_operand.vmem [shape: f32[1,384], index: 3, kind: input, shape index: {}]
  %s4 = inlined_call_operand.hbm [shape: f32[1,128], index: 4, kind: input, shape index: {}]
  %s5 = inlined_call_operand.hbm [shape: bf16[128,384], index: 5, kind: input, shape index: {}]
  %s6 = inlined_call_operand.hbm [shape: bf16[128,384], index: 6, kind: input, shape index: {}]
  %s7 = inlined_call_operand.vmem [shape: f32[1,384], index: 7, kind: input, shape index: {}]
  %s8 = inlined_call_operand.hbm [shape: f32[1,128], index: 8, kind: input, shape index: {}]
  %s9 = inlined_call_operand.vmem [shape: bf16[128,128], index: 9, kind: input, shape index: {}]
  %s10 = inlined_call_operand.vmem [shape: f32[1,128], index: 10, kind: input, shape index: {}]
  %s11 = inlined_call_operand.vmem [shape: f32[8,128], index: 11, kind: output, shape index: {}]
  %s12 = sld [smem:[#allocation0]]
  $region74: #{emotion_gru_forward.1} parent=0
    _
  %s14 = ssub.s32 1, %s12
  %s15 = scalar_select 0, %s14, %s12
  $region1: #{emotion_gru_forward.1} parent=0
    #allocation4 [shape = 'u8[24576]{0}', space=vmem, size = 0x6000, scoped, tag = 'input window, operand 1, single buffered']
    #allocation5 [shape = 's32[1]{0}', space=sflag, size = 0x4, scoped, tag = 'scoped memory for emotion_gru_forward.1']
    #allocation6 [shape = 'u8[512]{0}', space=vmem, size = 0x400, scoped, tag = 'input window, operand 4, single buffered']
    #allocation7 [shape = 's32[1]{0}', space=sflag, size = 0x4, scoped, tag = 'scoped memory for emotion_gru_forward.1']
    #allocation8 [shape = 'u8[98304]{0}', space=vmem, size = 0x18000, scoped, tag = 'input window, operand 5, single buffered']
    #allocation9 [shape = 'u8[98304]{0}', space=vmem, size = 0x18000, scoped, tag = 'input window, operand 6, single buffered']
    #allocation10 [shape = 's32[1]{0}', space=sflag, size = 0x4, scoped, tag = 'scoped memory for emotion_gru_forward.1']
    #allocation11 [shape = 'u8[512]{0}', space=vmem, size = 0x400, scoped, tag = 'input window, operand 8, single buffered']
    %16 = vsyncpa [#allocation5], 0
    %17 = vsyncpa [#allocation7], 0
    %18 = vsyncpa [#allocation10], 0
    // Predicated region
    $region2: #{emotion_gru_forward.1} parent=1 // pred_check
      _
    $region3: #{emotion_gru_forward.1} parent=1 // pred_check_branch
      %20 = sbr.rel (0) target = $region5
    $region4: #{emotion_gru_forward.1} parent=1 // pred_region
      _
    $region5: #{emotion_gru_forward.1} parent=1 // pred_fallthru
      _
    // Predicated region
    $region6: #{emotion_gru_forward.1} parent=1 // pred_check
      _
    $region7: #{emotion_gru_forward.1} parent=1 // pred_check_branch
      %22 = sbr.rel (0) target = $region9
    $region8: #{emotion_gru_forward.1} parent=1 // pred_region
      %s24 = ssub.s32 768, 768
      %25 = vsyncadd [#allocation5], %s24
      %s26 = sshll.u32 [#allocation4], 4
      %s27 = int_to_ptr.vmem [resolvable:$true] %s26
      %32 = dma.hbm_to_vmem [thread:$0]  %s1, 768, %s27, [#allocation5], 192, 192, 12
    $region9: #{emotion_gru_forward.1} parent=1 // pred_fallthru
      _
    // Predicated region
    $region10: #{emotion_gru_forward.1} parent=1 // pred_check
      _
    $region11: #{emotion_gru_forward.1} parent=1 // pred_check_branch
      %34 = sbr.rel (0) target = $region13
    $region12: #{emotion_gru_forward.1} parent=1 // pred_region
      _
    $region13: #{emotion_gru_forward.1} parent=1 // pred_fallthru
      _
    // Predicated region
    $region14: #{emotion_gru_forward.1} parent=1 // pred_check
      _
    $region15: #{emotion_gru_forward.1} parent=1 // pred_check_branch
      %36 = sbr.rel (0) target = $region17
    $region16: #{emotion_gru_forward.1} parent=1 // pred_region
      _
    $region17: #{emotion_gru_forward.1} parent=1 // pred_fallthru
      _
    // Predicated region
    $region18: #{emotion_gru_forward.1} parent=1 // pred_check
      _
    $region19: #{emotion_gru_forward.1} parent=1 // pred_check_branch
      %38 = sbr.rel (0) target = $region21
    $region20: #{emotion_gru_forward.1} parent=1 // pred_region
      %s40 = ssub.s32 16, 16
      %41 = vsyncadd [#allocation7], %s40
      %s43 = sshll.u32 [#allocation6], 4
      %s44 = int_to_ptr.vmem [resolvable:$true] %s43
      %46 = dma.hbm_to_vmem [thread:$0]  %s4, 16, %s44, [#allocation7]
    $region21: #{emotion_gru_forward.1} parent=1 // pred_fallthru
      _
    // Predicated region
    $region22: #{emotion_gru_forward.1} parent=1 // pred_check
      _
    $region23: #{emotion_gru_forward.1} parent=1 // pred_check_branch
      %48 = sbr.rel (0) target = $region25
    $region24: #{emotion_gru_forward.1} parent=1 // pred_region
      %s50 = ssub.s32 3072, 3072
      %51 = vsyncadd [#allocation7], %s50
      %s52 = sshll.u32 [#allocation8], 4
      %s53 = int_to_ptr.vmem [resolvable:$true] %s52
      %58 = dma.hbm_to_vmem [thread:$0]  %s5, 3072, %s53, [#allocation7], 192, 192, 12
    $region25: #{emotion_gru_forward.1} parent=1 // pred_fallthru
      _
    // Predicated region
    $region26: #{emotion_gru_forward.1} parent=1 // pred_check
      _
    $region27: #{emotion_gru_forward.1} parent=1 // pred_check_branch
      %60 = sbr.rel (0) target = $region29
    $region28: #{emotion_gru_forward.1} parent=1 // pred_region
      %s62 = ssub.s32 3072, 3072
      %63 = vsyncadd [#allocation10], %s62
      %s64 = sshll.u32 [#allocation9], 4
      %s65 = int_to_ptr.vmem [resolvable:$true] %s64
      %70 = dma.hbm_to_vmem [thread:$0]  %s6, 3072, %s65, [#allocation10], 192, 192, 12
    $region29: #{emotion_gru_forward.1} parent=1 // pred_fallthru
      _
    // Predicated region
    $region30: #{emotion_gru_forward.1} parent=1 // pred_check
      _
    $region31: #{emotion_gru_forward.1} parent=1 // pred_check_branch
      %72 = sbr.rel (0) target = $region33
    $region32: #{emotion_gru_forward.1} parent=1 // pred_region
      _
    $region33: #{emotion_gru_forward.1} parent=1 // pred_fallthru
      _
    // Predicated region
    $region34: #{emotion_gru_forward.1} parent=1 // pred_check
      _
    $region35: #{emotion_gru_forward.1} parent=1 // pred_check_branch
      %74 = sbr.rel (0) target = $region37
    $region36: #{emotion_gru_forward.1} parent=1 // pred_region
      %s76 = ssub.s32 16, 16
      %77 = vsyncadd [#allocation10], %s76
      %s79 = sshll.u32 [#allocation11], 4
      %s80 = int_to_ptr.vmem [resolvable:$true] %s79
      %82 = dma.hbm_to_vmem [thread:$0]  %s8, 16, %s80, [#allocation10]
    $region37: #{emotion_gru_forward.1} parent=1 // pred_fallthru
      _
    // Predicated region
    $region38: #{emotion_gru_forward.1} parent=1 // pred_check
      _
    $region39: #{emotion_gru_forward.1} parent=1 // pred_check_branch
      %84 = sbr.rel (0) target = $region41
    $region40: #{emotion_gru_forward.1} parent=1 // pred_region
      _
    $region41: #{emotion_gru_forward.1} parent=1 // pred_fallthru
      _
    // Predicated region
    $region42: #{emotion_gru_forward.1} parent=1 // pred_check
      _
    $region43: #{emotion_gru_forward.1} parent=1 // pred_check_branch
      %86 = sbr.rel (0) target = $region45
    $region44: #{emotion_gru_forward.1} parent=1 // pred_region
      _
    $region45: #{emotion_gru_forward.1} parent=1 // pred_fallthru
      _
    // Predicated region
    $region46: #{emotion_gru_forward.1} parent=1 // pred_check
      _
    $region47: #{emotion_gru_forward.1} parent=1 // pred_check_branch
      %88 = sbr.rel (0) target = $region49
    $region48: #{emotion_gru_forward.1} parent=1 // pred_region
      %89 = dma.done [#allocation5], 768
    $region49: #{emotion_gru_forward.1} parent=1 // pred_fallthru
      _
    // Predicated region
    $region50: #{emotion_gru_forward.1} parent=1 // pred_check
      _
    $region51: #{emotion_gru_forward.1} parent=1 // pred_check_branch
      %91 = sbr.rel (0) target = $region53
    $region52: #{emotion_gru_forward.1} parent=1 // pred_region
      %92 = dma.done [#allocation7], 16
    $region53: #{emotion_gru_forward.1} parent=1 // pred_fallthru
      _
    // Predicated region
    $region54: #{emotion_gru_forward.1} parent=1 // pred_check
      _
    $region55: #{emotion_gru_forward.1} parent=1 // pred_check_branch
      %94 = sbr.rel (0) target = $region57
    $region56: #{emotion_gru_forward.1} parent=1 // pred_region
      %95 = dma.done [#allocation7], 3072
    $region57: #{emotion_gru_forward.1} parent=1 // pred_fallthru
      _
    // Predicated region
    $region58: #{emotion_gru_forward.1} parent=1 // pred_check
      _
    $region59: #{emotion_gru_forward.1} parent=1 // pred_check_branch
      %97 = sbr.rel (0) target = $region61
    $region60: #{emotion_gru_forward.1} parent=1 // pred_region
      %98 = dma.done [#allocation10], 3072
    $region61: #{emotion_gru_forward.1} parent=1 // pred_fallthru
      _
    // Predicated region
    $region62: #{emotion_gru_forward.1} parent=1 // pred_check
      _
    $region63: #{emotion_gru_forward.1} parent=1 // pred_check_branch
      %100 = sbr.rel (0) target = $region65
    $region64: #{emotion_gru_forward.1} parent=1 // pred_region
      %101 = dma.done [#allocation10], 16
    $region65: #{emotion_gru_forward.1} parent=1 // pred_fallthru
      _
    %v103 = vld [vmem:[#allocation4] sm:$0xff]
    %v104 = vld [vmem:[#allocation4 + $0x8] sm:$0xf]
    %v105 = vld [vmem:[#allocation4 + $0xc] sm:$0xff]
    %v106 = vld [vmem:[#allocation4 + $0x14] sm:$0xf]
    %v107 = vld [vmem:[#allocation4 + $0x18] sm:$0xff]
    %v108 = vld [vmem:[#allocation4 + $0x20] sm:$0xf]
    %v109 = vld [vmem:[#allocation4 + $0x24] sm:$0xff]
    %v110 = vld [vmem:[#allocation4 + $0x2c] sm:$0xf]
    %v111 = vld [vmem:[%s3] sm:$0x7]
    %v112 = vld [vmem:[%s0] sm:$0xf]
    %v114 = vlaneseq
    %v115 = vshrl.u32 %v114, 7
    %v116 = vsub.s32 0, %v115
    %v117 = vrot.slane %v111, %v116
    %v118 = vlaneseq
    %v119 = vshrl.u32 %v118, 7
    %v120 = vsub.s32 1, %v119
    %v121 = vrot.slane %v111, %v120
    %v122 = vlaneseq
    %v123 = vshrl.u32 %v122, 7
    %v124 = vsub.s32 2, %v123
    %v125 = vrot.slane %v111, %v124
    %v137 = vunpack.c.l.b16 %v103
    %v138 = vunpack.c.h.b16 %v103
    %v139 = vunpack.c.l.b16 %v104
    %v140 = vunpack.c.l.b16 %v105
    %v141 = vunpack.c.h.b16 %v105
    %v142 = vunpack.c.l.b16 %v106
    %v143 = vunpack.c.l.b16 %v107
    %v144 = vunpack.c.h.b16 %v107
    %v145 = vunpack.c.l.b16 %v108
    %v146 = vunpack.c.l.b16 %v109
    %v147 = vunpack.c.h.b16 %v109
    %v148 = vunpack.c.l.b16 %v110
    %v149 = vpack.c.b16 %v140, %v137
    %v150 = vpack.c.b16 %v141, %v138
    %v151 = vpack.c.b16 %v142, %v139
    %v152 = vpack.c.b16 %v146, %v143
    %v153 = vpack.c.b16 %v147, %v144
    %v154 = vpack.c.b16 %v148, %v145
    %vm161 = vcmask 261120
    %v163 = vsel %vm161, %v112, 0
    %165 = vmatprep.subr.bf16.mxu0 %v150
    %166 = vmatpush1.bf16.msra.mxu0 %v149
    %167 = vmatprep.subr.bf16.mxu0 %v153
    %168 = vmatpush1.bf16.msra.mxu0 %v152
    %169 = vmatprep.subr.bf16.mxu0 0
    %170 = vmatpush1.bf16.msra.mxu0 0
    %171 = vmatprep.subr.bf16.mxu0 0
    %172 = vmatpush1.bf16.msra.mxu0 0
    %173 = vmatprep.subr.bf16.mxu0 0
    %174 = vmatpush1.bf16.msra.mxu0 0
    %175 = vmatprep.subr.bf16.mxu0 0
    %176 = vmatpush1.bf16.msra.mxu0 0
    %177 = vmatprep.subr.bf16.mxu0 0
    %178 = vmatpush1.bf16.msra.mxu0 0
    %179 = vmatprep.subr.bf16.mxu0 0
    %180 = vmatpush1.bf16.msra.mxu0 0
    %181 = vmatprep.subr.bf16.mxu0 0
    %182 = vmatpush1.bf16.msra.mxu0 0
    %183 = vmatprep.subr.bf16.mxu0 0
    %184 = vmatpush1.bf16.msra.mxu0 0
    %185 = vmatprep.subr.bf16.mxu0 0
    %186 = vmatpush1.bf16.msra.mxu0 0
    %187 = vmatprep.subr.bf16.mxu0 0
    %188 = vmatpush1.bf16.msra.mxu0 0
    %189 = vmatprep.subr.bf16.mxu0 0
    %190 = vmatpush1.bf16.msra.mxu0 0
    %191 = vmatprep.subr.bf16.mxu0 0
    %192 = vmatpush1.bf16.msra.mxu0 0
    %193 = vmatprep.subr.bf16.mxu0 0
    %194 = vmatpush1.bf16.msra.mxu0 0
    %195 = vmatprep.subr.bf16.mxu0 0
    %196 = vmatpush1.bf16.msra.mxu0 0
    %197 = vmatprep.mubr.bf16.mxu0 0
    %198 = vmatmul.mubr.bf16.gmra.mrb[0].mxu0 %v163
    %v199 = vpop.f32.mrb[0].mxu0
    %v200 = vadd.f32 %v117, %v199
    %v201 = vpop.f32.mrb[0].mxu0
    %v202 = vadd.f32 %v121, %v201
    %v203 = vpop.f32.mrb[0].mxu0
    %v204 = vpop.f32.mrb[0].mxu0
    %205 = vdwg.mxu0
    %206 = vmatprep.subr.bf16.mxu0 0
    %207 = vmatpush1.bf16.msra.mxu0 %v151
    %208 = vmatprep.subr.bf16.mxu0 0
    %209 = vmatpush1.bf16.msra.mxu0 %v154
    %210 = vmatprep.subr.bf16.mxu0 0
    %211 = vmatpush1.bf16.msra.mxu0 0
    %212 = vmatprep.subr.bf16.mxu0 0
    %213 = vmatpush1.bf16.msra.mxu0 0
    %214 = vmatprep.subr.bf16.mxu0 0
    %215 = vmatpush1.bf16.msra.mxu0 0
    %216 = vmatprep.subr.bf16.mxu0 0
    %217 = vmatpush1.bf16.msra.mxu0 0
    %218 = vmatprep.subr.bf16.mxu0 0
    %219 = vmatpush1.bf16.msra.mxu0 0
    %220 = vmatprep.subr.bf16.mxu0 0
    %221 = vmatpush1.bf16.msra.mxu0 0
    %222 = vmatprep.subr.bf16.mxu0 0
    %223 = vmatpush1.bf16.msra.mxu0 0
    %224 = vmatprep.subr.bf16.mxu0 0
    %225 = vmatpush1.bf16.msra.mxu0 0
    %226 = vmatprep.subr.bf16.mxu0 0
    %227 = vmatpush1.bf16.msra.mxu0 0
    %228 = vmatprep.subr.bf16.mxu0 0
    %229 = vmatpush1.bf16.msra.mxu0 0
    %230 = vmatprep.subr.bf16.mxu0 0
    %231 = vmatpush1.bf16.msra.mxu0 0
    %232 = vmatprep.subr.bf16.mxu0 0
    %233 = vmatpush1.bf16.msra.mxu0 0
    %234 = vmatprep.subr.bf16.mxu0 0
    %235 = vmatpush1.bf16.msra.mxu0 0
    %236 = vmatprep.subr.bf16.mxu0 0
    %237 = vmatpush1.bf16.msra.mxu0 0
    %238 = vmatprep.mubr.bf16.mxu0 0
    %239 = vmatmul.mubr.bf16.gmra.mrb[0].mxu0 %v163
    %v240 = vpop.f32.mrb[0].mxu0
    %v241 = vadd.f32 %v125, %v240
    %v242 = vpop.f32.mrb[0].mxu0
    %v243 = vpop.f32.mrb[0].mxu0
    %v244 = vpop.f32.mrb[0].mxu0
    %245 = vdwg.mxu0
    %v246 = vpack.c.bf16 %v200, %v200
    %v247 = vpack.c.bf16 %v202, %v202
    %v248 = vpack.c.bf16 %v241, %v241
    %v252 = vunpack.c.l.b16 %v246
    %v253 = vunpack.c.l.b16 %v247
    %v254 = vunpack.c.l.b16 %v248
    %v255 = vpack.c.b16 %v253, %v252
    %v256 = vpack.c.b16 %v254, %v254
    %259 = vst [vmem:[#allocation2] sm:$0xff] %v255
    %260 = vst [vmem:[#allocation2 + $0x8] sm:$0xf] %v256
    %s261 = scalar_lea.vmem %s0, 4
    %v262 = vld [vmem:[%s261] sm:$0xf]
    %v264 = vsel %vm161, %v262, 0
    %266 = vmatprep.subr.bf16.mxu0 %v150
    %267 = vmatpush1.bf16.msra.mxu0 %v149
    %268 = vmatprep.subr.bf16.mxu0 %v153
    %269 = vmatpush1.bf16.msra.mxu0 %v152
    %270 = vmatprep.subr.bf16.mxu0 0
    %271 = vmatpush1.bf16.msra.mxu0 0
    %272 = vmatprep.subr.bf16.mxu0 0
    %273 = vmatpush1.bf16.msra.mxu0 0
    %274 = vmatprep.subr.bf16.mxu0 0
    %275 = vmatpush1.bf16.msra.mxu0 0
    %276 = vmatprep.subr.bf16.mxu0 0
    %277 = vmatpush1.bf16.msra.mxu0 0
    %278 = vmatprep.subr.bf16.mxu0 0
    %279 = vmatpush1.bf16.msra.mxu0 0
    %280 = vmatprep.subr.bf16.mxu0 0
    %281 = vmatpush1.bf16.msra.mxu0 0
    %282 = vmatprep.subr.bf16.mxu0 0
    %283 = vmatpush1.bf16.msra.mxu0 0
    %284 = vmatprep.subr.bf16.mxu0 0
    %285 = vmatpush1.bf16.msra.mxu0 0
    %286 = vmatprep.subr.bf16.mxu0 0
    %287 = vmatpush1.bf16.msra.mxu0 0
    %288 = vmatprep.subr.bf16.mxu0 0
    %289 = vmatpush1.bf16.msra.mxu0 0
    %290 = vmatprep.subr.bf16.mxu0 0
    %291 = vmatpush1.bf16.msra.mxu0 0
    %292 = vmatprep.subr.bf16.mxu0 0
    %293 = vmatpush1.bf16.msra.mxu0 0
    %294 = vmatprep.subr.bf16.mxu0 0
    %295 = vmatpush1.bf16.msra.mxu0 0
    %296 = vmatprep.subr.bf16.mxu0 0
    %297 = vmatpush1.bf16.msra.mxu0 0
    %298 = vmatprep.mubr.bf16.mxu0 0
    %299 = vmatmul.mubr.bf16.gmra.mrb[0].mxu0 %v264
    %v300 = vpop.f32.mrb[0].mxu0
    %v301 = vadd.f32 %v117, %v300
    %v302 = vpop.f32.mrb[0].mxu0
    %v303 = vadd.f32 %v121, %v302
    %v304 = vpop.f32.mrb[0].mxu0
    %v305 = vpop.f32.mrb[0].mxu0
    %306 = vdwg.mxu0
    %307 = vmatprep.subr.bf16.mxu0 0
    %308 = vmatpush1.bf16.msra.mxu0 %v151
    %309 = vmatprep.subr.bf16.mxu0 0
    %310 = vmatpush1.bf16.msra.mxu0 %v154
    %311 = vmatprep.subr.bf16.mxu0 0
    %312 = vmatpush1.bf16.msra.mxu0 0
    %313 = vmatprep.subr.bf16.mxu0 0
    %314 = vmatpush1.bf16.msra.mxu0 0
    %315 = vmatprep.subr.bf16.mxu0 0
    %316 = vmatpush1.bf16.msra.mxu0 0
    %317 = vmatprep.subr.bf16.mxu0 0
    %318 = vmatpush1.bf16.msra.mxu0 0
    %319 = vmatprep.subr.bf16.mxu0 0
    %320 = vmatpush1.bf16.msra.mxu0 0
    %321 = vmatprep.subr.bf16.mxu0 0
    %322 = vmatpush1.bf16.msra.mxu0 0
    %323 = vmatprep.subr.bf16.mxu0 0
    %324 = vmatpush1.bf16.msra.mxu0 0
    %325 = vmatprep.subr.bf16.mxu0 0
    %326 = vmatpush1.bf16.msra.mxu0 0
    %327 = vmatprep.subr.bf16.mxu0 0
    %328 = vmatpush1.bf16.msra.mxu0 0
    %329 = vmatprep.subr.bf16.mxu0 0
    %330 = vmatpush1.bf16.msra.mxu0 0
    %331 = vmatprep.subr.bf16.mxu0 0
    %332 = vmatpush1.bf16.msra.mxu0 0
    %333 = vmatprep.subr.bf16.mxu0 0
    %334 = vmatpush1.bf16.msra.mxu0 0
    %335 = vmatprep.subr.bf16.mxu0 0
    %336 = vmatpush1.bf16.msra.mxu0 0
    %337 = vmatprep.subr.bf16.mxu0 0
    %338 = vmatpush1.bf16.msra.mxu0 0
    %339 = vmatprep.mubr.bf16.mxu0 0
    %340 = vmatmul.mubr.bf16.gmra.mrb[0].mxu0 %v264
    %v341 = vpop.f32.mrb[0].mxu0
    %v342 = vadd.f32 %v125, %v341
    %v343 = vpop.f32.mrb[0].mxu0
    %v344 = vpop.f32.mrb[0].mxu0
    %v345 = vpop.f32.mrb[0].mxu0
    %346 = vdwg.mxu0
    %v347 = vpack.c.bf16 %v301, %v301
    %v348 = vpack.c.bf16 %v303, %v303
    %v349 = vpack.c.bf16 %v342, %v342
    %v353 = vunpack.c.l.b16 %v347
    %v354 = vunpack.c.l.b16 %v348
    %v355 = vunpack.c.l.b16 %v349
    %v356 = vpack.c.b16 %v354, %v353
    %v357 = vpack.c.b16 %v355, %v355
    %s360 = scalar_lea.vmem [#allocation2], 12
    %361 = vst [vmem:[%s360] sm:$0xff] %v356
    %362 = vst [vmem:[%s360 + $0x8] sm:$0xf] %v357
    %s363 = scalar_lea.vmem %s0, 8
    %v364 = vld [vmem:[%s363] sm:$0xf]
    %v366 = vsel %vm161, %v364, 0
    %368 = vmatprep.subr.bf16.mxu0 %v150
    %369 = vmatpush1.bf16.msra.mxu0 %v149
    %370 = vmatprep.subr.bf16.mxu0 %v153
    %371 = vmatpush1.bf16.msra.mxu0 %v152
    %372 = vmatprep.subr.bf16.mxu0 0
    %373 = vmatpush1.bf16.msra.mxu0 0
    %374 = vmatprep.subr.bf16.mxu0 0
    %375 = vmatpush1.bf16.msra.mxu0 0
    %376 = vmatprep.subr.bf16.mxu0 0
    %377 = vmatpush1.bf16.msra.mxu0 0
    %378 = vmatprep.subr.bf16.mxu0 0
    %379 = vmatpush1.bf16.msra.mxu0 0
    %380 = vmatprep.subr.bf16.mxu0 0
    %381 = vmatpush1.bf16.msra.mxu0 0
    %382 = vmatprep.subr.bf16.mxu0 0
    %383 = vmatpush1.bf16.msra.mxu0 0
    %384 = vmatprep.subr.bf16.mxu0 0
    %385 = vmatpush1.bf16.msra.mxu0 0
    %386 = vmatprep.subr.bf16.mxu0 0
    %387 = vmatpush1.bf16.msra.mxu0 0
    %388 = vmatprep.subr.bf16.mxu0 0
    %389 = vmatpush1.bf16.msra.mxu0 0
    %390 = vmatprep.subr.bf16.mxu0 0
    %391 = vmatpush1.bf16.msra.mxu0 0
    %392 = vmatprep.subr.bf16.mxu0 0
    %393 = vmatpush1.bf16.msra.mxu0 0
    %394 = vmatprep.subr.bf16.mxu0 0
    %395 = vmatpush1.bf16.msra.mxu0 0
    %396 = vmatprep.subr.bf16.mxu0 0
    %397 = vmatpush1.bf16.msra.mxu0 0
    %398 = vmatprep.subr.bf16.mxu0 0
    %399 = vmatpush1.bf16.msra.mxu0 0
    %400 = vmatprep.mubr.bf16.mxu0 0
    %401 = vmatmul.mubr.bf16.gmra.mrb[0].mxu0 %v366
    %v402 = vpop.f32.mrb[0].mxu0
    %v403 = vadd.f32 %v117, %v402
    %v404 = vpop.f32.mrb[0].mxu0
    %v405 = vadd.f32 %v121, %v404
    %v406 = vpop.f32.mrb[0].mxu0
    %v407 = vpop.f32.mrb[0].mxu0
    %408 = vdwg.mxu0
    %409 = vmatprep.subr.bf16.mxu0 0
    %410 = vmatpush1.bf16.msra.mxu0 %v151
    %411 = vmatprep.subr.bf16.mxu0 0
    %412 = vmatpush1.bf16.msra.mxu0 %v154
    %413 = vmatprep.subr.bf16.mxu0 0
    %414 = vmatpush1.bf16.msra.mxu0 0
    %415 = vmatprep.subr.bf16.mxu0 0
    %416 = vmatpush1.bf16.msra.mxu0 0
    %417 = vmatprep.subr.bf16.mxu0 0
    %418 = vmatpush1.bf16.msra.mxu0 0
    %419 = vmatprep.subr.bf16.mxu0 0
    %420 = vmatpush1.bf16.msra.mxu0 0
    %421 = vmatprep.subr.bf16.mxu0 0
    %422 = vmatpush1.bf16.msra.mxu0 0
    %423 = vmatprep.subr.bf16.mxu0 0
    %424 = vmatpush1.bf16.msra.mxu0 0
    %425 = vmatprep.subr.bf16.mxu0 0
    %426 = vmatpush1.bf16.msra.mxu0 0
    %427 = vmatprep.subr.bf16.mxu0 0
    %428 = vmatpush1.bf16.msra.mxu0 0
    %429 = vmatprep.subr.bf16.mxu0 0
    %430 = vmatpush1.bf16.msra.mxu0 0
    %431 = vmatprep.subr.bf16.mxu0 0
    %432 = vmatpush1.bf16.msra.mxu0 0
    %433 = vmatprep.subr.bf16.mxu0 0
    %434 = vmatpush1.bf16.msra.mxu0 0
    %435 = vmatprep.subr.bf16.mxu0 0
    %436 = vmatpush1.bf16.msra.mxu0 0
    %437 = vmatprep.subr.bf16.mxu0 0
    %438 = vmatpush1.bf16.msra.mxu0 0
    %439 = vmatprep.subr.bf16.mxu0 0
    %440 = vmatpush1.bf16.msra.mxu0 0
    %441 = vmatprep.mubr.bf16.mxu0 0
    %442 = vmatmul.mubr.bf16.gmra.mrb[0].mxu0 %v366
    %v443 = vpop.f32.mrb[0].mxu0
    %v444 = vadd.f32 %v125, %v443
    %v445 = vpop.f32.mrb[0].mxu0
    %v446 = vpop.f32.mrb[0].mxu0
    %v447 = vpop.f32.mrb[0].mxu0
    %448 = vdwg.mxu0
    %v449 = vpack.c.bf16 %v403, %v403
    %v450 = vpack.c.bf16 %v405, %v405
    %v451 = vpack.c.bf16 %v444, %v444
    %v455 = vunpack.c.l.b16 %v449
    %v456 = vunpack.c.l.b16 %v450
    %v457 = vunpack.c.l.b16 %v451
    %v458 = vpack.c.b16 %v456, %v455
    %v459 = vpack.c.b16 %v457, %v457
    %s462 = scalar_lea.vmem [#allocation2], 24
    %463 = vst [vmem:[%s462] sm:$0xff] %v458
    %464 = vst [vmem:[%s462 + $0x8] sm:$0xf] %v459
    %s465 = scalar_lea.vmem %s0, 12
    %v466 = vld [vmem:[%s465] sm:$0xf]
    %v468 = vsel %vm161, %v466, 0
    %470 = vmatprep.subr.bf16.mxu0 %v150
    %471 = vmatpush1.bf16.msra.mxu0 %v149
    %472 = vmatprep.subr.bf16.mxu0 %v153
    %473 = vmatpush1.bf16.msra.mxu0 %v152
    %474 = vmatprep.subr.bf16.mxu0 0
    %475 = vmatpush1.bf16.msra.mxu0 0
    %476 = vmatprep.subr.bf16.mxu0 0
    %477 = vmatpush1.bf16.msra.mxu0 0
    %478 = vmatprep.subr.bf16.mxu0 0
    %479 = vmatpush1.bf16.msra.mxu0 0
    %480 = vmatprep.subr.bf16.mxu0 0
    %481 = vmatpush1.bf16.msra.mxu0 0
    %482 = vmatprep.subr.bf16.mxu0 0
    %483 = vmatpush1.bf16.msra.mxu0 0
    %484 = vmatprep.subr.bf16.mxu0 0
    %485 = vmatpush1.bf16.msra.mxu0 0
    %486 = vmatprep.subr.bf16.mxu0 0
    %487 = vmatpush1.bf16.msra.mxu0 0
    %488 = vmatprep.subr.bf16.mxu0 0
    %489 = vmatpush1.bf16.msra.mxu0 0
    %490 = vmatprep.subr.bf16.mxu0 0
    %491 = vmatpush1.bf16.msra.mxu0 0
    %492 = vmatprep.subr.bf16.mxu0 0
    %493 = vmatpush1.bf16.msra.mxu0 0
    %494 = vmatprep.subr.bf16.mxu0 0
    %495 = vmatpush1.bf16.msra.mxu0 0
    %496 = vmatprep.subr.bf16.mxu0 0
    %497 = vmatpush1.bf16.msra.mxu0 0
    %498 = vmatprep.subr.bf16.mxu0 0
    %499 = vmatpush1.bf16.msra.mxu0 0
    %500 = vmatprep.subr.bf16.mxu0 0
    %501 = vmatpush1.bf16.msra.mxu0 0
    %502 = vmatprep.mubr.bf16.mxu0 0
    %503 = vmatmul.mubr.bf16.gmra.mrb[0].mxu0 %v468
    %v504 = vpop.f32.mrb[0].mxu0
    %v505 = vadd.f32 %v117, %v504
    %v506 = vpop.f32.mrb[0].mxu0
    %v507 = vadd.f32 %v121, %v506
    %v508 = vpop.f32.mrb[0].mxu0
    %v509 = vpop.f32.mrb[0].mxu0
    %510 = vdwg.mxu0
    %511 = vmatprep.subr.bf16.mxu0 0
    %512 = vmatpush1.bf16.msra.mxu0 %v151
    %513 = vmatprep.subr.bf16.mxu0 0
    %514 = vmatpush1.bf16.msra.mxu0 %v154
    %515 = vmatprep.subr.bf16.mxu0 0
    %516 = vmatpush1.bf16.msra.mxu0 0
    %517 = vmatprep.subr.bf16.mxu0 0
    %518 = vmatpush1.bf16.msra.mxu0 0
    %519 = vmatprep.subr.bf16.mxu0 0
    %520 = vmatpush1.bf16.msra.mxu0 0
    %521 = vmatprep.subr.bf16.mxu0 0
    %522 = vmatpush1.bf16.msra.mxu0 0
    %523 = vmatprep.subr.bf16.mxu0 0
    %524 = vmatpush1.bf16.msra.mxu0 0
    %525 = vmatprep.subr.bf16.mxu0 0
    %526 = vmatpush1.bf16.msra.mxu0 0
    %527 = vmatprep.subr.bf16.mxu0 0
    %528 = vmatpush1.bf16.msra.mxu0 0
    %529 = vmatprep.subr.bf16.mxu0 0
    %530 = vmatpush1.bf16.msra.mxu0 0
    %531 = vmatprep.subr.bf16.mxu0 0
    %532 = vmatpush1.bf16.msra.mxu0 0
    %533 = vmatprep.subr.bf16.mxu0 0
    %534 = vmatpush1.bf16.msra.mxu0 0
    %535 = vmatprep.subr.bf16.mxu0 0
    %536 = vmatpush1.bf16.msra.mxu0 0
    %537 = vmatprep.subr.bf16.mxu0 0
    %538 = vmatpush1.bf16.msra.mxu0 0
    %539 = vmatprep.subr.bf16.mxu0 0
    %540 = vmatpush1.bf16.msra.mxu0 0
    %541 = vmatprep.subr.bf16.mxu0 0
    %542 = vmatpush1.bf16.msra.mxu0 0
    %543 = vmatprep.mubr.bf16.mxu0 0
    %544 = vmatmul.mubr.bf16.gmra.mrb[0].mxu0 %v468
    %v545 = vpop.f32.mrb[0].mxu0
    %v546 = vadd.f32 %v125, %v545
    %v547 = vpop.f32.mrb[0].mxu0
    %v548 = vpop.f32.mrb[0].mxu0
    %v549 = vpop.f32.mrb[0].mxu0
    %550 = vdwg.mxu0
    %v551 = vpack.c.bf16 %v505, %v505
    %v552 = vpack.c.bf16 %v507, %v507
    %v553 = vpack.c.bf16 %v546, %v546
    %v557 = vunpack.c.l.b16 %v551
    %v558 = vunpack.c.l.b16 %v552
    %v559 = vunpack.c.l.b16 %v553
    %v560 = vpack.c.b16 %v558, %v557
    %v561 = vpack.c.b16 %v559, %v559
    %s564 = scalar_lea.vmem [#allocation2], 36
    %565 = vst [vmem:[%s564] sm:$0xff] %v560
    %566 = vst [vmem:[%s564 + $0x8] sm:$0xf] %v561
    %s567 = scalar_lea.vmem %s0, 16
    %v568 = vld [vmem:[%s567] sm:$0xf]
    %v570 = vsel %vm161, %v568, 0
    %572 = vmatprep.subr.bf16.mxu0 %v150
    %573 = vmatpush1.bf16.msra.mxu0 %v149
    %574 = vmatprep.subr.bf16.mxu0 %v153
    %575 = vmatpush1.bf16.msra.mxu0 %v152
    %576 = vmatprep.subr.bf16.mxu0 0
    %577 = vmatpush1.bf16.msra.mxu0 0
    %578 = vmatprep.subr.bf16.mxu0 0
    %579 = vmatpush1.bf16.msra.mxu0 0
    %580 = vmatprep.subr.bf16.mxu0 0
    %581 = vmatpush1.bf16.msra.mxu0 0
    %582 = vmatprep.subr.bf16.mxu0 0
    %583 = vmatpush1.bf16.msra.mxu0 0
    %584 = vmatprep.subr.bf16.mxu0 0
    %585 = vmatpush1.bf16.msra.mxu0 0
    %586 = vmatprep.subr.bf16.mxu0 0
    %587 = vmatpush1.bf16.msra.mxu0 0
    %588 = vmatprep.subr.bf16.mxu0 0
    %589 = vmatpush1.bf16.msra.mxu0 0
    %590 = vmatprep.subr.bf16.mxu0 0
    %591 = vmatpush1.bf16.msra.mxu0 0
    %592 = vmatprep.subr.bf16.mxu0 0
    %593 = vmatpush1.bf16.msra.mxu0 0
    %594 = vmatprep.subr.bf16.mxu0 0
    %595 = vmatpush1.bf16.msra.mxu0 0
    %596 = vmatprep.subr.bf16.mxu0 0
    %597 = vmatpush1.bf16.msra.mxu0 0
    %598 = vmatprep.subr.bf16.mxu0 0
    %599 = vmatpush1.bf16.msra.mxu0 0
    %600 = vmatprep.subr.bf16.mxu0 0
    %601 = vmatpush1.bf16.msra.mxu0 0
    %602 = vmatprep.subr.bf16.mxu0 0
    %603 = vmatpush1.bf16.msra.mxu0 0
    %604 = vmatprep.mubr.bf16.mxu0 0
    %605 = vmatmul.mubr.bf16.gmra.mrb[0].mxu0 %v570
    %v606 = vpop.f32.mrb[0].mxu0
    %v607 = vadd.f32 %v117, %v606
    %v608 = vpop.f32.mrb[0].mxu0
    %v609 = vadd.f32 %v121, %v608
    %v610 = vpop.f32.mrb[0].mxu0
    %v611 = vpop.f32.mrb[0].mxu0
    %612 = vdwg.mxu0
    %613 = vmatprep.subr.bf16.mxu0 0
    %614 = vmatpush1.bf16.msra.mxu0 %v151
    %615 = vmatprep.subr.bf16.mxu0 0
    %616 = vmatpush1.bf16.msra.mxu0 %v154
    %617 = vmatprep.subr.bf16.mxu0 0
    %618 = vmatpush1.bf16.msra.mxu0 0
    %619 = vmatprep.subr.bf16.mxu0 0
    %620 = vmatpush1.bf16.msra.mxu0 0
    %621 = vmatprep.subr.bf16.mxu0 0
    %622 = vmatpush1.bf16.msra.mxu0 0
    %623 = vmatprep.subr.bf16.mxu0 0
    %624 = vmatpush1.bf16.msra.mxu0 0
    %625 = vmatprep.subr.bf16.mxu0 0
    %626 = vmatpush1.bf16.msra.mxu0 0
    %627 = vmatprep.subr.bf16.mxu0 0
    %628 = vmatpush1.bf16.msra.mxu0 0
    %629 = vmatprep.subr.bf16.mxu0 0
    %630 = vmatpush1.bf16.msra.mxu0 0
    %631 = vmatprep.subr.bf16.mxu0 0
    %632 = vmatpush1.bf16.msra.mxu0 0
    %633 = vmatprep.subr.bf16.mxu0 0
    %634 = vmatpush1.bf16.msra.mxu0 0
    %635 = vmatprep.subr.bf16.mxu0 0
    %636 = vmatpush1.bf16.msra.mxu0 0
    %637 = vmatprep.subr.bf16.mxu0 0
    %638 = vmatpush1.bf16.msra.mxu0 0
    %639 = vmatprep.subr.bf16.mxu0 0
    %640 = vmatpush1.bf16.msra.mxu0 0
    %641 = vmatprep.subr.bf16.mxu0 0
    %642 = vmatpush1.bf16.msra.mxu0 0
    %643 = vmatprep.subr.bf16.mxu0 0
    %644 = vmatpush1.bf16.msra.mxu0 0
    %645 = vmatprep.mubr.bf16.mxu0 0
    %646 = vmatmul.mubr.bf16.gmra.mrb[0].mxu0 %v570
    %v647 = vpop.f32.mrb[0].mxu0
    %v648 = vadd.f32 %v125, %v647
    %v649 = vpop.f32.mrb[0].mxu0
    %v650 = vpop.f32.mrb[0].mxu0
    %v651 = vpop.f32.mrb[0].mxu0
    %652 = vdwg.mxu0
    %v653 = vpack.c.bf16 %v607, %v607
    %v654 = vpack.c.bf16 %v609, %v609
    %v655 = vpack.c.bf16 %v648, %v648
    %v659 = vunpack.c.l.b16 %v653
    %v660 = vunpack.c.l.b16 %v654
    %v661 = vunpack.c.l.b16 %v655
    %v662 = vpack.c.b16 %v660, %v659
    %v663 = vpack.c.b16 %v661, %v661
    %s666 = scalar_lea.vmem [#allocation2], 48
    %667 = vst [vmem:[%s666] sm:$0xff] %v662
    %668 = vst [vmem:[%s666 + $0x8] sm:$0xf] %v663
    %s669 = scalar_lea.vmem %s0, 20
    %v670 = vld [vmem:[%s669] sm:$0xf]
    %v672 = vsel %vm161, %v670, 0
    %674 = vmatprep.subr.bf16.mxu0 %v150
    %675 = vmatpush1.bf16.msra.mxu0 %v149
    %676 = vmatprep.subr.bf16.mxu0 %v153
    %677 = vmatpush1.bf16.msra.mxu0 %v152
    %678 = vmatprep.subr.bf16.mxu0 0
    %679 = vmatpush1.bf16.msra.mxu0 0
    %680 = vmatprep.subr.bf16.mxu0 0
    %681 = vmatpush1.bf16.msra.mxu0 0
    %682 = vmatprep.subr.bf16.mxu0 0
    %683 = vmatpush1.bf16.msra.mxu0 0
    %684 = vmatprep.subr.bf16.mxu0 0
    %685 = vmatpush1.bf16.msra.mxu0 0
    %686 = vmatprep.subr.bf16.mxu0 0
    %687 = vmatpush1.bf16.msra.mxu0 0
    %688 = vmatprep.subr.bf16.mxu0 0
    %689 = vmatpush1.bf16.msra.mxu0 0
    %690 = vmatprep.subr.bf16.mxu0 0
    %691 = vmatpush1.bf16.msra.mxu0 0
    %692 = vmatprep.subr.bf16.mxu0 0
    %693 = vmatpush1.bf16.msra.mxu0 0
    %694 = vmatprep.subr.bf16.mxu0 0
    %695 = vmatpush1.bf16.msra.mxu0 0
    %696 = vmatprep.subr.bf16.mxu0 0
    %697 = vmatpush1.bf16.msra.mxu0 0
    %698 = vmatprep.subr.bf16.mxu0 0
    %699 = vmatpush1.bf16.msra.mxu0 0
    %700 = vmatprep.subr.bf16.mxu0 0
    %701 = vmatpush1.bf16.msra.mxu0 0
    %702 = vmatprep.subr.bf16.mxu0 0
    %703 = vmatpush1.bf16.msra.mxu0 0
    %704 = vmatprep.subr.bf16.mxu0 0
    %705 = vmatpush1.bf16.msra.mxu0 0
    %706 = vmatprep.mubr.bf16.mxu0 0
    %707 = vmatmul.mubr.bf16.gmra.mrb[0].mxu0 %v672
    %v708 = vpop.f32.mrb[0].mxu0
    %v709 = vadd.f32 %v117, %v708
    %v710 = vpop.f32.mrb[0].mxu0
    %v711 = vadd.f32 %v121, %v710
    %v712 = vpop.f32.mrb[0].mxu0
    %v713 = vpop.f32.mrb[0].mxu0
    %714 = vdwg.mxu0
    %715 = vmatprep.subr.bf16.mxu0 0
    %716 = vmatpush1.bf16.msra.mxu0 %v151
    %717 = vmatprep.subr.bf16.mxu0 0
    %718 = vmatpush1.bf16.msra.mxu0 %v154
    %719 = vmatprep.subr.bf16.mxu0 0
    %720 = vmatpush1.bf16.msra.mxu0 0
    %721 = vmatprep.subr.bf16.mxu0 0
    %722 = vmatpush1.bf16.msra.mxu0 0
    %723 = vmatprep.subr.bf16.mxu0 0
    %724 = vmatpush1.bf16.msra.mxu0 0
    %725 = vmatprep.subr.bf16.mxu0 0
    %726 = vmatpush1.bf16.msra.mxu0 0
    %727 = vmatprep.subr.bf16.mxu0 0
    %728 = vmatpush1.bf16.msra.mxu0 0
    %729 = vmatprep.subr.bf16.mxu0 0
    %730 = vmatpush1.bf16.msra.mxu0 0
    %731 = vmatprep.subr.bf16.mxu0 0
    %732 = vmatpush1.bf16.msra.mxu0 0
    %733 = vmatprep.subr.bf16.mxu0 0
    %734 = vmatpush1.bf16.msra.mxu0 0
    %735 = vmatprep.subr.bf16.mxu0 0
    %736 = vmatpush1.bf16.msra.mxu0 0
    %737 = vmatprep.subr.bf16.mxu0 0
    %738 = vmatpush1.bf16.msra.mxu0 0
    %739 = vmatprep.subr.bf16.mxu0 0
    %740 = vmatpush1.bf16.msra.mxu0 0
    %741 = vmatprep.subr.bf16.mxu0 0
    %742 = vmatpush1.bf16.msra.mxu0 0
    %743 = vmatprep.subr.bf16.mxu0 0
    %744 = vmatpush1.bf16.msra.mxu0 0
    %745 = vmatprep.subr.bf16.mxu0 0
    %746 = vmatpush1.bf16.msra.mxu0 0
    %747 = vmatprep.mubr.bf16.mxu0 0
    %748 = vmatmul.mubr.bf16.gmra.mrb[0].mxu0 %v672
    %v749 = vpop.f32.mrb[0].mxu0
    %v750 = vadd.f32 %v125, %v749
    %v751 = vpop.f32.mrb[0].mxu0
    %v752 = vpop.f32.mrb[0].mxu0
    %v753 = vpop.f32.mrb[0].mxu0
    %754 = vdwg.mxu0
    %v755 = vpack.c.bf16 %v709, %v709
    %v756 = vpack.c.bf16 %v711, %v711
    %v757 = vpack.c.bf16 %v750, %v750
    %v761 = vunpack.c.l.b16 %v755
    %v762 = vunpack.c.l.b16 %v756
    %v763 = vunpack.c.l.b16 %v757
    %v764 = vpack.c.b16 %v762, %v761
    %v765 = vpack.c.b16 %v763, %v763
    %s768 = scalar_lea.vmem [#allocation2], 60
    %769 = vst [vmem:[%s768] sm:$0xff] %v764
    %770 = vst [vmem:[%s768 + $0x8] sm:$0xf] %v765
    %s771 = scalar_lea.vmem %s0, 24
    %v772 = vld [vmem:[%s771] sm:$0xf]
    %v774 = vsel %vm161, %v772, 0
    %776 = vmatprep.subr.bf16.mxu0 %v150
    %777 = vmatpush1.bf16.msra.mxu0 %v149
    %778 = vmatprep.subr.bf16.mxu0 %v153
    %779 = vmatpush1.bf16.msra.mxu0 %v152
    %780 = vmatprep.subr.bf16.mxu0 0
    %781 = vmatpush1.bf16.msra.mxu0 0
    %782 = vmatprep.subr.bf16.mxu0 0
    %783 = vmatpush1.bf16.msra.mxu0 0
    %784 = vmatprep.subr.bf16.mxu0 0
    %785 = vmatpush1.bf16.msra.mxu0 0
    %786 = vmatprep.subr.bf16.mxu0 0
    %787 = vmatpush1.bf16.msra.mxu0 0
    %788 = vmatprep.subr.bf16.mxu0 0
    %789 = vmatpush1.bf16.msra.mxu0 0
    %790 = vmatprep.subr.bf16.mxu0 0
    %791 = vmatpush1.bf16.msra.mxu0 0
    %792 = vmatprep.subr.bf16.mxu0 0
    %793 = vmatpush1.bf16.msra.mxu0 0
    %794 = vmatprep.subr.bf16.mxu0 0
    %795 = vmatpush1.bf16.msra.mxu0 0
    %796 = vmatprep.subr.bf16.mxu0 0
    %797 = vmatpush1.bf16.msra.mxu0 0
    %798 = vmatprep.subr.bf16.mxu0 0
    %799 = vmatpush1.bf16.msra.mxu0 0
    %800 = vmatprep.subr.bf16.mxu0 0
    %801 = vmatpush1.bf16.msra.mxu0 0
    %802 = vmatprep.subr.bf16.mxu0 0
    %803 = vmatpush1.bf16.msra.mxu0 0
    %804 = vmatprep.subr.bf16.mxu0 0
    %805 = vmatpush1.bf16.msra.mxu0 0
    %806 = vmatprep.subr.bf16.mxu0 0
    %807 = vmatpush1.bf16.msra.mxu0 0
    %808 = vmatprep.mubr.bf16.mxu0 0
    %809 = vmatmul.mubr.bf16.gmra.mrb[0].mxu0 %v774
    %v810 = vpop.f32.mrb[0].mxu0
    %v811 = vadd.f32 %v117, %v810
    %v812 = vpop.f32.mrb[0].mxu0
    %v813 = vadd.f32 %v121, %v812
    %v814 = vpop.f32.mrb[0].mxu0
    %v815 = vpop.f32.mrb[0].mxu0
    %816 = vdwg.mxu0
    %817 = vmatprep.subr.bf16.mxu0 0
    %818 = vmatpush1.bf16.msra.mxu0 %v151
    %819 = vmatprep.subr.bf16.mxu0 0
    %820 = vmatpush1.bf16.msra.mxu0 %v154
    %821 = vmatprep.subr.bf16.mxu0 0
    %822 = vmatpush1.bf16.msra.mxu0 0
    %823 = vmatprep.subr.bf16.mxu0 0
    %824 = vmatpush1.bf16.msra.mxu0 0
    %825 = vmatprep.subr.bf16.mxu0 0
    %826 = vmatpush1.bf16.msra.mxu0 0
    %827 = vmatprep.subr.bf16.mxu0 0
    %828 = vmatpush1.bf16.msra.mxu0 0
    %829 = vmatprep.subr.bf16.mxu0 0
    %830 = vmatpush1.bf16.msra.mxu0 0
    %831 = vmatprep.subr.bf16.mxu0 0
    %832 = vmatpush1.bf16.msra.mxu0 0
    %833 = vmatprep.subr.bf16.mxu0 0
    %834 = vmatpush1.bf16.msra.mxu0 0
    %835 = vmatprep.subr.bf16.mxu0 0
    %836 = vmatpush1.bf16.msra.mxu0 0
    %837 = vmatprep.subr.bf16.mxu0 0
    %838 = vmatpush1.bf16.msra.mxu0 0
    %839 = vmatprep.subr.bf16.mxu0 0
    %840 = vmatpush1.bf16.msra.mxu0 0
    %841 = vmatprep.subr.bf16.mxu0 0
    %842 = vmatpush1.bf16.msra.mxu0 0
    %843 = vmatprep.subr.bf16.mxu0 0
    %844 = vmatpush1.bf16.msra.mxu0 0
    %845 = vmatprep.subr.bf16.mxu0 0
    %846 = vmatpush1.bf16.msra.mxu0 0
    %847 = vmatprep.subr.bf16.mxu0 0
    %848 = vmatpush1.bf16.msra.mxu0 0
    %849 = vmatprep.mubr.bf16.mxu0 0
    %850 = vmatmul.mubr.bf16.gmra.mrb[0].mxu0 %v774
    %v851 = vpop.f32.mrb[0].mxu0
    %v852 = vadd.f32 %v125, %v851
    %v853 = vpop.f32.mrb[0].mxu0
    %v854 = vpop.f32.mrb[0].mxu0
    %v855 = vpop.f32.mrb[0].mxu0
    %856 = vdwg.mxu0
    %v857 = vpack.c.bf16 %v811, %v811
    %v858 = vpack.c.bf16 %v813, %v813
    %v859 = vpack.c.bf16 %v852, %v852
    %v863 = vunpack.c.l.b16 %v857
    %v864 = vunpack.c.l.b16 %v858
    %v865 = vunpack.c.l.b16 %v859
    %v866 = vpack.c.b16 %v864, %v863
    %v867 = vpack.c.b16 %v865, %v865
    %s870 = scalar_lea.vmem [#allocation2], 72
    %871 = vst [vmem:[%s870] sm:$0xff] %v866
    %872 = vst [vmem:[%s870 + $0x8] sm:$0xf] %v867
    %s873 = scalar_lea.vmem %s0, 28
    %v874 = vld [vmem:[%s873] sm:$0xf]
    %v876 = vsel %vm161, %v874, 0
    %878 = vmatprep.subr.bf16.mxu0 %v150
    %879 = vmatpush1.bf16.msra.mxu0 %v149
    %880 = vmatprep.subr.bf16.mxu0 %v153
    %881 = vmatpush1.bf16.msra.mxu0 %v152
    %882 = vmatprep.subr.bf16.mxu0 0
    %883 = vmatpush1.bf16.msra.mxu0 0
    %884 = vmatprep.subr.bf16.mxu0 0
    %885 = vmatpush1.bf16.msra.mxu0 0
    %886 = vmatprep.subr.bf16.mxu0 0
    %887 = vmatpush1.bf16.msra.mxu0 0
    %888 = vmatprep.subr.bf16.mxu0 0
    %889 = vmatpush1.bf16.msra.mxu0 0
    %890 = vmatprep.subr.bf16.mxu0 0
    %891 = vmatpush1.bf16.msra.mxu0 0
    %892 = vmatprep.subr.bf16.mxu0 0
    %893 = vmatpush1.bf16.msra.mxu0 0
    %894 = vmatprep.subr.bf16.mxu0 0
    %895 = vmatpush1.bf16.msra.mxu0 0
    %896 = vmatprep.subr.bf16.mxu0 0
    %897 = vmatpush1.bf16.msra.mxu0 0
    %898 = vmatprep.subr.bf16.mxu0 0
    %899 = vmatpush1.bf16.msra.mxu0 0
    %900 = vmatprep.subr.bf16.mxu0 0
    %901 = vmatpush1.bf16.msra.mxu0 0
    %902 = vmatprep.subr.bf16.mxu0 0
    %903 = vmatpush1.bf16.msra.mxu0 0
    %904 = vmatprep.subr.bf16.mxu0 0
    %905 = vmatpush1.bf16.msra.mxu0 0
    %906 = vmatprep.subr.bf16.mxu0 0
    %907 = vmatpush1.bf16.msra.mxu0 0
    %908 = vmatprep.subr.bf16.mxu0 0
    %909 = vmatpush1.bf16.msra.mxu0 0
    %910 = vmatprep.mubr.bf16.mxu0 0
    %911 = vmatmul.mubr.bf16.gmra.mrb[0].mxu0 %v876
    %v912 = vpop.f32.mrb[0].mxu0
    %v913 = vadd.f32 %v117, %v912
    %v914 = vpop.f32.mrb[0].mxu0
    %v915 = vadd.f32 %v121, %v914
    %v916 = vpop.f32.mrb[0].mxu0
    %v917 = vpop.f32.mrb[0].mxu0
    %918 = vdwg.mxu0
    %919 = vmatprep.subr.bf16.mxu0 0
    %920 = vmatpush1.bf16.msra.mxu0 %v151
    %921 = vmatprep.subr.bf16.mxu0 0
    %922 = vmatpush1.bf16.msra.mxu0 %v154
    %923 = vmatprep.subr.bf16.mxu0 0
    %924 = vmatpush1.bf16.msra.mxu0 0
    %925 = vmatprep.subr.bf16.mxu0 0
    %926 = vmatpush1.bf16.msra.mxu0 0
    %927 = vmatprep.subr.bf16.mxu0 0
    %928 = vmatpush1.bf16.msra.mxu0 0
    %929 = vmatprep.subr.bf16.mxu0 0
    %930 = vmatpush1.bf16.msra.mxu0 0
    %931 = vmatprep.subr.bf16.mxu0 0
    %932 = vmatpush1.bf16.msra.mxu0 0
    %933 = vmatprep.subr.bf16.mxu0 0
    %934 = vmatpush1.bf16.msra.mxu0 0
    %935 = vmatprep.subr.bf16.mxu0 0
    %936 = vmatpush1.bf16.msra.mxu0 0
    %937 = vmatprep.subr.bf16.mxu0 0
    %938 = vmatpush1.bf16.msra.mxu0 0
    %939 = vmatprep.subr.bf16.mxu0 0
    %940 = vmatpush1.bf16.msra.mxu0 0
    %941 = vmatprep.subr.bf16.mxu0 0
    %942 = vmatpush1.bf16.msra.mxu0 0
    %943 = vmatprep.subr.bf16.mxu0 0
    %944 = vmatpush1.bf16.msra.mxu0 0
    %945 = vmatprep.subr.bf16.mxu0 0
    %946 = vmatpush1.bf16.msra.mxu0 0
    %947 = vmatprep.subr.bf16.mxu0 0
    %948 = vmatpush1.bf16.msra.mxu0 0
    %949 = vmatprep.subr.bf16.mxu0 0
    %950 = vmatpush1.bf16.msra.mxu0 0
    %951 = vmatprep.mubr.bf16.mxu0 0
    %952 = vmatmul.mubr.bf16.gmra.mrb[0].mxu0 %v876
    %v953 = vpop.f32.mrb[0].mxu0
    %v954 = vadd.f32 %v125, %v953
    %v955 = vpop.f32.mrb[0].mxu0
    %v956 = vpop.f32.mrb[0].mxu0
    %v957 = vpop.f32.mrb[0].mxu0
    %958 = vdwg.mxu0
    %v959 = vpack.c.bf16 %v913, %v913
    %v960 = vpack.c.bf16 %v915, %v915
    %v961 = vpack.c.bf16 %v954, %v954
    %v965 = vunpack.c.l.b16 %v959
    %v966 = vunpack.c.l.b16 %v960
    %v967 = vunpack.c.l.b16 %v961
    %v968 = vpack.c.b16 %v966, %v965
    %v969 = vpack.c.b16 %v967, %v967
    %s972 = scalar_lea.vmem [#allocation2], 84
    %973 = vst [vmem:[%s972] sm:$0xff] %v968
    %974 = vst [vmem:[%s972 + $0x8] sm:$0xf] %v969
    %v975 = vld [vmem:[%s2] sm:$0xff]
    %v976 = vld [vmem:[%s2 + $0x8] sm:$0xf]
    %v977 = vld [vmem:[%s2 + $0xc] sm:$0xff]
    %v978 = vld [vmem:[%s2 + $0x14] sm:$0xf]
    %v979 = vld [vmem:[%s2 + $0x18] sm:$0xff]
    %v980 = vld [vmem:[%s2 + $0x20] sm:$0xf]
    %v981 = vld [vmem:[%s2 + $0x24] sm:$0xff]
    %v982 = vld [vmem:[%s2 + $0x2c] sm:$0xf]
    %v983 = vld [vmem:[%s2 + $0x30] sm:$0xff]
    %v984 = vld [vmem:[%s2 + $0x38] sm:$0xf]
    %v985 = vld [vmem:[%s2 + $0x3c] sm:$0xff]
    %v986 = vld [vmem:[%s2 + $0x44] sm:$0xf]
    %v987 = vld [vmem:[%s2 + $0x48] sm:$0xff]
    %v988 = vld [vmem:[%s2 + $0x50] sm:$0xf]
    %v989 = vld [vmem:[%s2 + $0x54] sm:$0xff]
    %v990 = vld [vmem:[%s2 + $0x5c] sm:$0xf]
    %v991 = vld [vmem:[%s2 + $0x60] sm:$0xff]
    %v992 = vld [vmem:[%s2 + $0x68] sm:$0xf]
    %v993 = vld [vmem:[%s2 + $0x6c] sm:$0xff]
    %v994 = vld [vmem:[%s2 + $0x74] sm:$0xf]
    %v995 = vld [vmem:[%s2 + $0x78] sm:$0xff]
    %v996 = vld [vmem:[%s2 + $0x80] sm:$0xf]
    %v997 = vld [vmem:[%s2 + $0x84] sm:$0xff]
    %v998 = vld [vmem:[%s2 + $0x8c] sm:$0xf]
    %v999 = vld [vmem:[%s2 + $0x90] sm:$0xff]
    %v1000 = vld [vmem:[%s2 + $0x98] sm:$0xf]
    %v1001 = vld [vmem:[%s2 + $0x9c] sm:$0xff]
    %v1002 = vld [vmem:[%s2 + $0xa4] sm:$0xf]
    %v1003 = vld [vmem:[%s2 + $0xa8] sm:$0xff]
    %v1004 = vld [vmem:[%s2 + $0xb0] sm:$0xf]
    %v1005 = vld [vmem:[%s2 + $0xb4] sm:$0xff]
    %v1006 = vld [vmem:[%s2 + $0xbc] sm:$0xf]
    %v1007 = vld [vmem:[#allocation6] sm:$0x1]
    %v1009 = vlaneseq
    %v1010 = vshrl.u32 %v1009, 7
    %v1011 = vsub.s32 0, %v1010
    %v1012 = vrot.slane %v1007, %v1011
    %v1014 = vld [vmem:[#allocation2] sm:$0xff]
    %v1015 = vld [vmem:[#allocation2 + $0x8] sm:$0xf]
    %v1048 = vunpack.c.l.b16 %v975
    %v1049 = vunpack.c.h.b16 %v975
    %v1050 = vunpack.c.l.b16 %v976
    %v1051 = vunpack.c.l.b16 %v977
    %v1052 = vunpack.c.h.b16 %v977
    %v1053 = vunpack.c.l.b16 %v978
    %v1054 = vunpack.c.l.b16 %v979
    %v1055 = vunpack.c.h.b16 %v979
    %v1056 = vunpack.c.l.b16 %v980
    %v1057 = vunpack.c.l.b16 %v981
    %v1058 = vunpack.c.h.b16 %v981
    %v1059 = vunpack.c.l.b16 %v982
    %v1060 = vunpack.c.l.b16 %v983
    %v1061 = vunpack.c.h.b16 %v983
    %v1062 = vunpack.c.l.b16 %v984
    %v1063 = vunpack.c.l.b16 %v985
    %v1064 = vunpack.c.h.b16 %v985
    %v1065 = vunpack.c.l.b16 %v986
    %v1066 = vunpack.c.l.b16 %v987
    %v1067 = vunpack.c.h.b16 %v987
    %v1068 = vunpack.c.l.b16 %v988
    %v1069 = vunpack.c.l.b16 %v989
    %v1070 = vunpack.c.h.b16 %v989
    %v1071 = vunpack.c.l.b16 %v990
    %v1072 = vunpack.c.l.b16 %v991
    %v1073 = vunpack.c.h.b16 %v991
    %v1074 = vunpack.c.l.b16 %v992
    %v1075 = vunpack.c.l.b16 %v993
    %v1076 = vunpack.c.h.b16 %v993
    %v1077 = vunpack.c.l.b16 %v994
    %v1078 = vunpack.c.l.b16 %v995
    %v1079 = vunpack.c.h.b16 %v995
    %v1080 = vunpack.c.l.b16 %v996
    %v1081 = vunpack.c.l.b16 %v997
    %v1082 = vunpack.c.h.b16 %v997
    %v1083 = vunpack.c.l.b16 %v998
    %v1084 = vunpack.c.l.b16 %v999
    %v1085 = vunpack.c.h.b16 %v999
    %v1086 = vunpack.c.l.b16 %v1000
    %v1087 = vunpack.c.l.b16 %v1001
    %v1088 = vunpack.c.h.b16 %v1001
    %v1089 = vunpack.c.l.b16 %v1002
    %v1090 = vunpack.c.l.b16 %v1003
    %v1091 = vunpack.c.h.b16 %v1003
    %v1092 = vunpack.c.l.b16 %v1004
    %v1093 = vunpack.c.l.b16 %v1005
    %v1094 = vunpack.c.h.b16 %v1005
    %v1095 = vunpack.c.l.b16 %v1006
    %v1096 = vpack.c.b16 %v1051, %v1048
    %v1097 = vpack.c.b16 %v1052, %v1049
    %v1098 = vpack.c.b16 %v1053, %v1050
    %v1099 = vpack.c.b16 %v1057, %v1054
    %v1100 = vpack.c.b16 %v1058, %v1055
    %v1101 = vpack.c.b16 %v1059, %v1056
    %v1102 = vpack.c.b16 %v1063, %v1060
    %v1103 = vpack.c.b16 %v1064, %v1061
    %v1104 = vpack.c.b16 %v1065, %v1062
    %v1105 = vpack.c.b16 %v1069, %v1066
    %v1106 = vpack.c.b16 %v1070, %v1067
    %v1107 = vpack.c.b16 %v1071, %v1068
    %v1108 = vpack.c.b16 %v1075, %v1072
    %v1109 = vpack.c.b16 %v1076, %v1073
    %v1110 = vpack.c.b16 %v1077, %v1074
    %v1111 = vpack.c.b16 %v1081, %v1078
    %v1112 = vpack.c.b16 %v1082, %v1079
    %v1113 = vpack.c.b16 %v1083, %v1080
    %v1114 = vpack.c.b16 %v1087, %v1084
    %v1115 = vpack.c.b16 %v1088, %v1085
    %v1116 = vpack.c.b16 %v1089, %v1086
    %v1117 = vpack.c.b16 %v1093, %v1090
    %v1118 = vpack.c.b16 %v1094, %v1091
    %v1119 = vpack.c.b16 %v1095, %v1092
    %1144 = vmatprep.subr.bf16.mxu0 %v1097
    %1145 = vmatpush1.bf16.msra.mxu0 %v1096
    %1146 = vmatprep.subr.bf16.mxu0 %v1100
    %1147 = vmatpush1.bf16.msra.mxu0 %v1099
    %1148 = vmatprep.subr.bf16.mxu0 %v1103
    %1149 = vmatpush1.bf16.msra.mxu0 %v1102
    %1150 = vmatprep.subr.bf16.mxu0 %v1106
    %1151 = vmatpush1.bf16.msra.mxu0 %v1105
    %1152 = vmatprep.subr.bf16.mxu0 %v1109
    %1153 = vmatpush1.bf16.msra.mxu0 %v1108
    %1154 = vmatprep.subr.bf16.mxu0 %v1112
    %1155 = vmatpush1.bf16.msra.mxu0 %v1111
    %1156 = vmatprep.subr.bf16.mxu0 %v1115
    %1157 = vmatpush1.bf16.msra.mxu0 %v1114
    %1158 = vmatprep.subr.bf16.mxu0 %v1118
    %1159 = vmatpush1.bf16.msra.mxu0 %v1117
    %1160 = vmatprep.subr.bf16.mxu0 0
    %1161 = vmatpush1.bf16.msra.mxu0 0
    %1162 = vmatprep.subr.bf16.mxu0 0
    %1163 = vmatpush1.bf16.msra.mxu0 0
    %1164 = vmatprep.subr.bf16.mxu0 0
    %1165 = vmatpush1.bf16.msra.mxu0 0
    %1166 = vmatprep.subr.bf16.mxu0 0
    %1167 = vmatpush1.bf16.msra.mxu0 0
    %1168 = vmatprep.subr.bf16.mxu0 0
    %1169 = vmatpush1.bf16.msra.mxu0 0
    %1170 = vmatprep.subr.bf16.mxu0 0
    %1171 = vmatpush1.bf16.msra.mxu0 0
    %1172 = vmatprep.subr.bf16.mxu0 0
    %1173 = vmatpush1.bf16.msra.mxu0 0
    %1174 = vmatprep.subr.bf16.mxu0 0
    %1175 = vmatpush1.bf16.msra.mxu0 0
    %1176 = vmatprep.mubr.bf16.mxu0 0
    %1177 = vmatmul.mubr.bf16.gmra.mrb[0].mxu0 0
    %v1178 = vpop.f32.mrb[0].mxu0
    %v1179 = vadd.f32 0.0, %v1178
    %v1180 = vpop.f32.mrb[0].mxu0
    %v1181 = vadd.f32 0.0, %v1180
    %v1182 = vpop.f32.mrb[0].mxu0
    %v1183 = vpop.f32.mrb[0].mxu0
    %1184 = vdwg.mxu0
    %1185 = vmatprep.subr.bf16.mxu0 0
    %1186 = vmatpush1.bf16.msra.mxu0 %v1098
    %1187 = vmatprep.subr.bf16.mxu0 0
    %1188 = vmatpush1.bf16.msra.mxu0 %v1101
    %1189 = vmatprep.subr.bf16.mxu0 0
    %1190 = vmatpush1.bf16.msra.mxu0 %v1104
    %1191 = vmatprep.subr.bf16.mxu0 0
    %1192 = vmatpush1.bf16.msra.mxu0 %v1107
    %1193 = vmatprep.subr.bf16.mxu0 0
    %1194 = vmatpush1.bf16.msra.mxu0 %v1110
    %1195 = vmatprep.subr.bf16.mxu0 0
    %1196 = vmatpush1.bf16.msra.mxu0 %v1113
    %1197 = vmatprep.subr.bf16.mxu0 0
    %1198 = vmatpush1.bf16.msra.mxu0 %v1116
    %1199 = vmatprep.subr.bf16.mxu0 0
    %1200 = vmatpush1.bf16.msra.mxu0 %v1119
    %1201 = vmatprep.subr.bf16.mxu0 0
    %1202 = vmatpush1.bf16.msra.mxu0 0
    %1203 = vmatprep.subr.bf16.mxu0 0
    %1204 = vmatpush1.bf16.msra.mxu0 0
    %1205 = vmatprep.subr.bf16.mxu0 0
    %1206 = vmatpush1.bf16.msra.mxu0 0
    %1207 = vmatprep.subr.bf16.mxu0 0
    %1208 = vmatpush1.bf16.msra.mxu0 0
    %1209 = vmatprep.subr.bf16.mxu0 0
    %1210 = vmatpush1.bf16.msra.mxu0 0
    %1211 = vmatprep.subr.bf16.mxu0 0
    %1212 = vmatpush1.bf16.msra.mxu0 0
    %1213 = vmatprep.subr.bf16.mxu0 0
    %1214 = vmatpush1.bf16.msra.mxu0 0
    %1215 = vmatprep.subr.bf16.mxu0 0
    %1216 = vmatpush1.bf16.msra.mxu0 0
    %1217 = vmatprep.mubr.bf16.mxu0 0
    %1218 = vmatmul.mubr.bf16.gmra.mrb[0].mxu0 0
    %v1219 = vpop.f32.mrb[0].mxu0
    %v1220 = vadd.f32 0.0, %v1219
    %v1221 = vpop.f32.mrb[0].mxu0
    %v1222 = vpop.f32.mrb[0].mxu0
    %v1223 = vpop.f32.mrb[0].mxu0
    %1224 = vdwg.mxu0
    %v1225 = vunpack.c.l.bf16 %v1014
    %v1226 = vunpack.c.h.bf16 %v1014
    %v1227 = vadd.f32 %v1225, %v1179
    %v1228 = vadd.f32 %v1226, %v1181
    %v1229 = vxor.u32 %v1227, 2147483648
    %v1230 = vxor.u32 %v1228, 2147483648
    %v1231 = vmul.f32 %v1229, 1.442695
    %v1232 = vpow.pop %v1231
    %v1233 = vmul.f32 %v1230, 1.442695
    %v1234 = vpow.pop %v1233
    %v1235 = vadd.f32 %v1232, 1.0
    %v1236 = vadd.f32 %v1234, 1.0
    %v1237 = vrcp.pop %v1235
    %v1238 = vmul.f32 1.0, %v1237
    %v1239 = vrcp.pop %v1236
    %v1240 = vmul.f32 1.0, %v1239
    %v1241 = vadd.f32 %v1220, %v1012
    %v1242 = vmul.f32 %v1238, %v1241
    %v1243 = vunpack.c.l.bf16 %v1015
    %v1244 = vadd.f32 %v1243, %v1242
    %v1245 = vtanh.pop %v1244
    %v1246 = vsub.f32 0.0, %v1245
    %v1247 = vmul.f32 %v1240, %v1246
    %v1248 = vadd.f32 %v1245, %v1247
    %v1249 = vpack.c.bf16 %v1248, %v1248
    %1250 = vst [vmem:[#allocation3] sm:$0xf] %v1249
    %v1251 = vld [vmem:[%s360] sm:$0xff]
    %v1252 = vld [vmem:[%s360 + $0x8] sm:$0xf]
    %1253 = vmatprep.subr.bf16.mxu0 %v1097
    %1254 = vmatpush1.bf16.msra.mxu0 %v1096
    %1255 = vmatprep.subr.bf16.mxu0 %v1100
    %1256 = vmatpush1.bf16.msra.mxu0 %v1099
    %1257 = vmatprep.subr.bf16.mxu0 %v1103
    %1258 = vmatpush1.bf16.msra.mxu0 %v1102
    %1259 = vmatprep.subr.bf16.mxu0 %v1106
    %1260 = vmatpush1.bf16.msra.mxu0 %v1105
    %1261 = vmatprep.subr.bf16.mxu0 %v1109
    %1262 = vmatpush1.bf16.msra.mxu0 %v1108
    %1263 = vmatprep.subr.bf16.mxu0 %v1112
    %1264 = vmatpush1.bf16.msra.mxu0 %v1111
    %1265 = vmatprep.subr.bf16.mxu0 %v1115
    %1266 = vmatpush1.bf16.msra.mxu0 %v1114
    %1267 = vmatprep.subr.bf16.mxu0 %v1118
    %1268 = vmatpush1.bf16.msra.mxu0 %v1117
    %1269 = vmatprep.subr.bf16.mxu0 0
    %1270 = vmatpush1.bf16.msra.mxu0 0
    %1271 = vmatprep.subr.bf16.mxu0 0
    %1272 = vmatpush1.bf16.msra.mxu0 0
    %1273 = vmatprep.subr.bf16.mxu0 0
    %1274 = vmatpush1.bf16.msra.mxu0 0
    %1275 = vmatprep.subr.bf16.mxu0 0
    %1276 = vmatpush1.bf16.msra.mxu0 0
    %1277 = vmatprep.subr.bf16.mxu0 0
    %1278 = vmatpush1.bf16.msra.mxu0 0
    %1279 = vmatprep.subr.bf16.mxu0 0
    %1280 = vmatpush1.bf16.msra.mxu0 0
    %1281 = vmatprep.subr.bf16.mxu0 0
    %1282 = vmatpush1.bf16.msra.mxu0 0
    %1283 = vmatprep.subr.bf16.mxu0 0
    %1284 = vmatpush1.bf16.msra.mxu0 0
    %1285 = vmatprep.mubr.bf16.mxu0 0
    %1286 = vmatmul.mubr.bf16.gmra.mrb[0].mxu0 %v1249
    %v1287 = vpop.f32.mrb[0].mxu0
    %v1288 = vadd.f32 0.0, %v1287
    %v1289 = vpop.f32.mrb[0].mxu0
    %v1290 = vadd.f32 0.0, %v1289
    %v1291 = vpop.f32.mrb[0].mxu0
    %v1292 = vpop.f32.mrb[0].mxu0
    %1293 = vdwg.mxu0
    %1294 = vmatprep.subr.bf16.mxu0 0
    %1295 = vmatpush1.bf16.msra.mxu0 %v1098
    %1296 = vmatprep.subr.bf16.mxu0 0
    %1297 = vmatpush1.bf16.msra.mxu0 %v1101
    %1298 = vmatprep.subr.bf16.mxu0 0
    %1299 = vmatpush1.bf16.msra.mxu0 %v1104
    %1300 = vmatprep.subr.bf16.mxu0 0
    %1301 = vmatpush1.bf16.msra.mxu0 %v1107
    %1302 = vmatprep.subr.bf16.mxu0 0
    %1303 = vmatpush1.bf16.msra.mxu0 %v1110
    %1304 = vmatprep.subr.bf16.mxu0 0
    %1305 = vmatpush1.bf16.msra.mxu0 %v1113
    %1306 = vmatprep.subr.bf16.mxu0 0
    %1307 = vmatpush1.bf16.msra.mxu0 %v1116
    %1308 = vmatprep.subr.bf16.mxu0 0
    %1309 = vmatpush1.bf16.msra.mxu0 %v1119
    %1310 = vmatprep.subr.bf16.mxu0 0
    %1311 = vmatpush1.bf16.msra.mxu0 0
    %1312 = vmatprep.subr.bf16.mxu0 0
    %1313 = vmatpush1.bf16.msra.mxu0 0
    %1314 = vmatprep.subr.bf16.mxu0 0
    %1315 = vmatpush1.bf16.msra.mxu0 0
    %1316 = vmatprep.subr.bf16.mxu0 0
    %1317 = vmatpush1.bf16.msra.mxu0 0
    %1318 = vmatprep.subr.bf16.mxu0 0
    %1319 = vmatpush1.bf16.msra.mxu0 0
    %1320 = vmatprep.subr.bf16.mxu0 0
    %1321 = vmatpush1.bf16.msra.mxu0 0
    %1322 = vmatprep.subr.bf16.mxu0 0
    %1323 = vmatpush1.bf16.msra.mxu0 0
    %1324 = vmatprep.subr.bf16.mxu0 0
    %1325 = vmatpush1.bf16.msra.mxu0 0
    %1326 = vmatprep.mubr.bf16.mxu0 0
    %1327 = vmatmul.mubr.bf16.gmra.mrb[0].mxu0 %v1249
    %v1328 = vpop.f32.mrb[0].mxu0
    %v1329 = vadd.f32 0.0, %v1328
    %v1330 = vpop.f32.mrb[0].mxu0
    %v1331 = vpop.f32.mrb[0].mxu0
    %v1332 = vpop.f32.mrb[0].mxu0
    %1333 = vdwg.mxu0
    %v1334 = vunpack.c.l.bf16 %v1251
    %v1335 = vunpack.c.h.bf16 %v1251
    %v1336 = vadd.f32 %v1334, %v1288
    %v1337 = vadd.f32 %v1335, %v1290
    %v1338 = vxor.u32 %v1336, 2147483648
    %v1339 = vxor.u32 %v1337, 2147483648
    %v1340 = vmul.f32 %v1338, 1.442695
    %v1341 = vpow.pop %v1340
    %v1342 = vmul.f32 %v1339, 1.442695
    %v1343 = vpow.pop %v1342
    %v1344 = vadd.f32 %v1341, 1.0
    %v1345 = vadd.f32 %v1343, 1.0
    %v1346 = vrcp.pop %v1344
    %v1347 = vmul.f32 1.0, %v1346
    %v1348 = vrcp.pop %v1345
    %v1349 = vmul.f32 1.0, %v1348
    %v1350 = vadd.f32 %v1329, %v1012
    %v1351 = vmul.f32 %v1347, %v1350
    %v1352 = vunpack.c.l.bf16 %v1252
    %v1353 = vadd.f32 %v1352, %v1351
    %v1354 = vtanh.pop %v1353
    %v1355 = vsub.f32 %v1248, %v1354
    %v1356 = vmul.f32 %v1349, %v1355
    %v1357 = vadd.f32 %v1354, %v1356
    %v1358 = vpack.c.bf16 %v1357, %v1357
    %s1359 = scalar_lea.vmem [#allocation3], 4
    %1360 = vst [vmem:[%s1359] sm:$0xf] %v1358
    %v1361 = vld [vmem:[%s462] sm:$0xff]
    %v1362 = vld [vmem:[%s462 + $0x8] sm:$0xf]
    %1363 = vmatprep.subr.bf16.mxu0 %v1097
    %1364 = vmatpush1.bf16.msra.mxu0 %v1096
    %1365 = vmatprep.subr.bf16.mxu0 %v1100
    %1366 = vmatpush1.bf16.msra.mxu0 %v1099
    %1367 = vmatprep.subr.bf16.mxu0 %v1103
    %1368 = vmatpush1.bf16.msra.mxu0 %v1102
    %1369 = vmatprep.subr.bf16.mxu0 %v1106
    %1370 = vmatpush1.bf16.msra.mxu0 %v1105
    %1371 = vmatprep.subr.bf16.mxu0 %v1109
    %1372 = vmatpush1.bf16.msra.mxu0 %v1108
    %1373 = vmatprep.subr.bf16.mxu0 %v1112
    %1374 = vmatpush1.bf16.msra.mxu0 %v1111
    %1375 = vmatprep.subr.bf16.mxu0 %v1115
    %1376 = vmatpush1.bf16.msra.mxu0 %v1114
    %1377 = vmatprep.subr.bf16.mxu0 %v1118
    %1378 = vmatpush1.bf16.msra.mxu0 %v1117
    %1379 = vmatprep.subr.bf16.mxu0 0
    %1380 = vmatpush1.bf16.msra.mxu0 0
    %1381 = vmatprep.subr.bf16.mxu0 0
    %1382 = vmatpush1.bf16.msra.mxu0 0
    %1383 = vmatprep.subr.bf16.mxu0 0
    %1384 = vmatpush1.bf16.msra.mxu0 0
    %1385 = vmatprep.subr.bf16.mxu0 0
    %1386 = vmatpush1.bf16.msra.mxu0 0
    %1387 = vmatprep.subr.bf16.mxu0 0
    %1388 = vmatpush1.bf16.msra.mxu0 0
    %1389 = vmatprep.subr.bf16.mxu0 0
    %1390 = vmatpush1.bf16.msra.mxu0 0
    %1391 = vmatprep.subr.bf16.mxu0 0
    %1392 = vmatpush1.bf16.msra.mxu0 0
    %1393 = vmatprep.subr.bf16.mxu0 0
    %1394 = vmatpush1.bf16.msra.mxu0 0
    %1395 = vmatprep.mubr.bf16.mxu0 0
    %1396 = vmatmul.mubr.bf16.gmra.mrb[0].mxu0 %v1358
    %v1397 = vpop.f32.mrb[0].mxu0
    %v1398 = vadd.f32 0.0, %v1397
    %v1399 = vpop.f32.mrb[0].mxu0
    %v1400 = vadd.f32 0.0, %v1399
    %v1401 = vpop.f32.mrb[0].mxu0
    %v1402 = vpop.f32.mrb[0].mxu0
    %1403 = vdwg.mxu0
    %1404 = vmatprep.subr.bf16.mxu0 0
    %1405 = vmatpush1.bf16.msra.mxu0 %v1098
    %1406 = vmatprep.subr.bf16.mxu0 0
    %1407 = vmatpush1.bf16.msra.mxu0 %v1101
    %1408 = vmatprep.subr.bf16.mxu0 0
    %1409 = vmatpush1.bf16.msra.mxu0 %v1104
    %1410 = vmatprep.subr.bf16.mxu0 0
    %1411 = vmatpush1.bf16.msra.mxu0 %v1107
    %1412 = vmatprep.subr.bf16.mxu0 0
    %1413 = vmatpush1.bf16.msra.mxu0 %v1110
    %1414 = vmatprep.subr.bf16.mxu0 0
    %1415 = vmatpush1.bf16.msra.mxu0 %v1113
    %1416 = vmatprep.subr.bf16.mxu0 0
    %1417 = vmatpush1.bf16.msra.mxu0 %v1116
    %1418 = vmatprep.subr.bf16.mxu0 0
    %1419 = vmatpush1.bf16.msra.mxu0 %v1119
    %1420 = vmatprep.subr.bf16.mxu0 0
    %1421 = vmatpush1.bf16.msra.mxu0 0
    %1422 = vmatprep.subr.bf16.mxu0 0
    %1423 = vmatpush1.bf16.msra.mxu0 0
    %1424 = vmatprep.subr.bf16.mxu0 0
    %1425 = vmatpush1.bf16.msra.mxu0 0
    %1426 = vmatprep.subr.bf16.mxu0 0
    %1427 = vmatpush1.bf16.msra.mxu0 0
    %1428 = vmatprep.subr.bf16.mxu0 0
    %1429 = vmatpush1.bf16.msra.mxu0 0
    %1430 = vmatprep.subr.bf16.mxu0 0
    %1431 = vmatpush1.bf16.msra.mxu0 0
    %1432 = vmatprep.subr.bf16.mxu0 0
    %1433 = vmatpush1.bf16.msra.mxu0 0
    %1434 = vmatprep.subr.bf16.mxu0 0
    %1435 = vmatpush1.bf16.msra.mxu0 0
    %1436 = vmatprep.mubr.bf16.mxu0 0
    %1437 = vmatmul.mubr.bf16.gmra.mrb[0].mxu0 %v1358
    %v1438 = vpop.f32.mrb[0].mxu0
    %v1439 = vadd.f32 0.0, %v1438
    %v1440 = vpop.f32.mrb[0].mxu0
    %v1441 = vpop.f32.mrb[0].mxu0
    %v1442 = vpop.f32.mrb[0].mxu0
    %1443 = vdwg.mxu0
    %v1444 = vunpack.c.l.bf16 %v1361
    %v1445 = vunpack.c.h.bf16 %v1361
    %v1446 = vadd.f32 %v1444, %v1398
    %v1447 = vadd.f32 %v1445, %v1400
    %v1448 = vxor.u32 %v1446, 2147483648
    %v1449 = vxor.u32 %v1447, 2147483648
    %v1450 = vmul.f32 %v1448, 1.442695
    %v1451 = vpow.pop %v1450
    %v1452 = vmul.f32 %v1449, 1.442695
    %v1453 = vpow.pop %v1452
    %v1454 = vadd.f32 %v1451, 1.0
    %v1455 = vadd.f32 %v1453, 1.0
    %v1456 = vrcp.pop %v1454
    %v1457 = vmul.f32 1.0, %v1456
    %v1458 = vrcp.pop %v1455
    %v1459 = vmul.f32 1.0, %v1458
    %v1460 = vadd.f32 %v1439, %v1012
    %v1461 = vmul.f32 %v1457, %v1460
    %v1462 = vunpack.c.l.bf16 %v1362
    %v1463 = vadd.f32 %v1462, %v1461
    %v1464 = vtanh.pop %v1463
    %v1465 = vsub.f32 %v1357, %v1464
    %v1466 = vmul.f32 %v1459, %v1465
    %v1467 = vadd.f32 %v1464, %v1466
    %v1468 = vpack.c.bf16 %v1467, %v1467
    %s1469 = scalar_lea.vmem [#allocation3], 8
    %1470 = vst [vmem:[%s1469] sm:$0xf] %v1468
    %v1471 = vld [vmem:[%s564] sm:$0xff]
    %v1472 = vld [vmem:[%s564 + $0x8] sm:$0xf]
    %1473 = vmatprep.subr.bf16.mxu0 %v1097
    %1474 = vmatpush1.bf16.msra.mxu0 %v1096
    %1475 = vmatprep.subr.bf16.mxu0 %v1100
    %1476 = vmatpush1.bf16.msra.mxu0 %v1099
    %1477 = vmatprep.subr.bf16.mxu0 %v1103
    %1478 = vmatpush1.bf16.msra.mxu0 %v1102
    %1479 = vmatprep.subr.bf16.mxu0 %v1106
    %1480 = vmatpush1.bf16.msra.mxu0 %v1105
    %1481 = vmatprep.subr.bf16.mxu0 %v1109
    %1482 = vmatpush1.bf16.msra.mxu0 %v1108
    %1483 = vmatprep.subr.bf16.mxu0 %v1112
    %1484 = vmatpush1.bf16.msra.mxu0 %v1111
    %1485 = vmatprep.subr.bf16.mxu0 %v1115
    %1486 = vmatpush1.bf16.msra.mxu0 %v1114
    %1487 = vmatprep.subr.bf16.mxu0 %v1118
    %1488 = vmatpush1.bf16.msra.mxu0 %v1117
    %1489 = vmatprep.subr.bf16.mxu0 0
    %1490 = vmatpush1.bf16.msra.mxu0 0
    %1491 = vmatprep.subr.bf16.mxu0 0
    %1492 = vmatpush1.bf16.msra.mxu0 0
    %1493 = vmatprep.subr.bf16.mxu0 0
    %1494 = vmatpush1.bf16.msra.mxu0 0
    %1495 = vmatprep.subr.bf16.mxu0 0
    %1496 = vmatpush1.bf16.msra.mxu0 0
    %1497 = vmatprep.subr.bf16.mxu0 0
    %1498 = vmatpush1.bf16.msra.mxu0 0
    %1499 = vmatprep.subr.bf16.mxu0 0
    %1500 = vmatpush1.bf16.msra.mxu0 0
    %1501 = vmatprep.subr.bf16.mxu0 0
    %1502 = vmatpush1.bf16.msra.mxu0 0
    %1503 = vmatprep.subr.bf16.mxu0 0
    %1504 = vmatpush1.bf16.msra.mxu0 0
    %1505 = vmatprep.mubr.bf16.mxu0 0
    %1506 = vmatmul.mubr.bf16.gmra.mrb[0].mxu0 %v1468
    %v1507 = vpop.f32.mrb[0].mxu0
    %v1508 = vadd.f32 0.0, %v1507
    %v1509 = vpop.f32.mrb[0].mxu0
    %v1510 = vadd.f32 0.0, %v1509
    %v1511 = vpop.f32.mrb[0].mxu0
    %v1512 = vpop.f32.mrb[0].mxu0
    %1513 = vdwg.mxu0
    %1514 = vmatprep.subr.bf16.mxu0 0
    %1515 = vmatpush1.bf16.msra.mxu0 %v1098
    %1516 = vmatprep.subr.bf16.mxu0 0
    %1517 = vmatpush1.bf16.msra.mxu0 %v1101
    %1518 = vmatprep.subr.bf16.mxu0 0
    %1519 = vmatpush1.bf16.msra.mxu0 %v1104
    %1520 = vmatprep.subr.bf16.mxu0 0
    %1521 = vmatpush1.bf16.msra.mxu0 %v1107
    %1522 = vmatprep.subr.bf16.mxu0 0
    %1523 = vmatpush1.bf16.msra.mxu0 %v1110
    %1524 = vmatprep.subr.bf16.mxu0 0
    %1525 = vmatpush1.bf16.msra.mxu0 %v1113
    %1526 = vmatprep.subr.bf16.mxu0 0
    %1527 = vmatpush1.bf16.msra.mxu0 %v1116
    %1528 = vmatprep.subr.bf16.mxu0 0
    %1529 = vmatpush1.bf16.msra.mxu0 %v1119
    %1530 = vmatprep.subr.bf16.mxu0 0
    %1531 = vmatpush1.bf16.msra.mxu0 0
    %1532 = vmatprep.subr.bf16.mxu0 0
    %1533 = vmatpush1.bf16.msra.mxu0 0
    %1534 = vmatprep.subr.bf16.mxu0 0
    %1535 = vmatpush1.bf16.msra.mxu0 0
    %1536 = vmatprep.subr.bf16.mxu0 0
    %1537 = vmatpush1.bf16.msra.mxu0 0
    %1538 = vmatprep.subr.bf16.mxu0 0
    %1539 = vmatpush1.bf16.msra.mxu0 0
    %1540 = vmatprep.subr.bf16.mxu0 0
    %1541 = vmatpush1.bf16.msra.mxu0 0
    %1542 = vmatprep.subr.bf16.mxu0 0
    %1543 = vmatpush1.bf16.msra.mxu0 0
    %1544 = vmatprep.subr.bf16.mxu0 0
    %1545 = vmatpush1.bf16.msra.mxu0 0
    %1546 = vmatprep.mubr.bf16.mxu0 0
    %1547 = vmatmul.mubr.bf16.gmra.mrb[0].mxu0 %v1468
    %v1548 = vpop.f32.mrb[0].mxu0
    %v1549 = vadd.f32 0.0, %v1548
    %v1550 = vpop.f32.mrb[0].mxu0
    %v1551 = vpop.f32.mrb[0].mxu0
    %v1552 = vpop.f32.mrb[0].mxu0
    %1553 = vdwg.mxu0
    %v1554 = vunpack.c.l.bf16 %v1471
    %v1555 = vunpack.c.h.bf16 %v1471
    %v1556 = vadd.f32 %v1554, %v1508
    %v1557 = vadd.f32 %v1555, %v1510
    %v1558 = vxor.u32 %v1556, 2147483648
    %v1559 = vxor.u32 %v1557, 2147483648
    %v1560 = vmul.f32 %v1558, 1.442695
    %v1561 = vpow.pop %v1560
    %v1562 = vmul.f32 %v1559, 1.442695
    %v1563 = vpow.pop %v1562
    %v1564 = vadd.f32 %v1561, 1.0
    %v1565 = vadd.f32 %v1563, 1.0
    %v1566 = vrcp.pop %v1564
    %v1567 = vmul.f32 1.0, %v1566
    %v1568 = vrcp.pop %v1565
    %v1569 = vmul.f32 1.0, %v1568
    %v1570 = vadd.f32 %v1549, %v1012
    %v1571 = vmul.f32 %v1567, %v1570
    %v1572 = vunpack.c.l.bf16 %v1472
    %v1573 = vadd.f32 %v1572, %v1571
    %v1574 = vtanh.pop %v1573
    %v1575 = vsub.f32 %v1467, %v1574
    %v1576 = vmul.f32 %v1569, %v1575
    %v1577 = vadd.f32 %v1574, %v1576
    %v1578 = vpack.c.bf16 %v1577, %v1577
    %s1579 = scalar_lea.vmem [#allocation3], 12
    %1580 = vst [vmem:[%s1579] sm:$0xf] %v1578
    %v1581 = vld [vmem:[%s666] sm:$0xff]
    %v1582 = vld [vmem:[%s666 + $0x8] sm:$0xf]
    %1583 = vmatprep.subr.bf16.mxu0 %v1097
    %1584 = vmatpush1.bf16.msra.mxu0 %v1096
    %1585 = vmatprep.subr.bf16.mxu0 %v1100
    %1586 = vmatpush1.bf16.msra.mxu0 %v1099
    %1587 = vmatprep.subr.bf16.mxu0 %v1103
    %1588 = vmatpush1.bf16.msra.mxu0 %v1102
    %1589 = vmatprep.subr.bf16.mxu0 %v1106
    %1590 = vmatpush1.bf16.msra.mxu0 %v1105
    %1591 = vmatprep.subr.bf16.mxu0 %v1109
    %1592 = vmatpush1.bf16.msra.mxu0 %v1108
    %1593 = vmatprep.subr.bf16.mxu0 %v1112
    %1594 = vmatpush1.bf16.msra.mxu0 %v1111
    %1595 = vmatprep.subr.bf16.mxu0 %v1115
    %1596 = vmatpush1.bf16.msra.mxu0 %v1114
    %1597 = vmatprep.subr.bf16.mxu0 %v1118
    %1598 = vmatpush1.bf16.msra.mxu0 %v1117
    %1599 = vmatprep.subr.bf16.mxu0 0
    %1600 = vmatpush1.bf16.msra.mxu0 0
    %1601 = vmatprep.subr.bf16.mxu0 0
    %1602 = vmatpush1.bf16.msra.mxu0 0
    %1603 = vmatprep.subr.bf16.mxu0 0
    %1604 = vmatpush1.bf16.msra.mxu0 0
    %1605 = vmatprep.subr.bf16.mxu0 0
    %1606 = vmatpush1.bf16.msra.mxu0 0
    %1607 = vmatprep.subr.bf16.mxu0 0
    %1608 = vmatpush1.bf16.msra.mxu0 0
    %1609 = vmatprep.subr.bf16.mxu0 0
    %1610 = vmatpush1.bf16.msra.mxu0 0
    %1611 = vmatprep.subr.bf16.mxu0 0
    %1612 = vmatpush1.bf16.msra.mxu0 0
    %1613 = vmatprep.subr.bf16.mxu0 0
    %1614 = vmatpush1.bf16.msra.mxu0 0
    %1615 = vmatprep.mubr.bf16.mxu0 0
    %1616 = vmatmul.mubr.bf16.gmra.mrb[0].mxu0 %v1578
    %v1617 = vpop.f32.mrb[0].mxu0
    %v1618 = vadd.f32 0.0, %v1617
    %v1619 = vpop.f32.mrb[0].mxu0
    %v1620 = vadd.f32 0.0, %v1619
    %v1621 = vpop.f32.mrb[0].mxu0
    %v1622 = vpop.f32.mrb[0].mxu0
    %1623 = vdwg.mxu0
    %1624 = vmatprep.subr.bf16.mxu0 0
    %1625 = vmatpush1.bf16.msra.mxu0 %v1098
    %1626 = vmatprep.subr.bf16.mxu0 0
    %1627 = vmatpush1.bf16.msra.mxu0 %v1101
    %1628 = vmatprep.subr.bf16.mxu0 0
    %1629 = vmatpush1.bf16.msra.mxu0 %v1104
    %1630 = vmatprep.subr.bf16.mxu0 0
    %1631 = vmatpush1.bf16.msra.mxu0 %v1107
    %1632 = vmatprep.subr.bf16.mxu0 0
    %1633 = vmatpush1.bf16.msra.mxu0 %v1110
    %1634 = vmatprep.subr.bf16.mxu0 0
    %1635 = vmatpush1.bf16.msra.mxu0 %v1113
    %1636 = vmatprep.subr.bf16.mxu0 0
    %1637 = vmatpush1.bf16.msra.mxu0 %v1116
    %1638 = vmatprep.subr.bf16.mxu0 0
    %1639 = vmatpush1.bf16.msra.mxu0 %v1119
    %1640 = vmatprep.subr.bf16.mxu0 0
    %1641 = vmatpush1.bf16.msra.mxu0 0
    %1642 = vmatprep.subr.bf16.mxu0 0
    %1643 = vmatpush1.bf16.msra.mxu0 0
    %1644 = vmatprep.subr.bf16.mxu0 0
    %1645 = vmatpush1.bf16.msra.mxu0 0
    %1646 = vmatprep.subr.bf16.mxu0 0
    %1647 = vmatpush1.bf16.msra.mxu0 0
    %1648 = vmatprep.subr.bf16.mxu0 0
    %1649 = vmatpush1.bf16.msra.mxu0 0
    %1650 = vmatprep.subr.bf16.mxu0 0
    %1651 = vmatpush1.bf16.msra.mxu0 0
    %1652 = vmatprep.subr.bf16.mxu0 0
    %1653 = vmatpush1.bf16.msra.mxu0 0
    %1654 = vmatprep.subr.bf16.mxu0 0
    %1655 = vmatpush1.bf16.msra.mxu0 0
    %1656 = vmatprep.mubr.bf16.mxu0 0
    %1657 = vmatmul.mubr.bf16.gmra.mrb[0].mxu0 %v1578
    %v1658 = vpop.f32.mrb[0].mxu0
    %v1659 = vadd.f32 0.0, %v1658
    %v1660 = vpop.f32.mrb[0].mxu0
    %v1661 = vpop.f32.mrb[0].mxu0
    %v1662 = vpop.f32.mrb[0].mxu0
    %1663 = vdwg.mxu0
    %v1664 = vunpack.c.l.bf16 %v1581
    %v1665 = vunpack.c.h.bf16 %v1581
    %v1666 = vadd.f32 %v1664, %v1618
    %v1667 = vadd.f32 %v1665, %v1620
    %v1668 = vxor.u32 %v1666, 2147483648
    %v1669 = vxor.u32 %v1667, 2147483648
    %v1670 = vmul.f32 %v1668, 1.442695
    %v1671 = vpow.pop %v1670
    %v1672 = vmul.f32 %v1669, 1.442695
    %v1673 = vpow.pop %v1672
    %v1674 = vadd.f32 %v1671, 1.0
    %v1675 = vadd.f32 %v1673, 1.0
    %v1676 = vrcp.pop %v1674
    %v1677 = vmul.f32 1.0, %v1676
    %v1678 = vrcp.pop %v1675
    %v1679 = vmul.f32 1.0, %v1678
    %v1680 = vadd.f32 %v1659, %v1012
    %v1681 = vmul.f32 %v1677, %v1680
    %v1682 = vunpack.c.l.bf16 %v1582
    %v1683 = vadd.f32 %v1682, %v1681
    %v1684 = vtanh.pop %v1683
    %v1685 = vsub.f32 %v1577, %v1684
    %v1686 = vmul.f32 %v1679, %v1685
    %v1687 = vadd.f32 %v1684, %v1686
    %v1688 = vpack.c.bf16 %v1687, %v1687
    %s1689 = scalar_lea.vmem [#allocation3], 16
    %1690 = vst [vmem:[%s1689] sm:$0xf] %v1688
    %v1691 = vld [vmem:[%s768] sm:$0xff]
    %v1692 = vld [vmem:[%s768 + $0x8] sm:$0xf]
    %1693 = vmatprep.subr.bf16.mxu0 %v1097
    %1694 = vmatpush1.bf16.msra.mxu0 %v1096
    %1695 = vmatprep.subr.bf16.mxu0 %v1100
    %1696 = vmatpush1.bf16.msra.mxu0 %v1099
    %1697 = vmatprep.subr.bf16.mxu0 %v1103
    %1698 = vmatpush1.bf16.msra.mxu0 %v1102
    %1699 = vmatprep.subr.bf16.mxu0 %v1106
    %1700 = vmatpush1.bf16.msra.mxu0 %v1105
    %1701 = vmatprep.subr.bf16.mxu0 %v1109
    %1702 = vmatpush1.bf16.msra.mxu0 %v1108
    %1703 = vmatprep.subr.bf16.mxu0 %v1112
    %1704 = vmatpush1.bf16.msra.mxu0 %v1111
    %1705 = vmatprep.subr.bf16.mxu0 %v1115
    %1706 = vmatpush1.bf16.msra.mxu0 %v1114
    %1707 = vmatprep.subr.bf16.mxu0 %v1118
    %1708 = vmatpush1.bf16.msra.mxu0 %v1117
    %1709 = vmatprep.subr.bf16.mxu0 0
    %1710 = vmatpush1.bf16.msra.mxu0 0
    %1711 = vmatprep.subr.bf16.mxu0 0
    %1712 = vmatpush1.bf16.msra.mxu0 0
    %1713 = vmatprep.subr.bf16.mxu0 0
    %1714 = vmatpush1.bf16.msra.mxu0 0
    %1715 = vmatprep.subr.bf16.mxu0 0
    %1716 = vmatpush1.bf16.msra.mxu0 0
    %1717 = vmatprep.subr.bf16.mxu0 0
    %1718 = vmatpush1.bf16.msra.mxu0 0
    %1719 = vmatprep.subr.bf16.mxu0 0
    %1720 = vmatpush1.bf16.msra.mxu0 0
    %1721 = vmatprep.subr.bf16.mxu0 0
    %1722 = vmatpush1.bf16.msra.mxu0 0
    %1723 = vmatprep.subr.bf16.mxu0 0
    %1724 = vmatpush1.bf16.msra.mxu0 0
    %1725 = vmatprep.mubr.bf16.mxu0 0
    %1726 = vmatmul.mubr.bf16.gmra.mrb[0].mxu0 %v1688
    %v1727 = vpop.f32.mrb[0].mxu0
    %v1728 = vadd.f32 0.0, %v1727
    %v1729 = vpop.f32.mrb[0].mxu0
    %v1730 = vadd.f32 0.0, %v1729
    %v1731 = vpop.f32.mrb[0].mxu0
    %v1732 = vpop.f32.mrb[0].mxu0
    %1733 = vdwg.mxu0
    %1734 = vmatprep.subr.bf16.mxu0 0
    %1735 = vmatpush1.bf16.msra.mxu0 %v1098
    %1736 = vmatprep.subr.bf16.mxu0 0
    %1737 = vmatpush1.bf16.msra.mxu0 %v1101
    %1738 = vmatprep.subr.bf16.mxu0 0
    %1739 = vmatpush1.bf16.msra.mxu0 %v1104
    %1740 = vmatprep.subr.bf16.mxu0 0
    %1741 = vmatpush1.bf16.msra.mxu0 %v1107
    %1742 = vmatprep.subr.bf16.mxu0 0
    %1743 = vmatpush1.bf16.msra.mxu0 %v1110
    %1744 = vmatprep.subr.bf16.mxu0 0
    %1745 = vmatpush1.bf16.msra.mxu0 %v1113
    %1746 = vmatprep.subr.bf16.mxu0 0
    %1747 = vmatpush1.bf16.msra.mxu0 %v1116
    %1748 = vmatprep.subr.bf16.mxu0 0
    %1749 = vmatpush1.bf16.msra.mxu0 %v1119
    %1750 = vmatprep.subr.bf16.mxu0 0
    %1751 = vmatpush1.bf16.msra.mxu0 0
    %1752 = vmatprep.subr.bf16.mxu0 0
    %1753 = vmatpush1.bf16.msra.mxu0 0
    %1754 = vmatprep.subr.bf16.mxu0 0
    %1755 = vmatpush1.bf16.msra.mxu0 0
    %1756 = vmatprep.subr.bf16.mxu0 0
    %1757 = vmatpush1.bf16.msra.mxu0 0
    %1758 = vmatprep.subr.bf16.mxu0 0
    %1759 = vmatpush1.bf16.msra.mxu0 0
    %1760 = vmatprep.subr.bf16.mxu0 0
    %1761 = vmatpush1.bf16.msra.mxu0 0
    %1762 = vmatprep.subr.bf16.mxu0 0
    %1763 = vmatpush1.bf16.msra.mxu0 0
    %1764 = vmatprep.subr.bf16.mxu0 0
    %1765 = vmatpush1.bf16.msra.mxu0 0
    %1766 = vmatprep.mubr.bf16.mxu0 0
    %1767 = vmatmul.mubr.bf16.gmra.mrb[0].mxu0 %v1688
    %v1768 = vpop.f32.mrb[0].mxu0
    %v1769 = vadd.f32 0.0, %v1768
    %v1770 = vpop.f32.mrb[0].mxu0
    %v1771 = vpop.f32.mrb[0].mxu0
    %v1772 = vpop.f32.mrb[0].mxu0
    %1773 = vdwg.mxu0
    %v1774 = vunpack.c.l.bf16 %v1691
    %v1775 = vunpack.c.h.bf16 %v1691
    %v1776 = vadd.f32 %v1774, %v1728
    %v1777 = vadd.f32 %v1775, %v1730
    %v1778 = vxor.u32 %v1776, 2147483648
    %v1779 = vxor.u32 %v1777, 2147483648
    %v1780 = vmul.f32 %v1778, 1.442695
    %v1781 = vpow.pop %v1780
    %v1782 = vmul.f32 %v1779, 1.442695
    %v1783 = vpow.pop %v1782
    %v1784 = vadd.f32 %v1781, 1.0
    %v1785 = vadd.f32 %v1783, 1.0
    %v1786 = vrcp.pop %v1784
    %v1787 = vmul.f32 1.0, %v1786
    %v1788 = vrcp.pop %v1785
    %v1789 = vmul.f32 1.0, %v1788
    %v1790 = vadd.f32 %v1769, %v1012
    %v1791 = vmul.f32 %v1787, %v1790
    %v1792 = vunpack.c.l.bf16 %v1692
    %v1793 = vadd.f32 %v1792, %v1791
    %v1794 = vtanh.pop %v1793
    %v1795 = vsub.f32 %v1687, %v1794
    %v1796 = vmul.f32 %v1789, %v1795
    %v1797 = vadd.f32 %v1794, %v1796
    %v1798 = vpack.c.bf16 %v1797, %v1797
    %s1799 = scalar_lea.vmem [#allocation3], 20
    %1800 = vst [vmem:[%s1799] sm:$0xf] %v1798
    %v1801 = vld [vmem:[%s870] sm:$0xff]
    %v1802 = vld [vmem:[%s870 + $0x8] sm:$0xf]
    %1803 = vmatprep.subr.bf16.mxu0 %v1097
    %1804 = vmatpush1.bf16.msra.mxu0 %v1096
    %1805 = vmatprep.subr.bf16.mxu0 %v1100
    %1806 = vmatpush1.bf16.msra.mxu0 %v1099
    %1807 = vmatprep.subr.bf16.mxu0 %v1103
    %1808 = vmatpush1.bf16.msra.mxu0 %v1102
    %1809 = vmatprep.subr.bf16.mxu0 %v1106
    %1810 = vmatpush1.bf16.msra.mxu0 %v1105
    %1811 = vmatprep.subr.bf16.mxu0 %v1109
    %1812 = vmatpush1.bf16.msra.mxu0 %v1108
    %1813 = vmatprep.subr.bf16.mxu0 %v1112
    %1814 = vmatpush1.bf16.msra.mxu0 %v1111
    %1815 = vmatprep.subr.bf16.mxu0 %v1115
    %1816 = vmatpush1.bf16.msra.mxu0 %v1114
    %1817 = vmatprep.subr.bf16.mxu0 %v1118
    %1818 = vmatpush1.bf16.msra.mxu0 %v1117
    %1819 = vmatprep.subr.bf16.mxu0 0
    %1820 = vmatpush1.bf16.msra.mxu0 0
    %1821 = vmatprep.subr.bf16.mxu0 0
    %1822 = vmatpush1.bf16.msra.mxu0 0
    %1823 = vmatprep.subr.bf16.mxu0 0
    %1824 = vmatpush1.bf16.msra.mxu0 0
    %1825 = vmatprep.subr.bf16.mxu0 0
    %1826 = vmatpush1.bf16.msra.mxu0 0
    %1827 = vmatprep.subr.bf16.mxu0 0
    %1828 = vmatpush1.bf16.msra.mxu0 0
    %1829 = vmatprep.subr.bf16.mxu0 0
    %1830 = vmatpush1.bf16.msra.mxu0 0
    %1831 = vmatprep.subr.bf16.mxu0 0
    %1832 = vmatpush1.bf16.msra.mxu0 0
    %1833 = vmatprep.subr.bf16.mxu0 0
    %1834 = vmatpush1.bf16.msra.mxu0 0
    %1835 = vmatprep.mubr.bf16.mxu0 0
    %1836 = vmatmul.mubr.bf16.gmra.mrb[0].mxu0 %v1798
    %v1837 = vpop.f32.mrb[0].mxu0
    %v1838 = vadd.f32 0.0, %v1837
    %v1839 = vpop.f32.mrb[0].mxu0
    %v1840 = vadd.f32 0.0, %v1839
    %v1841 = vpop.f32.mrb[0].mxu0
    %v1842 = vpop.f32.mrb[0].mxu0
    %1843 = vdwg.mxu0
    %1844 = vmatprep.subr.bf16.mxu0 0
    %1845 = vmatpush1.bf16.msra.mxu0 %v1098
    %1846 = vmatprep.subr.bf16.mxu0 0
    %1847 = vmatpush1.bf16.msra.mxu0 %v1101
    %1848 = vmatprep.subr.bf16.mxu0 0
    %1849 = vmatpush1.bf16.msra.mxu0 %v1104
    %1850 = vmatprep.subr.bf16.mxu0 0
    %1851 = vmatpush1.bf16.msra.mxu0 %v1107
    %1852 = vmatprep.subr.bf16.mxu0 0
    %1853 = vmatpush1.bf16.msra.mxu0 %v1110
    %1854 = vmatprep.subr.bf16.mxu0 0
    %1855 = vmatpush1.bf16.msra.mxu0 %v1113
    %1856 = vmatprep.subr.bf16.mxu0 0
    %1857 = vmatpush1.bf16.msra.mxu0 %v1116
    %1858 = vmatprep.subr.bf16.mxu0 0
    %1859 = vmatpush1.bf16.msra.mxu0 %v1119
    %1860 = vmatprep.subr.bf16.mxu0 0
    %1861 = vmatpush1.bf16.msra.mxu0 0
    %1862 = vmatprep.subr.bf16.mxu0 0
    %1863 = vmatpush1.bf16.msra.mxu0 0
    %1864 = vmatprep.subr.bf16.mxu0 0
    %1865 = vmatpush1.bf16.msra.mxu0 0
    %1866 = vmatprep.subr.bf16.mxu0 0
    %1867 = vmatpush1.bf16.msra.mxu0 0
    %1868 = vmatprep.subr.bf16.mxu0 0
    %1869 = vmatpush1.bf16.msra.mxu0 0
    %1870 = vmatprep.subr.bf16.mxu0 0
    %1871 = vmatpush1.bf16.msra.mxu0 0
    %1872 = vmatprep.subr.bf16.mxu0 0
    %1873 = vmatpush1.bf16.msra.mxu0 0
    %1874 = vmatprep.subr.bf16.mxu0 0
    %1875 = vmatpush1.bf16.msra.mxu0 0
    %1876 = vmatprep.mubr.bf16.mxu0 0
    %1877 = vmatmul.mubr.bf16.gmra.mrb[0].mxu0 %v1798
    %v1878 = vpop.f32.mrb[0].mxu0
    %v1879 = vadd.f32 0.0, %v1878
    %v1880 = vpop.f32.mrb[0].mxu0
    %v1881 = vpop.f32.mrb[0].mxu0
    %v1882 = vpop.f32.mrb[0].mxu0
    %1883 = vdwg.mxu0
    %v1884 = vunpack.c.l.bf16 %v1801
    %v1885 = vunpack.c.h.bf16 %v1801
    %v1886 = vadd.f32 %v1884, %v1838
    %v1887 = vadd.f32 %v1885, %v1840
    %v1888 = vxor.u32 %v1886, 2147483648
    %v1889 = vxor.u32 %v1887, 2147483648
    %v1890 = vmul.f32 %v1888, 1.442695
    %v1891 = vpow.pop %v1890
    %v1892 = vmul.f32 %v1889, 1.442695
    %v1893 = vpow.pop %v1892
    %v1894 = vadd.f32 %v1891, 1.0
    %v1895 = vadd.f32 %v1893, 1.0
    %v1896 = vrcp.pop %v1894
    %v1897 = vmul.f32 1.0, %v1896
    %v1898 = vrcp.pop %v1895
    %v1899 = vmul.f32 1.0, %v1898
    %v1900 = vadd.f32 %v1879, %v1012
    %v1901 = vmul.f32 %v1897, %v1900
    %v1902 = vunpack.c.l.bf16 %v1802
    %v1903 = vadd.f32 %v1902, %v1901
    %v1904 = vtanh.pop %v1903
    %v1905 = vsub.f32 %v1797, %v1904
    %v1906 = vmul.f32 %v1899, %v1905
    %v1907 = vadd.f32 %v1904, %v1906
    %v1908 = vpack.c.bf16 %v1907, %v1907
    %s1909 = scalar_lea.vmem [#allocation3], 24
    %1910 = vst [vmem:[%s1909] sm:$0xf] %v1908
    %v1911 = vld [vmem:[%s972] sm:$0xff]
    %v1912 = vld [vmem:[%s972 + $0x8] sm:$0xf]
    %1913 = vmatprep.subr.bf16.mxu0 %v1097
    %1914 = vmatpush1.bf16.msra.mxu0 %v1096
    %1915 = vmatprep.subr.bf16.mxu0 %v1100
    %1916 = vmatpush1.bf16.msra.mxu0 %v1099
    %1917 = vmatprep.subr.bf16.mxu0 %v1103
    %1918 = vmatpush1.bf16.msra.mxu0 %v1102
    %1919 = vmatprep.subr.bf16.mxu0 %v1106
    %1920 = vmatpush1.bf16.msra.mxu0 %v1105
    %1921 = vmatprep.subr.bf16.mxu0 %v1109
    %1922 = vmatpush1.bf16.msra.mxu0 %v1108
    %1923 = vmatprep.subr.bf16.mxu0 %v1112
    %1924 = vmatpush1.bf16.msra.mxu0 %v1111
    %1925 = vmatprep.subr.bf16.mxu0 %v1115
    %1926 = vmatpush1.bf16.msra.mxu0 %v1114
    %1927 = vmatprep.subr.bf16.mxu0 %v1118
    %1928 = vmatpush1.bf16.msra.mxu0 %v1117
    %1929 = vmatprep.subr.bf16.mxu0 0
    %1930 = vmatpush1.bf16.msra.mxu0 0
    %1931 = vmatprep.subr.bf16.mxu0 0
    %1932 = vmatpush1.bf16.msra.mxu0 0
    %1933 = vmatprep.subr.bf16.mxu0 0
    %1934 = vmatpush1.bf16.msra.mxu0 0
    %1935 = vmatprep.subr.bf16.mxu0 0
    %1936 = vmatpush1.bf16.msra.mxu0 0
    %1937 = vmatprep.subr.bf16.mxu0 0
    %1938 = vmatpush1.bf16.msra.mxu0 0
    %1939 = vmatprep.subr.bf16.mxu0 0
    %1940 = vmatpush1.bf16.msra.mxu0 0
    %1941 = vmatprep.subr.bf16.mxu0 0
    %1942 = vmatpush1.bf16.msra.mxu0 0
    %1943 = vmatprep.subr.bf16.mxu0 0
    %1944 = vmatpush1.bf16.msra.mxu0 0
    %1945 = vmatprep.mubr.bf16.mxu0 0
    %1946 = vmatmul.mubr.bf16.gmra.mrb[0].mxu0 %v1908
    %v1947 = vpop.f32.mrb[0].mxu0
    %v1948 = vadd.f32 0.0, %v1947
    %v1949 = vpop.f32.mrb[0].mxu0
    %v1950 = vadd.f32 0.0, %v1949
    %v1951 = vpop.f32.mrb[0].mxu0
    %v1952 = vpop.f32.mrb[0].mxu0
    %1953 = vdwg.mxu0
    %1954 = vmatprep.subr.bf16.mxu0 0
    %1955 = vmatpush1.bf16.msra.mxu0 %v1098
    %1956 = vmatprep.subr.bf16.mxu0 0
    %1957 = vmatpush1.bf16.msra.mxu0 %v1101
    %1958 = vmatprep.subr.bf16.mxu0 0
    %1959 = vmatpush1.bf16.msra.mxu0 %v1104
    %1960 = vmatprep.subr.bf16.mxu0 0
    %1961 = vmatpush1.bf16.msra.mxu0 %v1107
    %1962 = vmatprep.subr.bf16.mxu0 0
    %1963 = vmatpush1.bf16.msra.mxu0 %v1110
    %1964 = vmatprep.subr.bf16.mxu0 0
    %1965 = vmatpush1.bf16.msra.mxu0 %v1113
    %1966 = vmatprep.subr.bf16.mxu0 0
    %1967 = vmatpush1.bf16.msra.mxu0 %v1116
    %1968 = vmatprep.subr.bf16.mxu0 0
    %1969 = vmatpush1.bf16.msra.mxu0 %v1119
    %1970 = vmatprep.subr.bf16.mxu0 0
    %1971 = vmatpush1.bf16.msra.mxu0 0
    %1972 = vmatprep.subr.bf16.mxu0 0
    %1973 = vmatpush1.bf16.msra.mxu0 0
    %1974 = vmatprep.subr.bf16.mxu0 0
    %1975 = vmatpush1.bf16.msra.mxu0 0
    %1976 = vmatprep.subr.bf16.mxu0 0
    %1977 = vmatpush1.bf16.msra.mxu0 0
    %1978 = vmatprep.subr.bf16.mxu0 0
    %1979 = vmatpush1.bf16.msra.mxu0 0
    %1980 = vmatprep.subr.bf16.mxu0 0
    %1981 = vmatpush1.bf16.msra.mxu0 0
    %1982 = vmatprep.subr.bf16.mxu0 0
    %1983 = vmatpush1.bf16.msra.mxu0 0
    %1984 = vmatprep.subr.bf16.mxu0 0
    %1985 = vmatpush1.bf16.msra.mxu0 0
    %1986 = vmatprep.mubr.bf16.mxu0 0
    %1987 = vmatmul.mubr.bf16.gmra.mrb[0].mxu0 %v1908
    %v1988 = vpop.f32.mrb[0].mxu0
    %v1989 = vadd.f32 0.0, %v1988
    %v1990 = vpop.f32.mrb[0].mxu0
    %v1991 = vpop.f32.mrb[0].mxu0
    %v1992 = vpop.f32.mrb[0].mxu0
    %1993 = vdwg.mxu0
    %v1994 = vunpack.c.l.bf16 %v1911
    %v1995 = vunpack.c.h.bf16 %v1911
    %v1996 = vadd.f32 %v1994, %v1948
    %v1997 = vadd.f32 %v1995, %v1950
    %v1998 = vxor.u32 %v1996, 2147483648
    %v1999 = vxor.u32 %v1997, 2147483648
    %v2000 = vmul.f32 %v1998, 1.442695
    %v2001 = vpow.pop %v2000
    %v2002 = vmul.f32 %v1999, 1.442695
    %v2003 = vpow.pop %v2002
    %v2004 = vadd.f32 %v2001, 1.0
    %v2005 = vadd.f32 %v2003, 1.0
    %v2006 = vrcp.pop %v2004
    %v2007 = vmul.f32 1.0, %v2006
    %v2008 = vrcp.pop %v2005
    %v2009 = vmul.f32 1.0, %v2008
    %v2010 = vadd.f32 %v1989, %v1012
    %v2011 = vmul.f32 %v2007, %v2010
    %v2012 = vunpack.c.l.bf16 %v1912
    %v2013 = vadd.f32 %v2012, %v2011
    %v2014 = vtanh.pop %v2013
    %v2015 = vsub.f32 %v1907, %v2014
    %v2016 = vmul.f32 %v2009, %v2015
    %v2017 = vadd.f32 %v2014, %v2016
    %v2018 = vpack.c.bf16 %v2017, %v2017
    %s2019 = scalar_lea.vmem [#allocation3], 28
    %2020 = vst [vmem:[%s2019] sm:$0xf] %v2018
    %v2021 = vld [vmem:[#allocation8] sm:$0xff]
    %v2022 = vld [vmem:[#allocation8 + $0x8] sm:$0xf]
    %v2023 = vld [vmem:[#allocation8 + $0xc] sm:$0xff]
    %v2024 = vld [vmem:[#allocation8 + $0x14] sm:$0xf]
    %v2025 = vld [vmem:[#allocation8 + $0x18] sm:$0xff]
    %v2026 = vld [vmem:[#allocation8 + $0x20] sm:$0xf]
    %v2027 = vld [vmem:[#allocation8 + $0x24] sm:$0xff]
    %v2028 = vld [vmem:[#allocation8 + $0x2c] sm:$0xf]
    %v2029 = vld [vmem:[#allocation8 + $0x30] sm:$0xff]
    %v2030 = vld [vmem:[#allocation8 + $0x38] sm:$0xf]
    %v2031 = vld [vmem:[#allocation8 + $0x3c] sm:$0xff]
    %v2032 = vld [vmem:[#allocation8 + $0x44] sm:$0xf]
    %v2033 = vld [vmem:[#allocation8 + $0x48] sm:$0xff]
    %v2034 = vld [vmem:[#allocation8 + $0x50] sm:$0xf]
    %v2035 = vld [vmem:[#allocation8 + $0x54] sm:$0xff]
    %v2036 = vld [vmem:[#allocation8 + $0x5c] sm:$0xf]
    %v2037 = vld [vmem:[#allocation8 + $0x60] sm:$0xff]
    %v2038 = vld [vmem:[#allocation8 + $0x68] sm:$0xf]
    %v2039 = vld [vmem:[#allocation8 + $0x6c] sm:$0xff]
    %v2040 = vld [vmem:[#allocation8 + $0x74] sm:$0xf]
    %v2041 = vld [vmem:[#allocation8 + $0x78] sm:$0xff]
    %v2042 = vld [vmem:[#allocation8 + $0x80] sm:$0xf]
    %v2043 = vld [vmem:[#allocation8 + $0x84] sm:$0xff]
    %v2044 = vld [vmem:[#allocation8 + $0x8c] sm:$0xf]
    %v2045 = vld [vmem:[#allocation8 + $0x90] sm:$0xff]
    %v2046 = vld [vmem:[#allocation8 + $0x98] sm:$0xf]
    %v2047 = vld [vmem:[#allocation8 + $0x9c] sm:$0xff]
    %v2048 = vld [vmem:[#allocation8 + $0xa4] sm:$0xf]
    %v2049 = vld [vmem:[#allocation8 + $0xa8] sm:$0xff]
    %v2050 = vld [vmem:[#allocation8 + $0xb0] sm:$0xf]
    %v2051 = vld [vmem:[#allocation8 + $0xb4] sm:$0xff]
    %v2052 = vld [vmem:[#allocation8 + $0xbc] sm:$0xf]
    %v2053 = vld [vmem:[%s7] sm:$0x7]
    %v2054 = vld [vmem:[#allocation3] sm:$0xf]
    %v2056 = vlaneseq
    %v2057 = vshrl.u32 %v2056, 7
    %v2058 = vsub.s32 0, %v2057
    %v2059 = vrot.slane %v2053, %v2058
    %v2060 = vlaneseq
    %v2061 = vshrl.u32 %v2060, 7
    %v2062 = vsub.s32 1, %v2061
    %v2063 = vrot.slane %v2053, %v2062
    %v2064 = vlaneseq
    %v2065 = vshrl.u32 %v2064, 7
    %v2066 = vsub.s32 2, %v2065
    %v2067 = vrot.slane %v2053, %v2066
    %v2103 = vunpack.c.l.b16 %v2021
    %v2104 = vunpack.c.h.b16 %v2021
    %v2105 = vunpack.c.l.b16 %v2022
    %v2106 = vunpack.c.l.b16 %v2023
    %v2107 = vunpack.c.h.b16 %v2023
    %v2108 = vunpack.c.l.b16 %v2024
    %v2109 = vunpack.c.l.b16 %v2025
    %v2110 = vunpack.c.h.b16 %v2025
    %v2111 = vunpack.c.l.b16 %v2026
    %v2112 = vunpack.c.l.b16 %v2027
    %v2113 = vunpack.c.h.b16 %v2027
    %v2114 = vunpack.c.l.b16 %v2028
    %v2115 = vunpack.c.l.b16 %v2029
    %v2116 = vunpack.c.h.b16 %v2029
    %v2117 = vunpack.c.l.b16 %v2030
    %v2118 = vunpack.c.l.b16 %v2031
    %v2119 = vunpack.c.h.b16 %v2031
    %v2120 = vunpack.c.l.b16 %v2032
    %v2121 = vunpack.c.l.b16 %v2033
    %v2122 = vunpack.c.h.b16 %v2033
    %v2123 = vunpack.c.l.b16 %v2034
    %v2124 = vunpack.c.l.b16 %v2035
    %v2125 = vunpack.c.h.b16 %v2035
    %v2126 = vunpack.c.l.b16 %v2036
    %v2127 = vunpack.c.l.b16 %v2037
    %v2128 = vunpack.c.h.b16 %v2037
    %v2129 = vunpack.c.l.b16 %v2038
    %v2130 = vunpack.c.l.b16 %v2039
    %v2131 = vunpack.c.h.b16 %v2039
    %v2132 = vunpack.c.l.b16 %v2040
    %v2133 = vunpack.c.l.b16 %v2041
    %v2134 = vunpack.c.h.b16 %v2041
    %v2135 = vunpack.c.l.b16 %v2042
    %v2136 = vunpack.c.l.b16 %v2043
    %v2137 = vunpack.c.h.b16 %v2043
    %v2138 = vunpack.c.l.b16 %v2044
    %v2139 = vunpack.c.l.b16 %v2045
    %v2140 = vunpack.c.h.b16 %v2045
    %v2141 = vunpack.c.l.b16 %v2046
    %v2142 = vunpack.c.l.b16 %v2047
    %v2143 = vunpack.c.h.b16 %v2047
    %v2144 = vunpack.c.l.b16 %v2048
    %v2145 = vunpack.c.l.b16 %v2049
    %v2146 = vunpack.c.h.b16 %v2049
    %v2147 = vunpack.c.l.b16 %v2050
    %v2148 = vunpack.c.l.b16 %v2051
    %v2149 = vunpack.c.h.b16 %v2051
    %v2150 = vunpack.c.l.b16 %v2052
    %v2151 = vpack.c.b16 %v2106, %v2103
    %v2152 = vpack.c.b16 %v2107, %v2104
    %v2153 = vpack.c.b16 %v2108, %v2105
    %v2154 = vpack.c.b16 %v2112, %v2109
    %v2155 = vpack.c.b16 %v2113, %v2110
    %v2156 = vpack.c.b16 %v2114, %v2111
    %v2157 = vpack.c.b16 %v2118, %v2115
    %v2158 = vpack.c.b16 %v2119, %v2116
    %v2159 = vpack.c.b16 %v2120, %v2117
    %v2160 = vpack.c.b16 %v2124, %v2121
    %v2161 = vpack.c.b16 %v2125, %v2122
    %v2162 = vpack.c.b16 %v2126, %v2123
    %v2163 = vpack.c.b16 %v2130, %v2127
    %v2164 = vpack.c.b16 %v2131, %v2128
    %v2165 = vpack.c.b16 %v2132, %v2129
    %v2166 = vpack.c.b16 %v2136, %v2133
    %v2167 = vpack.c.b16 %v2137, %v2134
    %v2168 = vpack.c.b16 %v2138, %v2135
    %v2169 = vpack.c.b16 %v2142, %v2139
    %v2170 = vpack.c.b16 %v2143, %v2140
    %v2171 = vpack.c.b16 %v2144, %v2141
    %v2172 = vpack.c.b16 %v2148, %v2145
    %v2173 = vpack.c.b16 %v2149, %v2146
    %v2174 = vpack.c.b16 %v2150, %v2147
    %2199 = vmatprep.subr.bf16.mxu0 %v2152
    %2200 = vmatpush1.bf16.msra.mxu0 %v2151
    %2201 = vmatprep.subr.bf16.mxu0 %v2155
    %2202 = vmatpush1.bf16.msra.mxu0 %v2154
    %2203 = vmatprep.subr.bf16.mxu0 %v2158
    %2204 = vmatpush1.bf16.msra.mxu0 %v2157
    %2205 = vmatprep.subr.bf16.mxu0 %v2161
    %2206 = vmatpush1.bf16.msra.mxu0 %v2160
    %2207 = vmatprep.subr.bf16.mxu0 %v2164
    %2208 = vmatpush1.bf16.msra.mxu0 %v2163
    %2209 = vmatprep.subr.bf16.mxu0 %v2167
    %2210 = vmatpush1.bf16.msra.mxu0 %v2166
    %2211 = vmatprep.subr.bf16.mxu0 %v2170
    %2212 = vmatpush1.bf16.msra.mxu0 %v2169
    %2213 = vmatprep.subr.bf16.mxu0 %v2173
    %2214 = vmatpush1.bf16.msra.mxu0 %v2172
    %2215 = vmatprep.subr.bf16.mxu0 0
    %2216 = vmatpush1.bf16.msra.mxu0 0
    %2217 = vmatprep.subr.bf16.mxu0 0
    %2218 = vmatpush1.bf16.msra.mxu0 0
    %2219 = vmatprep.subr.bf16.mxu0 0
    %2220 = vmatpush1.bf16.msra.mxu0 0
    %2221 = vmatprep.subr.bf16.mxu0 0
    %2222 = vmatpush1.bf16.msra.mxu0 0
    %2223 = vmatprep.subr.bf16.mxu0 0
    %2224 = vmatpush1.bf16.msra.mxu0 0
    %2225 = vmatprep.subr.bf16.mxu0 0
    %2226 = vmatpush1.bf16.msra.mxu0 0
    %2227 = vmatprep.subr.bf16.mxu0 0
    %2228 = vmatpush1.bf16.msra.mxu0 0
    %2229 = vmatprep.subr.bf16.mxu0 0
    %2230 = vmatpush1.bf16.msra.mxu0 0
    %2231 = vmatprep.mubr.bf16.mxu0 0
    %2232 = vmatmul.mubr.bf16.gmra.mrb[0].mxu0 %v2054
    %v2233 = vpop.f32.mrb[0].mxu0
    %v2234 = vadd.f32 %v2059, %v2233
    %v2235 = vpop.f32.mrb[0].mxu0
    %v2236 = vadd.f32 %v2063, %v2235
    %v2237 = vpop.f32.mrb[0].mxu0
    %v2238 = vpop.f32.mrb[0].mxu0
    %2239 = vdwg.mxu0
    %2240 = vmatprep.subr.bf16.mxu0 0
    %2241 = vmatpush1.bf16.msra.mxu0 %v2153
    %2242 = vmatprep.subr.bf16.mxu0 0
    %2243 = vmatpush1.bf16.msra.mxu0 %v2156
    %2244 = vmatprep.subr.bf16.mxu0 0
    %2245 = vmatpush1.bf16.msra.mxu0 %v2159
    %2246 = vmatprep.subr.bf16.mxu0 0
    %2247 = vmatpush1.bf16.msra.mxu0 %v2162
    %2248 = vmatprep.subr.bf16.mxu0 0
    %2249 = vmatpush1.bf16.msra.mxu0 %v2165
    %2250 = vmatprep.subr.bf16.mxu0 0
    %2251 = vmatpush1.bf16.msra.mxu0 %v2168
    %2252 = vmatprep.subr.bf16.mxu0 0
    %2253 = vmatpush1.bf16.msra.mxu0 %v2171
    %2254 = vmatprep.subr.bf16.mxu0 0
    %2255 = vmatpush1.bf16.msra.mxu0 %v2174
    %2256 = vmatprep.subr.bf16.mxu0 0
    %2257 = vmatpush1.bf16.msra.mxu0 0
    %2258 = vmatprep.subr.bf16.mxu0 0
    %2259 = vmatpush1.bf16.msra.mxu0 0
    %2260 = vmatprep.subr.bf16.mxu0 0
    %2261 = vmatpush1.bf16.msra.mxu0 0
    %2262 = vmatprep.subr.bf16.mxu0 0
    %2263 = vmatpush1.bf16.msra.mxu0 0
    %2264 = vmatprep.subr.bf16.mxu0 0
    %2265 = vmatpush1.bf16.msra.mxu0 0
    %2266 = vmatprep.subr.bf16.mxu0 0
    %2267 = vmatpush1.bf16.msra.mxu0 0
    %2268 = vmatprep.subr.bf16.mxu0 0
    %2269 = vmatpush1.bf16.msra.mxu0 0
    %2270 = vmatprep.subr.bf16.mxu0 0
    %2271 = vmatpush1.bf16.msra.mxu0 0
    %2272 = vmatprep.mubr.bf16.mxu0 0
    %2273 = vmatmul.mubr.bf16.gmra.mrb[0].mxu0 %v2054
    %v2274 = vpop.f32.mrb[0].mxu0
    %v2275 = vadd.f32 %v2067, %v2274
    %v2276 = vpop.f32.mrb[0].mxu0
    %v2277 = vpop.f32.mrb[0].mxu0
    %v2278 = vpop.f32.mrb[0].mxu0
    %2279 = vdwg.mxu0
    %v2280 = vpack.c.bf16 %v2234, %v2234
    %v2281 = vpack.c.bf16 %v2236, %v2236
    %v2282 = vpack.c.bf16 %v2275, %v2275
    %v2286 = vunpack.c.l.b16 %v2280
    %v2287 = vunpack.c.l.b16 %v2281
    %v2288 = vunpack.c.l.b16 %v2282
    %v2289 = vpack.c.b16 %v2287, %v2286
    %v2290 = vpack.c.b16 %v2288, %v2288
    %2293 = vst [vmem:[#allocation2] sm:$0xff] %v2289
    %2294 = vst [vmem:[#allocation2 + $0x8] sm:$0xf] %v2290
    %v2295 = vld [vmem:[%s1359] sm:$0xf]
    %2296 = vmatprep.subr.bf16.mxu0 %v2152
    %2297 = vmatpush1.bf16.msra.mxu0 %v2151
    %2298 = vmatprep.subr.bf16.mxu0 %v2155
    %2299 = vmatpush1.bf16.msra.mxu0 %v2154
    %2300 = vmatprep.subr.bf16.mxu0 %v2158
    %2301 = vmatpush1.bf16.msra.mxu0 %v2157
    %2302 = vmatprep.subr.bf16.mxu0 %v2161
    %2303 = vmatpush1.bf16.msra.mxu0 %v2160
    %2304 = vmatprep.subr.bf16.mxu0 %v2164
    %2305 = vmatpush1.bf16.msra.mxu0 %v2163
    %2306 = vmatprep.subr.bf16.mxu0 %v2167
    %2307 = vmatpush1.bf16.msra.mxu0 %v2166
    %2308 = vmatprep.subr.bf16.mxu0 %v2170
    %2309 = vmatpush1.bf16.msra.mxu0 %v2169
    %2310 = vmatprep.subr.bf16.mxu0 %v2173
    %2311 = vmatpush1.bf16.msra.mxu0 %v2172
    %2312 = vmatprep.subr.bf16.mxu0 0
    %2313 = vmatpush1.bf16.msra.mxu0 0
    %2314 = vmatprep.subr.bf16.mxu0 0
    %2315 = vmatpush1.bf16.msra.mxu0 0
    %2316 = vmatprep.subr.bf16.mxu0 0
    %2317 = vmatpush1.bf16.msra.mxu0 0
    %2318 = vmatprep.subr.bf16.mxu0 0
    %2319 = vmatpush1.bf16.msra.mxu0 0
    %2320 = vmatprep.subr.bf16.mxu0 0
    %2321 = vmatpush1.bf16.msra.mxu0 0
    %2322 = vmatprep.subr.bf16.mxu0 0
    %2323 = vmatpush1.bf16.msra.mxu0 0
    %2324 = vmatprep.subr.bf16.mxu0 0
    %2325 = vmatpush1.bf16.msra.mxu0 0
    %2326 = vmatprep.subr.bf16.mxu0 0
    %2327 = vmatpush1.bf16.msra.mxu0 0
    %2328 = vmatprep.mubr.bf16.mxu0 0
    %2329 = vmatmul.mubr.bf16.gmra.mrb[0].mxu0 %v2295
    %v2330 = vpop.f32.mrb[0].mxu0
    %v2331 = vadd.f32 %v2059, %v2330
    %v2332 = vpop.f32.mrb[0].mxu0
    %v2333 = vadd.f32 %v2063, %v2332
    %v2334 = vpop.f32.mrb[0].mxu0
    %v2335 = vpop.f32.mrb[0].mxu0
    %2336 = vdwg.mxu0
    %2337 = vmatprep.subr.bf16.mxu0 0
    %2338 = vmatpush1.bf16.msra.mxu0 %v2153
    %2339 = vmatprep.subr.bf16.mxu0 0
    %2340 = vmatpush1.bf16.msra.mxu0 %v2156
    %2341 = vmatprep.subr.bf16.mxu0 0
    %2342 = vmatpush1.bf16.msra.mxu0 %v2159
    %2343 = vmatprep.subr.bf16.mxu0 0
    %2344 = vmatpush1.bf16.msra.mxu0 %v2162
    %2345 = vmatprep.subr.bf16.mxu0 0
    %2346 = vmatpush1.bf16.msra.mxu0 %v2165
    %2347 = vmatprep.subr.bf16.mxu0 0
    %2348 = vmatpush1.bf16.msra.mxu0 %v2168
    %2349 = vmatprep.subr.bf16.mxu0 0
    %2350 = vmatpush1.bf16.msra.mxu0 %v2171
    %2351 = vmatprep.subr.bf16.mxu0 0
    %2352 = vmatpush1.bf16.msra.mxu0 %v2174
    %2353 = vmatprep.subr.bf16.mxu0 0
    %2354 = vmatpush1.bf16.msra.mxu0 0
    %2355 = vmatprep.subr.bf16.mxu0 0
    %2356 = vmatpush1.bf16.msra.mxu0 0
    %2357 = vmatprep.subr.bf16.mxu0 0
    %2358 = vmatpush1.bf16.msra.mxu0 0
    %2359 = vmatprep.subr.bf16.mxu0 0
    %2360 = vmatpush1.bf16.msra.mxu0 0
    %2361 = vmatprep.subr.bf16.mxu0 0
    %2362 = vmatpush1.bf16.msra.mxu0 0
    %2363 = vmatprep.subr.bf16.mxu0 0
    %2364 = vmatpush1.bf16.msra.mxu0 0
    %2365 = vmatprep.subr.bf16.mxu0 0
    %2366 = vmatpush1.bf16.msra.mxu0 0
    %2367 = vmatprep.subr.bf16.mxu0 0
    %2368 = vmatpush1.bf16.msra.mxu0 0
    %2369 = vmatprep.mubr.bf16.mxu0 0
    %2370 = vmatmul.mubr.bf16.gmra.mrb[0].mxu0 %v2295
    %v2371 = vpop.f32.mrb[0].mxu0
    %v2372 = vadd.f32 %v2067, %v2371
    %v2373 = vpop.f32.mrb[0].mxu0
    %v2374 = vpop.f32.mrb[0].mxu0
    %v2375 = vpop.f32.mrb[0].mxu0
    %2376 = vdwg.mxu0
    %v2377 = vpack.c.bf16 %v2331, %v2331
    %v2378 = vpack.c.bf16 %v2333, %v2333
    %v2379 = vpack.c.bf16 %v2372, %v2372
    %v2383 = vunpack.c.l.b16 %v2377
    %v2384 = vunpack.c.l.b16 %v2378
    %v2385 = vunpack.c.l.b16 %v2379
    %v2386 = vpack.c.b16 %v2384, %v2383
    %v2387 = vpack.c.b16 %v2385, %v2385
    %2390 = vst [vmem:[%s360] sm:$0xff] %v2386
    %2391 = vst [vmem:[%s360 + $0x8] sm:$0xf] %v2387
    %v2392 = vld [vmem:[%s1469] sm:$0xf]
    %2393 = vmatprep.subr.bf16.mxu0 %v2152
    %2394 = vmatpush1.bf16.msra.mxu0 %v2151
    %2395 = vmatprep.subr.bf16.mxu0 %v2155
    %2396 = vmatpush1.bf16.msra.mxu0 %v2154
    %2397 = vmatprep.subr.bf16.mxu0 %v2158
    %2398 = vmatpush1.bf16.msra.mxu0 %v2157
    %2399 = vmatprep.subr.bf16.mxu0 %v2161
    %2400 = vmatpush1.bf16.msra.mxu0 %v2160
    %2401 = vmatprep.subr.bf16.mxu0 %v2164
    %2402 = vmatpush1.bf16.msra.mxu0 %v2163
    %2403 = vmatprep.subr.bf16.mxu0 %v2167
    %2404 = vmatpush1.bf16.msra.mxu0 %v2166
    %2405 = vmatprep.subr.bf16.mxu0 %v2170
    %2406 = vmatpush1.bf16.msra.mxu0 %v2169
    %2407 = vmatprep.subr.bf16.mxu0 %v2173
    %2408 = vmatpush1.bf16.msra.mxu0 %v2172
    %2409 = vmatprep.subr.bf16.mxu0 0
    %2410 = vmatpush1.bf16.msra.mxu0 0
    %2411 = vmatprep.subr.bf16.mxu0 0
    %2412 = vmatpush1.bf16.msra.mxu0 0
    %2413 = vmatprep.subr.bf16.mxu0 0
    %2414 = vmatpush1.bf16.msra.mxu0 0
    %2415 = vmatprep.subr.bf16.mxu0 0
    %2416 = vmatpush1.bf16.msra.mxu0 0
    %2417 = vmatprep.subr.bf16.mxu0 0
    %2418 = vmatpush1.bf16.msra.mxu0 0
    %2419 = vmatprep.subr.bf16.mxu0 0
    %2420 = vmatpush1.bf16.msra.mxu0 0
    %2421 = vmatprep.subr.bf16.mxu0 0
    %2422 = vmatpush1.bf16.msra.mxu0 0
    %2423 = vmatprep.subr.bf16.mxu0 0
    %2424 = vmatpush1.bf16.msra.mxu0 0
    %2425 = vmatprep.mubr.bf16.mxu0 0
    %2426 = vmatmul.mubr.bf16.gmra.mrb[0].mxu0 %v2392
    %v2427 = vpop.f32.mrb[0].mxu0
    %v2428 = vadd.f32 %v2059, %v2427
    %v2429 = vpop.f32.mrb[0].mxu0
    %v2430 = vadd.f32 %v2063, %v2429
    %v2431 = vpop.f32.mrb[0].mxu0
    %v2432 = vpop.f32.mrb[0].mxu0
    %2433 = vdwg.mxu0
    %2434 = vmatprep.subr.bf16.mxu0 0
    %2435 = vmatpush1.bf16.msra.mxu0 %v2153
    %2436 = vmatprep.subr.bf16.mxu0 0
    %2437 = vmatpush1.bf16.msra.mxu0 %v2156
    %2438 = vmatprep.subr.bf16.mxu0 0
    %2439 = vmatpush1.bf16.msra.mxu0 %v2159
    %2440 = vmatprep.subr.bf16.mxu0 0
    %2441 = vmatpush1.bf16.msra.mxu0 %v2162
    %2442 = vmatprep.subr.bf16.mxu0 0
    %2443 = vmatpush1.bf16.msra.mxu0 %v2165
    %2444 = vmatprep.subr.bf16.mxu0 0
    %2445 = vmatpush1.bf16.msra.mxu0 %v2168
    %2446 = vmatprep.subr.bf16.mxu0 0
    %2447 = vmatpush1.bf16.msra.mxu0 %v2171
    %2448 = vmatprep.subr.bf16.mxu0 0
    %2449 = vmatpush1.bf16.msra.mxu0 %v2174
    %2450 = vmatprep.subr.bf16.mxu0 0
    %2451 = vmatpush1.bf16.msra.mxu0 0
    %2452 = vmatprep.subr.bf16.mxu0 0
    %2453 = vmatpush1.bf16.msra.mxu0 0
    %2454 = vmatprep.subr.bf16.mxu0 0
    %2455 = vmatpush1.bf16.msra.mxu0 0
    %2456 = vmatprep.subr.bf16.mxu0 0
    %2457 = vmatpush1.bf16.msra.mxu0 0
    %2458 = vmatprep.subr.bf16.mxu0 0
    %2459 = vmatpush1.bf16.msra.mxu0 0
    %2460 = vmatprep.subr.bf16.mxu0 0
    %2461 = vmatpush1.bf16.msra.mxu0 0
    %2462 = vmatprep.subr.bf16.mxu0 0
    %2463 = vmatpush1.bf16.msra.mxu0 0
    %2464 = vmatprep.subr.bf16.mxu0 0
    %2465 = vmatpush1.bf16.msra.mxu0 0
    %2466 = vmatprep.mubr.bf16.mxu0 0
    %2467 = vmatmul.mubr.bf16.gmra.mrb[0].mxu0 %v2392
    %v2468 = vpop.f32.mrb[0].mxu0
    %v2469 = vadd.f32 %v2067, %v2468
    %v2470 = vpop.f32.mrb[0].mxu0
    %v2471 = vpop.f32.mrb[0].mxu0
    %v2472 = vpop.f32.mrb[0].mxu0
    %2473 = vdwg.mxu0
    %v2474 = vpack.c.bf16 %v2428, %v2428
    %v2475 = vpack.c.bf16 %v2430, %v2430
    %v2476 = vpack.c.bf16 %v2469, %v2469
    %v2480 = vunpack.c.l.b16 %v2474
    %v2481 = vunpack.c.l.b16 %v2475
    %v2482 = vunpack.c.l.b16 %v2476
    %v2483 = vpack.c.b16 %v2481, %v2480
    %v2484 = vpack.c.b16 %v2482, %v2482
    %2487 = vst [vmem:[%s462] sm:$0xff] %v2483
    %2488 = vst [vmem:[%s462 + $0x8] sm:$0xf] %v2484
    %v2489 = vld [vmem:[%s1579] sm:$0xf]
    %2490 = vmatprep.subr.bf16.mxu0 %v2152
    %2491 = vmatpush1.bf16.msra.mxu0 %v2151
    %2492 = vmatprep.subr.bf16.mxu0 %v2155
    %2493 = vmatpush1.bf16.msra.mxu0 %v2154
    %2494 = vmatprep.subr.bf16.mxu0 %v2158
    %2495 = vmatpush1.bf16.msra.mxu0 %v2157
    %2496 = vmatprep.subr.bf16.mxu0 %v2161
    %2497 = vmatpush1.bf16.msra.mxu0 %v2160
    %2498 = vmatprep.subr.bf16.mxu0 %v2164
    %2499 = vmatpush1.bf16.msra.mxu0 %v2163
    %2500 = vmatprep.subr.bf16.mxu0 %v2167
    %2501 = vmatpush1.bf16.msra.mxu0 %v2166
    %2502 = vmatprep.subr.bf16.mxu0 %v2170
    %2503 = vmatpush1.bf16.msra.mxu0 %v2169
    %2504 = vmatprep.subr.bf16.mxu0 %v2173
    %2505 = vmatpush1.bf16.msra.mxu0 %v2172
    %2506 = vmatprep.subr.bf16.mxu0 0
    %2507 = vmatpush1.bf16.msra.mxu0 0
    %2508 = vmatprep.subr.bf16.mxu0 0
    %2509 = vmatpush1.bf16.msra.mxu0 0
    %2510 = vmatprep.subr.bf16.mxu0 0
    %2511 = vmatpush1.bf16.msra.mxu0 0
    %2512 = vmatprep.subr.bf16.mxu0 0
    %2513 = vmatpush1.bf16.msra.mxu0 0
    %2514 = vmatprep.subr.bf16.mxu0 0
    %2515 = vmatpush1.bf16.msra.mxu0 0
    %2516 = vmatprep.subr.bf16.mxu0 0
    %2517 = vmatpush1.bf16.msra.mxu0 0
    %2518 = vmatprep.subr.bf16.mxu0 0
    %2519 = vmatpush1.bf16.msra.mxu0 0
    %2520 = vmatprep.subr.bf16.mxu0 0
    %2521 = vmatpush1.bf16.msra.mxu0 0
    %2522 = vmatprep.mubr.bf16.mxu0 0
    %2523 = vmatmul.mubr.bf16.gmra.mrb[0].mxu0 %v2489
    %v2524 = vpop.f32.mrb[0].mxu0
    %v2525 = vadd.f32 %v2059, %v2524
    %v2526 = vpop.f32.mrb[0].mxu0
    %v2527 = vadd.f32 %v2063, %v2526
    %v2528 = vpop.f32.mrb[0].mxu0
    %v2529 = vpop.f32.mrb[0].mxu0
    %2530 = vdwg.mxu0
    %2531 = vmatprep.subr.bf16.mxu0 0
    %2532 = vmatpush1.bf16.msra.mxu0 %v2153
    %2533 = vmatprep.subr.bf16.mxu0 0
    %2534 = vmatpush1.bf16.msra.mxu0 %v2156
    %2535 = vmatprep.subr.bf16.mxu0 0
    %2536 = vmatpush1.bf16.msra.mxu0 %v2159
    %2537 = vmatprep.subr.bf16.mxu0 0
    %2538 = vmatpush1.bf16.msra.mxu0 %v2162
    %2539 = vmatprep.subr.bf16.mxu0 0
    %2540 = vmatpush1.bf16.msra.mxu0 %v2165
    %2541 = vmatprep.subr.bf16.mxu0 0
    %2542 = vmatpush1.bf16.msra.mxu0 %v2168
    %2543 = vmatprep.subr.bf16.mxu0 0
    %2544 = vmatpush1.bf16.msra.mxu0 %v2171
    %2545 = vmatprep.subr.bf16.mxu0 0
    %2546 = vmatpush1.bf16.msra.mxu0 %v2174
    %2547 = vmatprep.subr.bf16.mxu0 0
    %2548 = vmatpush1.bf16.msra.mxu0 0
    %2549 = vmatprep.subr.bf16.mxu0 0
    %2550 = vmatpush1.bf16.msra.mxu0 0
    %2551 = vmatprep.subr.bf16.mxu0 0
    %2552 = vmatpush1.bf16.msra.mxu0 0
    %2553 = vmatprep.subr.bf16.mxu0 0
    %2554 = vmatpush1.bf16.msra.mxu0 0
    %2555 = vmatprep.subr.bf16.mxu0 0
    %2556 = vmatpush1.bf16.msra.mxu0 0
    %2557 = vmatprep.subr.bf16.mxu0 0
    %2558 = vmatpush1.bf16.msra.mxu0 0
    %2559 = vmatprep.subr.bf16.mxu0 0
    %2560 = vmatpush1.bf16.msra.mxu0 0
    %2561 = vmatprep.subr.bf16.mxu0 0
    %2562 = vmatpush1.bf16.msra.mxu0 0
    %2563 = vmatprep.mubr.bf16.mxu0 0
    %2564 = vmatmul.mubr.bf16.gmra.mrb[0].mxu0 %v2489
    %v2565 = vpop.f32.mrb[0].mxu0
    %v2566 = vadd.f32 %v2067, %v2565
    %v2567 = vpop.f32.mrb[0].mxu0
    %v2568 = vpop.f32.mrb[0].mxu0
    %v2569 = vpop.f32.mrb[0].mxu0
    %2570 = vdwg.mxu0
    %v2571 = vpack.c.bf16 %v2525, %v2525
    %v2572 = vpack.c.bf16 %v2527, %v2527
    %v2573 = vpack.c.bf16 %v2566, %v2566
    %v2577 = vunpack.c.l.b16 %v2571
    %v2578 = vunpack.c.l.b16 %v2572
    %v2579 = vunpack.c.l.b16 %v2573
    %v2580 = vpack.c.b16 %v2578, %v2577
    %v2581 = vpack.c.b16 %v2579, %v2579
    %2584 = vst [vmem:[%s564] sm:$0xff] %v2580
    %2585 = vst [vmem:[%s564 + $0x8] sm:$0xf] %v2581
    %v2586 = vld [vmem:[%s1689] sm:$0xf]
    %2587 = vmatprep.subr.bf16.mxu0 %v2152
    %2588 = vmatpush1.bf16.msra.mxu0 %v2151
    %2589 = vmatprep.subr.bf16.mxu0 %v2155
    %2590 = vmatpush1.bf16.msra.mxu0 %v2154
    %2591 = vmatprep.subr.bf16.mxu0 %v2158
    %2592 = vmatpush1.bf16.msra.mxu0 %v2157
    %2593 = vmatprep.subr.bf16.mxu0 %v2161
    %2594 = vmatpush1.bf16.msra.mxu0 %v2160
    %2595 = vmatprep.subr.bf16.mxu0 %v2164
    %2596 = vmatpush1.bf16.msra.mxu0 %v2163
    %2597 = vmatprep.subr.bf16.mxu0 %v2167
    %2598 = vmatpush1.bf16.msra.mxu0 %v2166
    %2599 = vmatprep.subr.bf16.mxu0 %v2170
    %2600 = vmatpush1.bf16.msra.mxu0 %v2169
    %2601 = vmatprep.subr.bf16.mxu0 %v2173
    %2602 = vmatpush1.bf16.msra.mxu0 %v2172
    %2603 = vmatprep.subr.bf16.mxu0 0
    %2604 = vmatpush1.bf16.msra.mxu0 0
    %2605 = vmatprep.subr.bf16.mxu0 0
    %2606 = vmatpush1.bf16.msra.mxu0 0
    %2607 = vmatprep.subr.bf16.mxu0 0
    %2608 = vmatpush1.bf16.msra.mxu0 0
    %2609 = vmatprep.subr.bf16.mxu0 0
    %2610 = vmatpush1.bf16.msra.mxu0 0
    %2611 = vmatprep.subr.bf16.mxu0 0
    %2612 = vmatpush1.bf16.msra.mxu0 0
    %2613 = vmatprep.subr.bf16.mxu0 0
    %2614 = vmatpush1.bf16.msra.mxu0 0
    %2615 = vmatprep.subr.bf16.mxu0 0
    %2616 = vmatpush1.bf16.msra.mxu0 0
    %2617 = vmatprep.subr.bf16.mxu0 0
    %2618 = vmatpush1.bf16.msra.mxu0 0
    %2619 = vmatprep.mubr.bf16.mxu0 0
    %2620 = vmatmul.mubr.bf16.gmra.mrb[0].mxu0 %v2586
    %v2621 = vpop.f32.mrb[0].mxu0
    %v2622 = vadd.f32 %v2059, %v2621
    %v2623 = vpop.f32.mrb[0].mxu0
    %v2624 = vadd.f32 %v2063, %v2623
    %v2625 = vpop.f32.mrb[0].mxu0
    %v2626 = vpop.f32.mrb[0].mxu0
    %2627 = vdwg.mxu0
    %2628 = vmatprep.subr.bf16.mxu0 0
    %2629 = vmatpush1.bf16.msra.mxu0 %v2153
    %2630 = vmatprep.subr.bf16.mxu0 0
    %2631 = vmatpush1.bf16.msra.mxu0 %v2156
    %2632 = vmatprep.subr.bf16.mxu0 0
    %2633 = vmatpush1.bf16.msra.mxu0 %v2159
    %2634 = vmatprep.subr.bf16.mxu0 0
    %2635 = vmatpush1.bf16.msra.mxu0 %v2162
    %2636 = vmatprep.subr.bf16.mxu0 0
    %2637 = vmatpush1.bf16.msra.mxu0 %v2165
    %2638 = vmatprep.subr.bf16.mxu0 0
    %2639 = vmatpush1.bf16.msra.mxu0 %v2168
    %2640 = vmatprep.subr.bf16.mxu0 0
    %2641 = vmatpush1.bf16.msra.mxu0 %v2171
    %2642 = vmatprep.subr.bf16.mxu0 0
    %2643 = vmatpush1.bf16.msra.mxu0 %v2174
    %2644 = vmatprep.subr.bf16.mxu0 0
    %2645 = vmatpush1.bf16.msra.mxu0 0
    %2646 = vmatprep.subr.bf16.mxu0 0
    %2647 = vmatpush1.bf16.msra.mxu0 0
    %2648 = vmatprep.subr.bf16.mxu0 0
    %2649 = vmatpush1.bf16.msra.mxu0 0
    %2650 = vmatprep.subr.bf16.mxu0 0
    %2651 = vmatpush1.bf16.msra.mxu0 0
    %2652 = vmatprep.subr.bf16.mxu0 0
    %2653 = vmatpush1.bf16.msra.mxu0 0
    %2654 = vmatprep.subr.bf16.mxu0 0
    %2655 = vmatpush1.bf16.msra.mxu0 0
    %2656 = vmatprep.subr.bf16.mxu0 0
    %2657 = vmatpush1.bf16.msra.mxu0 0
    %2658 = vmatprep.subr.bf16.mxu0 0
    %2659 = vmatpush1.bf16.msra.mxu0 0
    %2660 = vmatprep.mubr.bf16.mxu0 0
    %2661 = vmatmul.mubr.bf16.gmra.mrb[0].mxu0 %v2586
    %v2662 = vpop.f32.mrb[0].mxu0
    %v2663 = vadd.f32 %v2067, %v2662
    %v2664 = vpop.f32.mrb[0].mxu0
    %v2665 = vpop.f32.mrb[0].mxu0
    %v2666 = vpop.f32.mrb[0].mxu0
    %2667 = vdwg.mxu0
    %v2668 = vpack.c.bf16 %v2622, %v2622
    %v2669 = vpack.c.bf16 %v2624, %v2624
    %v2670 = vpack.c.bf16 %v2663, %v2663
    %v2674 = vunpack.c.l.b16 %v2668
    %v2675 = vunpack.c.l.b16 %v2669
    %v2676 = vunpack.c.l.b16 %v2670
    %v2677 = vpack.c.b16 %v2675, %v2674
    %v2678 = vpack.c.b16 %v2676, %v2676
    %2681 = vst [vmem:[%s666] sm:$0xff] %v2677
    %2682 = vst [vmem:[%s666 + $0x8] sm:$0xf] %v2678
    %v2683 = vld [vmem:[%s1799] sm:$0xf]
    %2684 = vmatprep.subr.bf16.mxu0 %v2152
    %2685 = vmatpush1.bf16.msra.mxu0 %v2151
    %2686 = vmatprep.subr.bf16.mxu0 %v2155
    %2687 = vmatpush1.bf16.msra.mxu0 %v2154
    %2688 = vmatprep.subr.bf16.mxu0 %v2158
    %2689 = vmatpush1.bf16.msra.mxu0 %v2157
    %2690 = vmatprep.subr.bf16.mxu0 %v2161
    %2691 = vmatpush1.bf16.msra.mxu0 %v2160
    %2692 = vmatprep.subr.bf16.mxu0 %v2164
    %2693 = vmatpush1.bf16.msra.mxu0 %v2163
    %2694 = vmatprep.subr.bf16.mxu0 %v2167
    %2695 = vmatpush1.bf16.msra.mxu0 %v2166
    %2696 = vmatprep.subr.bf16.mxu0 %v2170
    %2697 = vmatpush1.bf16.msra.mxu0 %v2169
    %2698 = vmatprep.subr.bf16.mxu0 %v2173
    %2699 = vmatpush1.bf16.msra.mxu0 %v2172
    %2700 = vmatprep.subr.bf16.mxu0 0
    %2701 = vmatpush1.bf16.msra.mxu0 0
    %2702 = vmatprep.subr.bf16.mxu0 0
    %2703 = vmatpush1.bf16.msra.mxu0 0
    %2704 = vmatprep.subr.bf16.mxu0 0
    %2705 = vmatpush1.bf16.msra.mxu0 0
    %2706 = vmatprep.subr.bf16.mxu0 0
    %2707 = vmatpush1.bf16.msra.mxu0 0
    %2708 = vmatprep.subr.bf16.mxu0 0
    %2709 = vmatpush1.bf16.msra.mxu0 0
    %2710 = vmatprep.subr.bf16.mxu0 0
    %2711 = vmatpush1.bf16.msra.mxu0 0
    %2712 = vmatprep.subr.bf16.mxu0 0
    %2713 = vmatpush1.bf16.msra.mxu0 0
    %2714 = vmatprep.subr.bf16.mxu0 0
    %2715 = vmatpush1.bf16.msra.mxu0 0
    %2716 = vmatprep.mubr.bf16.mxu0 0
    %2717 = vmatmul.mubr.bf16.gmra.mrb[0].mxu0 %v2683
    %v2718 = vpop.f32.mrb[0].mxu0
    %v2719 = vadd.f32 %v2059, %v2718
    %v2720 = vpop.f32.mrb[0].mxu0
    %v2721 = vadd.f32 %v2063, %v2720
    %v2722 = vpop.f32.mrb[0].mxu0
    %v2723 = vpop.f32.mrb[0].mxu0
    %2724 = vdwg.mxu0
    %2725 = vmatprep.subr.bf16.mxu0 0
    %2726 = vmatpush1.bf16.msra.mxu0 %v2153
    %2727 = vmatprep.subr.bf16.mxu0 0
    %2728 = vmatpush1.bf16.msra.mxu0 %v2156
    %2729 = vmatprep.subr.bf16.mxu0 0
    %2730 = vmatpush1.bf16.msra.mxu0 %v2159
    %2731 = vmatprep.subr.bf16.mxu0 0
    %2732 = vmatpush1.bf16.msra.mxu0 %v2162
    %2733 = vmatprep.subr.bf16.mxu0 0
    %2734 = vmatpush1.bf16.msra.mxu0 %v2165
    %2735 = vmatprep.subr.bf16.mxu0 0
    %2736 = vmatpush1.bf16.msra.mxu0 %v2168
    %2737 = vmatprep.subr.bf16.mxu0 0
    %2738 = vmatpush1.bf16.msra.mxu0 %v2171
    %2739 = vmatprep.subr.bf16.mxu0 0
    %2740 = vmatpush1.bf16.msra.mxu0 %v2174
    %2741 = vmatprep.subr.bf16.mxu0 0
    %2742 = vmatpush1.bf16.msra.mxu0 0
    %2743 = vmatprep.subr.bf16.mxu0 0
    %2744 = vmatpush1.bf16.msra.mxu0 0
    %2745 = vmatprep.subr.bf16.mxu0 0
    %2746 = vmatpush1.bf16.msra.mxu0 0
    %2747 = vmatprep.subr.bf16.mxu0 0
    %2748 = vmatpush1.bf16.msra.mxu0 0
    %2749 = vmatprep.subr.bf16.mxu0 0
    %2750 = vmatpush1.bf16.msra.mxu0 0
    %2751 = vmatprep.subr.bf16.mxu0 0
    %2752 = vmatpush1.bf16.msra.mxu0 0
    %2753 = vmatprep.subr.bf16.mxu0 0
    %2754 = vmatpush1.bf16.msra.mxu0 0
    %2755 = vmatprep.subr.bf16.mxu0 0
    %2756 = vmatpush1.bf16.msra.mxu0 0
    %2757 = vmatprep.mubr.bf16.mxu0 0
    %2758 = vmatmul.mubr.bf16.gmra.mrb[0].mxu0 %v2683
    %v2759 = vpop.f32.mrb[0].mxu0
    %v2760 = vadd.f32 %v2067, %v2759
    %v2761 = vpop.f32.mrb[0].mxu0
    %v2762 = vpop.f32.mrb[0].mxu0
    %v2763 = vpop.f32.mrb[0].mxu0
    %2764 = vdwg.mxu0
    %v2765 = vpack.c.bf16 %v2719, %v2719
    %v2766 = vpack.c.bf16 %v2721, %v2721
    %v2767 = vpack.c.bf16 %v2760, %v2760
    %v2771 = vunpack.c.l.b16 %v2765
    %v2772 = vunpack.c.l.b16 %v2766
    %v2773 = vunpack.c.l.b16 %v2767
    %v2774 = vpack.c.b16 %v2772, %v2771
    %v2775 = vpack.c.b16 %v2773, %v2773
    %2778 = vst [vmem:[%s768] sm:$0xff] %v2774
    %2779 = vst [vmem:[%s768 + $0x8] sm:$0xf] %v2775
    %v2780 = vld [vmem:[%s1909] sm:$0xf]
    %2781 = vmatprep.subr.bf16.mxu0 %v2152
    %2782 = vmatpush1.bf16.msra.mxu0 %v2151
    %2783 = vmatprep.subr.bf16.mxu0 %v2155
    %2784 = vmatpush1.bf16.msra.mxu0 %v2154
    %2785 = vmatprep.subr.bf16.mxu0 %v2158
    %2786 = vmatpush1.bf16.msra.mxu0 %v2157
    %2787 = vmatprep.subr.bf16.mxu0 %v2161
    %2788 = vmatpush1.bf16.msra.mxu0 %v2160
    %2789 = vmatprep.subr.bf16.mxu0 %v2164
    %2790 = vmatpush1.bf16.msra.mxu0 %v2163
    %2791 = vmatprep.subr.bf16.mxu0 %v2167
    %2792 = vmatpush1.bf16.msra.mxu0 %v2166
    %2793 = vmatprep.subr.bf16.mxu0 %v2170
    %2794 = vmatpush1.bf16.msra.mxu0 %v2169
    %2795 = vmatprep.subr.bf16.mxu0 %v2173
    %2796 = vmatpush1.bf16.msra.mxu0 %v2172
    %2797 = vmatprep.subr.bf16.mxu0 0
    %2798 = vmatpush1.bf16.msra.mxu0 0
    %2799 = vmatprep.subr.bf16.mxu0 0
    %2800 = vmatpush1.bf16.msra.mxu0 0
    %2801 = vmatprep.subr.bf16.mxu0 0
    %2802 = vmatpush1.bf16.msra.mxu0 0
    %2803 = vmatprep.subr.bf16.mxu0 0
    %2804 = vmatpush1.bf16.msra.mxu0 0
    %2805 = vmatprep.subr.bf16.mxu0 0
    %2806 = vmatpush1.bf16.msra.mxu0 0
    %2807 = vmatprep.subr.bf16.mxu0 0
    %2808 = vmatpush1.bf16.msra.mxu0 0
    %2809 = vmatprep.subr.bf16.mxu0 0
    %2810 = vmatpush1.bf16.msra.mxu0 0
    %2811 = vmatprep.subr.bf16.mxu0 0
    %2812 = vmatpush1.bf16.msra.mxu0 0
    %2813 = vmatprep.mubr.bf16.mxu0 0
    %2814 = vmatmul.mubr.bf16.gmra.mrb[0].mxu0 %v2780
    %v2815 = vpop.f32.mrb[0].mxu0
    %v2816 = vadd.f32 %v2059, %v2815
    %v2817 = vpop.f32.mrb[0].mxu0
    %v2818 = vadd.f32 %v2063, %v2817
    %v2819 = vpop.f32.mrb[0].mxu0
    %v2820 = vpop.f32.mrb[0].mxu0
    %2821 = vdwg.mxu0
    %2822 = vmatprep.subr.bf16.mxu0 0
    %2823 = vmatpush1.bf16.msra.mxu0 %v2153
    %2824 = vmatprep.subr.bf16.mxu0 0
    %2825 = vmatpush1.bf16.msra.mxu0 %v2156
    %2826 = vmatprep.subr.bf16.mxu0 0
    %2827 = vmatpush1.bf16.msra.mxu0 %v2159
    %2828 = vmatprep.subr.bf16.mxu0 0
    %2829 = vmatpush1.bf16.msra.mxu0 %v2162
    %2830 = vmatprep.subr.bf16.mxu0 0
    %2831 = vmatpush1.bf16.msra.mxu0 %v2165
    %2832 = vmatprep.subr.bf16.mxu0 0
    %2833 = vmatpush1.bf16.msra.mxu0 %v2168
    %2834 = vmatprep.subr.bf16.mxu0 0
    %2835 = vmatpush1.bf16.msra.mxu0 %v2171
    %2836 = vmatprep.subr.bf16.mxu0 0
    %2837 = vmatpush1.bf16.msra.mxu0 %v2174
    %2838 = vmatprep.subr.bf16.mxu0 0
    %2839 = vmatpush1.bf16.msra.mxu0 0
    %2840 = vmatprep.subr.bf16.mxu0 0
    %2841 = vmatpush1.bf16.msra.mxu0 0
    %2842 = vmatprep.subr.bf16.mxu0 0
    %2843 = vmatpush1.bf16.msra.mxu0 0
    %2844 = vmatprep.subr.bf16.mxu0 0
    %2845 = vmatpush1.bf16.msra.mxu0 0
    %2846 = vmatprep.subr.bf16.mxu0 0
    %2847 = vmatpush1.bf16.msra.mxu0 0
    %2848 = vmatprep.subr.bf16.mxu0 0
    %2849 = vmatpush1.bf16.msra.mxu0 0
    %2850 = vmatprep.subr.bf16.mxu0 0
    %2851 = vmatpush1.bf16.msra.mxu0 0
    %2852 = vmatprep.subr.bf16.mxu0 0
    %2853 = vmatpush1.bf16.msra.mxu0 0
    %2854 = vmatprep.mubr.bf16.mxu0 0
    %2855 = vmatmul.mubr.bf16.gmra.mrb[0].mxu0 %v2780
    %v2856 = vpop.f32.mrb[0].mxu0
    %v2857 = vadd.f32 %v2067, %v2856
    %v2858 = vpop.f32.mrb[0].mxu0
    %v2859 = vpop.f32.mrb[0].mxu0
    %v2860 = vpop.f32.mrb[0].mxu0
    %2861 = vdwg.mxu0
    %v2862 = vpack.c.bf16 %v2816, %v2816
    %v2863 = vpack.c.bf16 %v2818, %v2818
    %v2864 = vpack.c.bf16 %v2857, %v2857
    %v2868 = vunpack.c.l.b16 %v2862
    %v2869 = vunpack.c.l.b16 %v2863
    %v2870 = vunpack.c.l.b16 %v2864
    %v2871 = vpack.c.b16 %v2869, %v2868
    %v2872 = vpack.c.b16 %v2870, %v2870
    %2875 = vst [vmem:[%s870] sm:$0xff] %v2871
    %2876 = vst [vmem:[%s870 + $0x8] sm:$0xf] %v2872
    %v2877 = vld [vmem:[%s2019] sm:$0xf]
    %2878 = vmatprep.subr.bf16.mxu0 %v2152
    %2879 = vmatpush1.bf16.msra.mxu0 %v2151
    %2880 = vmatprep.subr.bf16.mxu0 %v2155
    %2881 = vmatpush1.bf16.msra.mxu0 %v2154
    %2882 = vmatprep.subr.bf16.mxu0 %v2158
    %2883 = vmatpush1.bf16.msra.mxu0 %v2157
    %2884 = vmatprep.subr.bf16.mxu0 %v2161
    %2885 = vmatpush1.bf16.msra.mxu0 %v2160
    %2886 = vmatprep.subr.bf16.mxu0 %v2164
    %2887 = vmatpush1.bf16.msra.mxu0 %v2163
    %2888 = vmatprep.subr.bf16.mxu0 %v2167
    %2889 = vmatpush1.bf16.msra.mxu0 %v2166
    %2890 = vmatprep.subr.bf16.mxu0 %v2170
    %2891 = vmatpush1.bf16.msra.mxu0 %v2169
    %2892 = vmatprep.subr.bf16.mxu0 %v2173
    %2893 = vmatpush1.bf16.msra.mxu0 %v2172
    %2894 = vmatprep.subr.bf16.mxu0 0
    %2895 = vmatpush1.bf16.msra.mxu0 0
    %2896 = vmatprep.subr.bf16.mxu0 0
    %2897 = vmatpush1.bf16.msra.mxu0 0
    %2898 = vmatprep.subr.bf16.mxu0 0
    %2899 = vmatpush1.bf16.msra.mxu0 0
    %2900 = vmatprep.subr.bf16.mxu0 0
    %2901 = vmatpush1.bf16.msra.mxu0 0
    %2902 = vmatprep.subr.bf16.mxu0 0
    %2903 = vmatpush1.bf16.msra.mxu0 0
    %2904 = vmatprep.subr.bf16.mxu0 0
    %2905 = vmatpush1.bf16.msra.mxu0 0
    %2906 = vmatprep.subr.bf16.mxu0 0
    %2907 = vmatpush1.bf16.msra.mxu0 0
    %2908 = vmatprep.subr.bf16.mxu0 0
    %2909 = vmatpush1.bf16.msra.mxu0 0
    %2910 = vmatprep.mubr.bf16.mxu0 0
    %2911 = vmatmul.mubr.bf16.gmra.mrb[0].mxu0 %v2877
    %v2912 = vpop.f32.mrb[0].mxu0
    %v2913 = vadd.f32 %v2059, %v2912
    %v2914 = vpop.f32.mrb[0].mxu0
    %v2915 = vadd.f32 %v2063, %v2914
    %v2916 = vpop.f32.mrb[0].mxu0
    %v2917 = vpop.f32.mrb[0].mxu0
    %2918 = vdwg.mxu0
    %2919 = vmatprep.subr.bf16.mxu0 0
    %2920 = vmatpush1.bf16.msra.mxu0 %v2153
    %2921 = vmatprep.subr.bf16.mxu0 0
    %2922 = vmatpush1.bf16.msra.mxu0 %v2156
    %2923 = vmatprep.subr.bf16.mxu0 0
    %2924 = vmatpush1.bf16.msra.mxu0 %v2159
    %2925 = vmatprep.subr.bf16.mxu0 0
    %2926 = vmatpush1.bf16.msra.mxu0 %v2162
    %2927 = vmatprep.subr.bf16.mxu0 0
    %2928 = vmatpush1.bf16.msra.mxu0 %v2165
    %2929 = vmatprep.subr.bf16.mxu0 0
    %2930 = vmatpush1.bf16.msra.mxu0 %v2168
    %2931 = vmatprep.subr.bf16.mxu0 0
    %2932 = vmatpush1.bf16.msra.mxu0 %v2171
    %2933 = vmatprep.subr.bf16.mxu0 0
    %2934 = vmatpush1.bf16.msra.mxu0 %v2174
    %2935 = vmatprep.subr.bf16.mxu0 0
    %2936 = vmatpush1.bf16.msra.mxu0 0
    %2937 = vmatprep.subr.bf16.mxu0 0
    %2938 = vmatpush1.bf16.msra.mxu0 0
    %2939 = vmatprep.subr.bf16.mxu0 0
    %2940 = vmatpush1.bf16.msra.mxu0 0
    %2941 = vmatprep.subr.bf16.mxu0 0
    %2942 = vmatpush1.bf16.msra.mxu0 0
    %2943 = vmatprep.subr.bf16.mxu0 0
    %2944 = vmatpush1.bf16.msra.mxu0 0
    %2945 = vmatprep.subr.bf16.mxu0 0
    %2946 = vmatpush1.bf16.msra.mxu0 0
    %2947 = vmatprep.subr.bf16.mxu0 0
    %2948 = vmatpush1.bf16.msra.mxu0 0
    %2949 = vmatprep.subr.bf16.mxu0 0
    %2950 = vmatpush1.bf16.msra.mxu0 0
    %2951 = vmatprep.mubr.bf16.mxu0 0
    %2952 = vmatmul.mubr.bf16.gmra.mrb[0].mxu0 %v2877
    %v2953 = vpop.f32.mrb[0].mxu0
    %v2954 = vadd.f32 %v2067, %v2953
    %v2955 = vpop.f32.mrb[0].mxu0
    %v2956 = vpop.f32.mrb[0].mxu0
    %v2957 = vpop.f32.mrb[0].mxu0
    %2958 = vdwg.mxu0
    %v2959 = vpack.c.bf16 %v2913, %v2913
    %v2960 = vpack.c.bf16 %v2915, %v2915
    %v2961 = vpack.c.bf16 %v2954, %v2954
    %v2965 = vunpack.c.l.b16 %v2959
    %v2966 = vunpack.c.l.b16 %v2960
    %v2967 = vunpack.c.l.b16 %v2961
    %v2968 = vpack.c.b16 %v2966, %v2965
    %v2969 = vpack.c.b16 %v2967, %v2967
    %2972 = vst [vmem:[%s972] sm:$0xff] %v2968
    %2973 = vst [vmem:[%s972 + $0x8] sm:$0xf] %v2969
    %v2974 = vld [vmem:[#allocation9] sm:$0xff]
    %v2975 = vld [vmem:[#allocation9 + $0x8] sm:$0xf]
    %v2976 = vld [vmem:[#allocation9 + $0xc] sm:$0xff]
    %v2977 = vld [vmem:[#allocation9 + $0x14] sm:$0xf]
    %v2978 = vld [vmem:[#allocation9 + $0x18] sm:$0xff]
    %v2979 = vld [vmem:[#allocation9 + $0x20] sm:$0xf]
    %v2980 = vld [vmem:[#allocation9 + $0x24] sm:$0xff]
    %v2981 = vld [vmem:[#allocation9 + $0x2c] sm:$0xf]
    %v2982 = vld [vmem:[#allocation9 + $0x30] sm:$0xff]
    %v2983 = vld [vmem:[#allocation9 + $0x38] sm:$0xf]
    %v2984 = vld [vmem:[#allocation9 + $0x3c] sm:$0xff]
    %v2985 = vld [vmem:[#allocation9 + $0x44] sm:$0xf]
    %v2986 = vld [vmem:[#allocation9 + $0x48] sm:$0xff]
    %v2987 = vld [vmem:[#allocation9 + $0x50] sm:$0xf]
    %v2988 = vld [vmem:[#allocation9 + $0x54] sm:$0xff]
    %v2989 = vld [vmem:[#allocation9 + $0x5c] sm:$0xf]
    %v2990 = vld [vmem:[#allocation9 + $0x60] sm:$0xff]
    %v2991 = vld [vmem:[#allocation9 + $0x68] sm:$0xf]
    %v2992 = vld [vmem:[#allocation9 + $0x6c] sm:$0xff]
    %v2993 = vld [vmem:[#allocation9 + $0x74] sm:$0xf]
    %v2994 = vld [vmem:[#allocation9 + $0x78] sm:$0xff]
    %v2995 = vld [vmem:[#allocation9 + $0x80] sm:$0xf]
    %v2996 = vld [vmem:[#allocation9 + $0x84] sm:$0xff]
    %v2997 = vld [vmem:[#allocation9 + $0x8c] sm:$0xf]
    %v2998 = vld [vmem:[#allocation9 + $0x90] sm:$0xff]
    %v2999 = vld [vmem:[#allocation9 + $0x98] sm:$0xf]
    %v3000 = vld [vmem:[#allocation9 + $0x9c] sm:$0xff]
    %v3001 = vld [vmem:[#allocation9 + $0xa4] sm:$0xf]
    %v3002 = vld [vmem:[#allocation9 + $0xa8] sm:$0xff]
    %v3003 = vld [vmem:[#allocation9 + $0xb0] sm:$0xf]
    %v3004 = vld [vmem:[#allocation9 + $0xb4] sm:$0xff]
    %v3005 = vld [vmem:[#allocation9 + $0xbc] sm:$0xf]
    %v3006 = vld [vmem:[#allocation11] sm:$0x1]
    %v3008 = vlaneseq
    %v3009 = vshrl.u32 %v3008, 7
    %v3010 = vsub.s32 0, %v3009
    %v3011 = vrot.slane %v3006, %v3010
    %v3013 = vld [vmem:[#allocation2] sm:$0xff]
    %v3014 = vld [vmem:[#allocation2 + $0x8] sm:$0xf]
    %v3047 = vunpack.c.l.b16 %v2974
    %v3048 = vunpack.c.h.b16 %v2974
    %v3049 = vunpack.c.l.b16 %v2975
    %v3050 = vunpack.c.l.b16 %v2976
    %v3051 = vunpack.c.h.b16 %v2976
    %v3052 = vunpack.c.l.b16 %v2977
    %v3053 = vunpack.c.l.b16 %v2978
    %v3054 = vunpack.c.h.b16 %v2978
    %v3055 = vunpack.c.l.b16 %v2979
    %v3056 = vunpack.c.l.b16 %v2980
    %v3057 = vunpack.c.h.b16 %v2980
    %v3058 = vunpack.c.l.b16 %v2981
    %v3059 = vunpack.c.l.b16 %v2982
    %v3060 = vunpack.c.h.b16 %v2982
    %v3061 = vunpack.c.l.b16 %v2983
    %v3062 = vunpack.c.l.b16 %v2984
    %v3063 = vunpack.c.h.b16 %v2984
    %v3064 = vunpack.c.l.b16 %v2985
    %v3065 = vunpack.c.l.b16 %v2986
    %v3066 = vunpack.c.h.b16 %v2986
    %v3067 = vunpack.c.l.b16 %v2987
    %v3068 = vunpack.c.l.b16 %v2988
    %v3069 = vunpack.c.h.b16 %v2988
    %v3070 = vunpack.c.l.b16 %v2989
    %v3071 = vunpack.c.l.b16 %v2990
    %v3072 = vunpack.c.h.b16 %v2990
    %v3073 = vunpack.c.l.b16 %v2991
    %v3074 = vunpack.c.l.b16 %v2992
    %v3075 = vunpack.c.h.b16 %v2992
    %v3076 = vunpack.c.l.b16 %v2993
    %v3077 = vunpack.c.l.b16 %v2994
    %v3078 = vunpack.c.h.b16 %v2994
    %v3079 = vunpack.c.l.b16 %v2995
    %v3080 = vunpack.c.l.b16 %v2996
    %v3081 = vunpack.c.h.b16 %v2996
    %v3082 = vunpack.c.l.b16 %v2997
    %v3083 = vunpack.c.l.b16 %v2998
    %v3084 = vunpack.c.h.b16 %v2998
    %v3085 = vunpack.c.l.b16 %v2999
    %v3086 = vunpack.c.l.b16 %v3000
    %v3087 = vunpack.c.h.b16 %v3000
    %v3088 = vunpack.c.l.b16 %v3001
    %v3089 = vunpack.c.l.b16 %v3002
    %v3090 = vunpack.c.h.b16 %v3002
    %v3091 = vunpack.c.l.b16 %v3003
    %v3092 = vunpack.c.l.b16 %v3004
    %v3093 = vunpack.c.h.b16 %v3004
    %v3094 = vunpack.c.l.b16 %v3005
    %v3095 = vpack.c.b16 %v3050, %v3047
    %v3096 = vpack.c.b16 %v3051, %v3048
    %v3097 = vpack.c.b16 %v3052, %v3049
    %v3098 = vpack.c.b16 %v3056, %v3053
    %v3099 = vpack.c.b16 %v3057, %v3054
    %v3100 = vpack.c.b16 %v3058, %v3055
    %v3101 = vpack.c.b16 %v3062, %v3059
    %v3102 = vpack.c.b16 %v3063, %v3060
    %v3103 = vpack.c.b16 %v3064, %v3061
    %v3104 = vpack.c.b16 %v3068, %v3065
    %v3105 = vpack.c.b16 %v3069, %v3066
    %v3106 = vpack.c.b16 %v3070, %v3067
    %v3107 = vpack.c.b16 %v3074, %v3071
    %v3108 = vpack.c.b16 %v3075, %v3072
    %v3109 = vpack.c.b16 %v3076, %v3073
    %v3110 = vpack.c.b16 %v3080, %v3077
    %v3111 = vpack.c.b16 %v3081, %v3078
    %v3112 = vpack.c.b16 %v3082, %v3079
    %v3113 = vpack.c.b16 %v3086, %v3083
    %v3114 = vpack.c.b16 %v3087, %v3084
    %v3115 = vpack.c.b16 %v3088, %v3085
    %v3116 = vpack.c.b16 %v3092, %v3089
    %v3117 = vpack.c.b16 %v3093, %v3090
    %v3118 = vpack.c.b16 %v3094, %v3091
    %3143 = vmatprep.subr.bf16.mxu0 %v3096
    %3144 = vmatpush1.bf16.msra.mxu0 %v3095
    %3145 = vmatprep.subr.bf16.mxu0 %v3099
    %3146 = vmatpush1.bf16.msra.mxu0 %v3098
    %3147 = vmatprep.subr.bf16.mxu0 %v3102
    %3148 = vmatpush1.bf16.msra.mxu0 %v3101
    %3149 = vmatprep.subr.bf16.mxu0 %v3105
    %3150 = vmatpush1.bf16.msra.mxu0 %v3104
    %3151 = vmatprep.subr.bf16.mxu0 %v3108
    %3152 = vmatpush1.bf16.msra.mxu0 %v3107
    %3153 = vmatprep.subr.bf16.mxu0 %v3111
    %3154 = vmatpush1.bf16.msra.mxu0 %v3110
    %3155 = vmatprep.subr.bf16.mxu0 %v3114
    %3156 = vmatpush1.bf16.msra.mxu0 %v3113
    %3157 = vmatprep.subr.bf16.mxu0 %v3117
    %3158 = vmatpush1.bf16.msra.mxu0 %v3116
    %3159 = vmatprep.subr.bf16.mxu0 0
    %3160 = vmatpush1.bf16.msra.mxu0 0
    %3161 = vmatprep.subr.bf16.mxu0 0
    %3162 = vmatpush1.bf16.msra.mxu0 0
    %3163 = vmatprep.subr.bf16.mxu0 0
    %3164 = vmatpush1.bf16.msra.mxu0 0
    %3165 = vmatprep.subr.bf16.mxu0 0
    %3166 = vmatpush1.bf16.msra.mxu0 0
    %3167 = vmatprep.subr.bf16.mxu0 0
    %3168 = vmatpush1.bf16.msra.mxu0 0
    %3169 = vmatprep.subr.bf16.mxu0 0
    %3170 = vmatpush1.bf16.msra.mxu0 0
    %3171 = vmatprep.subr.bf16.mxu0 0
    %3172 = vmatpush1.bf16.msra.mxu0 0
    %3173 = vmatprep.subr.bf16.mxu0 0
    %3174 = vmatpush1.bf16.msra.mxu0 0
    %3175 = vmatprep.mubr.bf16.mxu0 0
    %3176 = vmatmul.mubr.bf16.gmra.mrb[0].mxu0 0
    %v3177 = vpop.f32.mrb[0].mxu0
    %v3178 = vadd.f32 0.0, %v3177
    %v3179 = vpop.f32.mrb[0].mxu0
    %v3180 = vadd.f32 0.0, %v3179
    %v3181 = vpop.f32.mrb[0].mxu0
    %v3182 = vpop.f32.mrb[0].mxu0
    %3183 = vdwg.mxu0
    %3184 = vmatprep.subr.bf16.mxu0 0
    %3185 = vmatpush1.bf16.msra.mxu0 %v3097
    %3186 = vmatprep.subr.bf16.mxu0 0
    %3187 = vmatpush1.bf16.msra.mxu0 %v3100
    %3188 = vmatprep.subr.bf16.mxu0 0
    %3189 = vmatpush1.bf16.msra.mxu0 %v3103
    %3190 = vmatprep.subr.bf16.mxu0 0
    %3191 = vmatpush1.bf16.msra.mxu0 %v3106
    %3192 = vmatprep.subr.bf16.mxu0 0
    %3193 = vmatpush1.bf16.msra.mxu0 %v3109
    %3194 = vmatprep.subr.bf16.mxu0 0
    %3195 = vmatpush1.bf16.msra.mxu0 %v3112
    %3196 = vmatprep.subr.bf16.mxu0 0
    %3197 = vmatpush1.bf16.msra.mxu0 %v3115
    %3198 = vmatprep.subr.bf16.mxu0 0
    %3199 = vmatpush1.bf16.msra.mxu0 %v3118
    %3200 = vmatprep.subr.bf16.mxu0 0
    %3201 = vmatpush1.bf16.msra.mxu0 0
    %3202 = vmatprep.subr.bf16.mxu0 0
    %3203 = vmatpush1.bf16.msra.mxu0 0
    %3204 = vmatprep.subr.bf16.mxu0 0
    %3205 = vmatpush1.bf16.msra.mxu0 0
    %3206 = vmatprep.subr.bf16.mxu0 0
    %3207 = vmatpush1.bf16.msra.mxu0 0
    %3208 = vmatprep.subr.bf16.mxu0 0
    %3209 = vmatpush1.bf16.msra.mxu0 0
    %3210 = vmatprep.subr.bf16.mxu0 0
    %3211 = vmatpush1.bf16.msra.mxu0 0
    %3212 = vmatprep.subr.bf16.mxu0 0
    %3213 = vmatpush1.bf16.msra.mxu0 0
    %3214 = vmatprep.subr.bf16.mxu0 0
    %3215 = vmatpush1.bf16.msra.mxu0 0
    %3216 = vmatprep.mubr.bf16.mxu0 0
    %3217 = vmatmul.mubr.bf16.gmra.mrb[0].mxu0 0
    %v3218 = vpop.f32.mrb[0].mxu0
    %v3219 = vadd.f32 0.0, %v3218
    %v3220 = vpop.f32.mrb[0].mxu0
    %v3221 = vpop.f32.mrb[0].mxu0
    %v3222 = vpop.f32.mrb[0].mxu0
    %3223 = vdwg.mxu0
    %v3224 = vunpack.c.l.bf16 %v3013
    %v3225 = vunpack.c.h.bf16 %v3013
    %v3226 = vadd.f32 %v3224, %v3178
    %v3227 = vadd.f32 %v3225, %v3180
    %v3228 = vxor.u32 %v3226, 2147483648
    %v3229 = vxor.u32 %v3227, 2147483648
    %v3230 = vmul.f32 %v3228, 1.442695
    %v3231 = vpow.pop %v3230
    %v3232 = vmul.f32 %v3229, 1.442695
    %v3233 = vpow.pop %v3232
    %v3234 = vadd.f32 %v3231, 1.0
    %v3235 = vadd.f32 %v3233, 1.0
    %v3236 = vrcp.pop %v3234
    %v3237 = vmul.f32 1.0, %v3236
    %v3238 = vrcp.pop %v3235
    %v3239 = vmul.f32 1.0, %v3238
    %v3240 = vadd.f32 %v3219, %v3011
    %v3241 = vmul.f32 %v3237, %v3240
    %v3242 = vunpack.c.l.bf16 %v3014
    %v3243 = vadd.f32 %v3242, %v3241
    %v3244 = vtanh.pop %v3243
    %v3245 = vsub.f32 0.0, %v3244
    %v3246 = vmul.f32 %v3239, %v3245
    %v3247 = vadd.f32 %v3244, %v3246
    %v3248 = vld [vmem:[%s360] sm:$0xff]
    %v3249 = vld [vmem:[%s360 + $0x8] sm:$0xf]
    %v3250 = vpack.c.bf16 %v3247, %v3247
    %3251 = vmatprep.subr.bf16.mxu0 %v3096
    %3252 = vmatpush1.bf16.msra.mxu0 %v3095
    %3253 = vmatprep.subr.bf16.mxu0 %v3099
    %3254 = vmatpush1.bf16.msra.mxu0 %v3098
    %3255 = vmatprep.subr.bf16.mxu0 %v3102
    %3256 = vmatpush1.bf16.msra.mxu0 %v3101
    %3257 = vmatprep.subr.bf16.mxu0 %v3105
    %3258 = vmatpush1.bf16.msra.mxu0 %v3104
    %3259 = vmatprep.subr.bf16.mxu0 %v3108
    %3260 = vmatpush1.bf16.msra.mxu0 %v3107
    %3261 = vmatprep.subr.bf16.mxu0 %v3111
    %3262 = vmatpush1.bf16.msra.mxu0 %v3110
    %3263 = vmatprep.subr.bf16.mxu0 %v3114
    %3264 = vmatpush1.bf16.msra.mxu0 %v3113
    %3265 = vmatprep.subr.bf16.mxu0 %v3117
    %3266 = vmatpush1.bf16.msra.mxu0 %v3116
    %3267 = vmatprep.subr.bf16.mxu0 0
    %3268 = vmatpush1.bf16.msra.mxu0 0
    %3269 = vmatprep.subr.bf16.mxu0 0
    %3270 = vmatpush1.bf16.msra.mxu0 0
    %3271 = vmatprep.subr.bf16.mxu0 0
    %3272 = vmatpush1.bf16.msra.mxu0 0
    %3273 = vmatprep.subr.bf16.mxu0 0
    %3274 = vmatpush1.bf16.msra.mxu0 0
    %3275 = vmatprep.subr.bf16.mxu0 0
    %3276 = vmatpush1.bf16.msra.mxu0 0
    %3277 = vmatprep.subr.bf16.mxu0 0
    %3278 = vmatpush1.bf16.msra.mxu0 0
    %3279 = vmatprep.subr.bf16.mxu0 0
    %3280 = vmatpush1.bf16.msra.mxu0 0
    %3281 = vmatprep.subr.bf16.mxu0 0
    %3282 = vmatpush1.bf16.msra.mxu0 0
    %3283 = vmatprep.mubr.bf16.mxu0 0
    %3284 = vmatmul.mubr.bf16.gmra.mrb[0].mxu0 %v3250
    %v3285 = vpop.f32.mrb[0].mxu0
    %v3286 = vadd.f32 0.0, %v3285
    %v3287 = vpop.f32.mrb[0].mxu0
    %v3288 = vadd.f32 0.0, %v3287
    %v3289 = vpop.f32.mrb[0].mxu0
    %v3290 = vpop.f32.mrb[0].mxu0
    %3291 = vdwg.mxu0
    %3292 = vmatprep.subr.bf16.mxu0 0
    %3293 = vmatpush1.bf16.msra.mxu0 %v3097
    %3294 = vmatprep.subr.bf16.mxu0 0
    %3295 = vmatpush1.bf16.msra.mxu0 %v3100
    %3296 = vmatprep.subr.bf16.mxu0 0
    %3297 = vmatpush1.bf16.msra.mxu0 %v3103
    %3298 = vmatprep.subr.bf16.mxu0 0
    %3299 = vmatpush1.bf16.msra.mxu0 %v3106
    %3300 = vmatprep.subr.bf16.mxu0 0
    %3301 = vmatpush1.bf16.msra.mxu0 %v3109
    %3302 = vmatprep.subr.bf16.mxu0 0
    %3303 = vmatpush1.bf16.msra.mxu0 %v3112
    %3304 = vmatprep.subr.bf16.mxu0 0
    %3305 = vmatpush1.bf16.msra.mxu0 %v3115
    %3306 = vmatprep.subr.bf16.mxu0 0
    %3307 = vmatpush1.bf16.msra.mxu0 %v3118
    %3308 = vmatprep.subr.bf16.mxu0 0
    %3309 = vmatpush1.bf16.msra.mxu0 0
    %3310 = vmatprep.subr.bf16.mxu0 0
    %3311 = vmatpush1.bf16.msra.mxu0 0
    %3312 = vmatprep.subr.bf16.mxu0 0
    %3313 = vmatpush1.bf16.msra.mxu0 0
    %3314 = vmatprep.subr.bf16.mxu0 0
    %3315 = vmatpush1.bf16.msra.mxu0 0
    %3316 = vmatprep.subr.bf16.mxu0 0
    %3317 = vmatpush1.bf16.msra.mxu0 0
    %3318 = vmatprep.subr.bf16.mxu0 0
    %3319 = vmatpush1.bf16.msra.mxu0 0
    %3320 = vmatprep.subr.bf16.mxu0 0
    %3321 = vmatpush1.bf16.msra.mxu0 0
    %3322 = vmatprep.subr.bf16.mxu0 0
    %3323 = vmatpush1.bf16.msra.mxu0 0
    %3324 = vmatprep.mubr.bf16.mxu0 0
    %3325 = vmatmul.mubr.bf16.gmra.mrb[0].mxu0 %v3250
    %v3326 = vpop.f32.mrb[0].mxu0
    %v3327 = vadd.f32 0.0, %v3326
    %v3328 = vpop.f32.mrb[0].mxu0
    %v3329 = vpop.f32.mrb[0].mxu0
    %v3330 = vpop.f32.mrb[0].mxu0
    %3331 = vdwg.mxu0
    %v3332 = vunpack.c.l.bf16 %v3248
    %v3333 = vunpack.c.h.bf16 %v3248
    %v3334 = vadd.f32 %v3332, %v3286
    %v3335 = vadd.f32 %v3333, %v3288
    %v3336 = vxor.u32 %v3334, 2147483648
    %v3337 = vxor.u32 %v3335, 2147483648
    %v3338 = vmul.f32 %v3336, 1.442695
    %v3339 = vpow.pop %v3338
    %v3340 = vmul.f32 %v3337, 1.442695
    %v3341 = vpow.pop %v3340
    %v3342 = vadd.f32 %v3339, 1.0
    %v3343 = vadd.f32 %v3341, 1.0
    %v3344 = vrcp.pop %v3342
    %v3345 = vmul.f32 1.0, %v3344
    %v3346 = vrcp.pop %v3343
    %v3347 = vmul.f32 1.0, %v3346
    %v3348 = vadd.f32 %v3327, %v3011
    %v3349 = vmul.f32 %v3345, %v3348
    %v3350 = vunpack.c.l.bf16 %v3249
    %v3351 = vadd.f32 %v3350, %v3349
    %v3352 = vtanh.pop %v3351
    %v3353 = vsub.f32 %v3247, %v3352
    %v3354 = vmul.f32 %v3347, %v3353
    %v3355 = vadd.f32 %v3352, %v3354
    %v3356 = vld [vmem:[%s462] sm:$0xff]
    %v3357 = vld [vmem:[%s462 + $0x8] sm:$0xf]
    %v3358 = vpack.c.bf16 %v3355, %v3355
    %3359 = vmatprep.subr.bf16.mxu0 %v3096
    %3360 = vmatpush1.bf16.msra.mxu0 %v3095
    %3361 = vmatprep.subr.bf16.mxu0 %v3099
    %3362 = vmatpush1.bf16.msra.mxu0 %v3098
    %3363 = vmatprep.subr.bf16.mxu0 %v3102
    %3364 = vmatpush1.bf16.msra.mxu0 %v3101
    %3365 = vmatprep.subr.bf16.mxu0 %v3105
    %3366 = vmatpush1.bf16.msra.mxu0 %v3104
    %3367 = vmatprep.subr.bf16.mxu0 %v3108
    %3368 = vmatpush1.bf16.msra.mxu0 %v3107
    %3369 = vmatprep.subr.bf16.mxu0 %v3111
    %3370 = vmatpush1.bf16.msra.mxu0 %v3110
    %3371 = vmatprep.subr.bf16.mxu0 %v3114
    %3372 = vmatpush1.bf16.msra.mxu0 %v3113
    %3373 = vmatprep.subr.bf16.mxu0 %v3117
    %3374 = vmatpush1.bf16.msra.mxu0 %v3116
    %3375 = vmatprep.subr.bf16.mxu0 0
    %3376 = vmatpush1.bf16.msra.mxu0 0
    %3377 = vmatprep.subr.bf16.mxu0 0
    %3378 = vmatpush1.bf16.msra.mxu0 0
    %3379 = vmatprep.subr.bf16.mxu0 0
    %3380 = vmatpush1.bf16.msra.mxu0 0
    %3381 = vmatprep.subr.bf16.mxu0 0
    %3382 = vmatpush1.bf16.msra.mxu0 0
    %3383 = vmatprep.subr.bf16.mxu0 0
    %3384 = vmatpush1.bf16.msra.mxu0 0
    %3385 = vmatprep.subr.bf16.mxu0 0
    %3386 = vmatpush1.bf16.msra.mxu0 0
    %3387 = vmatprep.subr.bf16.mxu0 0
    %3388 = vmatpush1.bf16.msra.mxu0 0
    %3389 = vmatprep.subr.bf16.mxu0 0
    %3390 = vmatpush1.bf16.msra.mxu0 0
    %3391 = vmatprep.mubr.bf16.mxu0 0
    %3392 = vmatmul.mubr.bf16.gmra.mrb[0].mxu0 %v3358
    %v3393 = vpop.f32.mrb[0].mxu0
    %v3394 = vadd.f32 0.0, %v3393
    %v3395 = vpop.f32.mrb[0].mxu0
    %v3396 = vadd.f32 0.0, %v3395
    %v3397 = vpop.f32.mrb[0].mxu0
    %v3398 = vpop.f32.mrb[0].mxu0
    %3399 = vdwg.mxu0
    %3400 = vmatprep.subr.bf16.mxu0 0
    %3401 = vmatpush1.bf16.msra.mxu0 %v3097
    %3402 = vmatprep.subr.bf16.mxu0 0
    %3403 = vmatpush1.bf16.msra.mxu0 %v3100
    %3404 = vmatprep.subr.bf16.mxu0 0
    %3405 = vmatpush1.bf16.msra.mxu0 %v3103
    %3406 = vmatprep.subr.bf16.mxu0 0
    %3407 = vmatpush1.bf16.msra.mxu0 %v3106
    %3408 = vmatprep.subr.bf16.mxu0 0
    %3409 = vmatpush1.bf16.msra.mxu0 %v3109
    %3410 = vmatprep.subr.bf16.mxu0 0
    %3411 = vmatpush1.bf16.msra.mxu0 %v3112
    %3412 = vmatprep.subr.bf16.mxu0 0
    %3413 = vmatpush1.bf16.msra.mxu0 %v3115
    %3414 = vmatprep.subr.bf16.mxu0 0
    %3415 = vmatpush1.bf16.msra.mxu0 %v3118
    %3416 = vmatprep.subr.bf16.mxu0 0
    %3417 = vmatpush1.bf16.msra.mxu0 0
    %3418 = vmatprep.subr.bf16.mxu0 0
    %3419 = vmatpush1.bf16.msra.mxu0 0
    %3420 = vmatprep.subr.bf16.mxu0 0
    %3421 = vmatpush1.bf16.msra.mxu0 0
    %3422 = vmatprep.subr.bf16.mxu0 0
    %3423 = vmatpush1.bf16.msra.mxu0 0
    %3424 = vmatprep.subr.bf16.mxu0 0
    %3425 = vmatpush1.bf16.msra.mxu0 0
    %3426 = vmatprep.subr.bf16.mxu0 0
    %3427 = vmatpush1.bf16.msra.mxu0 0
    %3428 = vmatprep.subr.bf16.mxu0 0
    %3429 = vmatpush1.bf16.msra.mxu0 0
    %3430 = vmatprep.subr.bf16.mxu0 0
    %3431 = vmatpush1.bf16.msra.mxu0 0
    %3432 = vmatprep.mubr.bf16.mxu0 0
    %3433 = vmatmul.mubr.bf16.gmra.mrb[0].mxu0 %v3358
    %v3434 = vpop.f32.mrb[0].mxu0
    %v3435 = vadd.f32 0.0, %v3434
    %v3436 = vpop.f32.mrb[0].mxu0
    %v3437 = vpop.f32.mrb[0].mxu0
    %v3438 = vpop.f32.mrb[0].mxu0
    %3439 = vdwg.mxu0
    %v3440 = vunpack.c.l.bf16 %v3356
    %v3441 = vunpack.c.h.bf16 %v3356
    %v3442 = vadd.f32 %v3440, %v3394
    %v3443 = vadd.f32 %v3441, %v3396
    %v3444 = vxor.u32 %v3442, 2147483648
    %v3445 = vxor.u32 %v3443, 2147483648
    %v3446 = vmul.f32 %v3444, 1.442695
    %v3447 = vpow.pop %v3446
    %v3448 = vmul.f32 %v3445, 1.442695
    %v3449 = vpow.pop %v3448
    %v3450 = vadd.f32 %v3447, 1.0
    %v3451 = vadd.f32 %v3449, 1.0
    %v3452 = vrcp.pop %v3450
    %v3453 = vmul.f32 1.0, %v3452
    %v3454 = vrcp.pop %v3451
    %v3455 = vmul.f32 1.0, %v3454
    %v3456 = vadd.f32 %v3435, %v3011
    %v3457 = vmul.f32 %v3453, %v3456
    %v3458 = vunpack.c.l.bf16 %v3357
    %v3459 = vadd.f32 %v3458, %v3457
    %v3460 = vtanh.pop %v3459
    %v3461 = vsub.f32 %v3355, %v3460
    %v3462 = vmul.f32 %v3455, %v3461
    %v3463 = vadd.f32 %v3460, %v3462
    %v3464 = vld [vmem:[%s564] sm:$0xff]
    %v3465 = vld [vmem:[%s564 + $0x8] sm:$0xf]
    %v3466 = vpack.c.bf16 %v3463, %v3463
    %3467 = vmatprep.subr.bf16.mxu0 %v3096
    %3468 = vmatpush1.bf16.msra.mxu0 %v3095
    %3469 = vmatprep.subr.bf16.mxu0 %v3099
    %3470 = vmatpush1.bf16.msra.mxu0 %v3098
    %3471 = vmatprep.subr.bf16.mxu0 %v3102
    %3472 = vmatpush1.bf16.msra.mxu0 %v3101
    %3473 = vmatprep.subr.bf16.mxu0 %v3105
    %3474 = vmatpush1.bf16.msra.mxu0 %v3104
    %3475 = vmatprep.subr.bf16.mxu0 %v3108
    %3476 = vmatpush1.bf16.msra.mxu0 %v3107
    %3477 = vmatprep.subr.bf16.mxu0 %v3111
    %3478 = vmatpush1.bf16.msra.mxu0 %v3110
    %3479 = vmatprep.subr.bf16.mxu0 %v3114
    %3480 = vmatpush1.bf16.msra.mxu0 %v3113
    %3481 = vmatprep.subr.bf16.mxu0 %v3117
    %3482 = vmatpush1.bf16.msra.mxu0 %v3116
    %3483 = vmatprep.subr.bf16.mxu0 0
    %3484 = vmatpush1.bf16.msra.mxu0 0
    %3485 = vmatprep.subr.bf16.mxu0 0
    %3486 = vmatpush1.bf16.msra.mxu0 0
    %3487 = vmatprep.subr.bf16.mxu0 0
    %3488 = vmatpush1.bf16.msra.mxu0 0
    %3489 = vmatprep.subr.bf16.mxu0 0
    %3490 = vmatpush1.bf16.msra.mxu0 0
    %3491 = vmatprep.subr.bf16.mxu0 0
    %3492 = vmatpush1.bf16.msra.mxu0 0
    %3493 = vmatprep.subr.bf16.mxu0 0
    %3494 = vmatpush1.bf16.msra.mxu0 0
    %3495 = vmatprep.subr.bf16.mxu0 0
    %3496 = vmatpush1.bf16.msra.mxu0 0
    %3497 = vmatprep.subr.bf16.mxu0 0
    %3498 = vmatpush1.bf16.msra.mxu0 0
    %3499 = vmatprep.mubr.bf16.mxu0 0
    %3500 = vmatmul.mubr.bf16.gmra.mrb[0].mxu0 %v3466
    %v3501 = vpop.f32.mrb[0].mxu0
    %v3502 = vadd.f32 0.0, %v3501
    %v3503 = vpop.f32.mrb[0].mxu0
    %v3504 = vadd.f32 0.0, %v3503
    %v3505 = vpop.f32.mrb[0].mxu0
    %v3506 = vpop.f32.mrb[0].mxu0
    %3507 = vdwg.mxu0
    %3508 = vmatprep.subr.bf16.mxu0 0
    %3509 = vmatpush1.bf16.msra.mxu0 %v3097
    %3510 = vmatprep.subr.bf16.mxu0 0
    %3511 = vmatpush1.bf16.msra.mxu0 %v3100
    %3512 = vmatprep.subr.bf16.mxu0 0
    %3513 = vmatpush1.bf16.msra.mxu0 %v3103
    %3514 = vmatprep.subr.bf16.mxu0 0
    %3515 = vmatpush1.bf16.msra.mxu0 %v3106
    %3516 = vmatprep.subr.bf16.mxu0 0
    %3517 = vmatpush1.bf16.msra.mxu0 %v3109
    %3518 = vmatprep.subr.bf16.mxu0 0
    %3519 = vmatpush1.bf16.msra.mxu0 %v3112
    %3520 = vmatprep.subr.bf16.mxu0 0
    %3521 = vmatpush1.bf16.msra.mxu0 %v3115
    %3522 = vmatprep.subr.bf16.mxu0 0
    %3523 = vmatpush1.bf16.msra.mxu0 %v3118
    %3524 = vmatprep.subr.bf16.mxu0 0
    %3525 = vmatpush1.bf16.msra.mxu0 0
    %3526 = vmatprep.subr.bf16.mxu0 0
    %3527 = vmatpush1.bf16.msra.mxu0 0
    %3528 = vmatprep.subr.bf16.mxu0 0
    %3529 = vmatpush1.bf16.msra.mxu0 0
    %3530 = vmatprep.subr.bf16.mxu0 0
    %3531 = vmatpush1.bf16.msra.mxu0 0
    %3532 = vmatprep.subr.bf16.mxu0 0
    %3533 = vmatpush1.bf16.msra.mxu0 0
    %3534 = vmatprep.subr.bf16.mxu0 0
    %3535 = vmatpush1.bf16.msra.mxu0 0
    %3536 = vmatprep.subr.bf16.mxu0 0
    %3537 = vmatpush1.bf16.msra.mxu0 0
    %3538 = vmatprep.subr.bf16.mxu0 0
    %3539 = vmatpush1.bf16.msra.mxu0 0
    %3540 = vmatprep.mubr.bf16.mxu0 0
    %3541 = vmatmul.mubr.bf16.gmra.mrb[0].mxu0 %v3466
    %v3542 = vpop.f32.mrb[0].mxu0
    %v3543 = vadd.f32 0.0, %v3542
    %v3544 = vpop.f32.mrb[0].mxu0
    %v3545 = vpop.f32.mrb[0].mxu0
    %v3546 = vpop.f32.mrb[0].mxu0
    %3547 = vdwg.mxu0
    %v3548 = vunpack.c.l.bf16 %v3464
    %v3549 = vunpack.c.h.bf16 %v3464
    %v3550 = vadd.f32 %v3548, %v3502
    %v3551 = vadd.f32 %v3549, %v3504
    %v3552 = vxor.u32 %v3550, 2147483648
    %v3553 = vxor.u32 %v3551, 2147483648
    %v3554 = vmul.f32 %v3552, 1.442695
    %v3555 = vpow.pop %v3554
    %v3556 = vmul.f32 %v3553, 1.442695
    %v3557 = vpow.pop %v3556
    %v3558 = vadd.f32 %v3555, 1.0
    %v3559 = vadd.f32 %v3557, 1.0
    %v3560 = vrcp.pop %v3558
    %v3561 = vmul.f32 1.0, %v3560
    %v3562 = vrcp.pop %v3559
    %v3563 = vmul.f32 1.0, %v3562
    %v3564 = vadd.f32 %v3543, %v3011
    %v3565 = vmul.f32 %v3561, %v3564
    %v3566 = vunpack.c.l.bf16 %v3465
    %v3567 = vadd.f32 %v3566, %v3565
    %v3568 = vtanh.pop %v3567
    %v3569 = vsub.f32 %v3463, %v3568
    %v3570 = vmul.f32 %v3563, %v3569
    %v3571 = vadd.f32 %v3568, %v3570
    %v3572 = vld [vmem:[%s666] sm:$0xff]
    %v3573 = vld [vmem:[%s666 + $0x8] sm:$0xf]
    %v3574 = vpack.c.bf16 %v3571, %v3571
    %3575 = vmatprep.subr.bf16.mxu0 %v3096
    %3576 = vmatpush1.bf16.msra.mxu0 %v3095
    %3577 = vmatprep.subr.bf16.mxu0 %v3099
    %3578 = vmatpush1.bf16.msra.mxu0 %v3098
    %3579 = vmatprep.subr.bf16.mxu0 %v3102
    %3580 = vmatpush1.bf16.msra.mxu0 %v3101
    %3581 = vmatprep.subr.bf16.mxu0 %v3105
    %3582 = vmatpush1.bf16.msra.mxu0 %v3104
    %3583 = vmatprep.subr.bf16.mxu0 %v3108
    %3584 = vmatpush1.bf16.msra.mxu0 %v3107
    %3585 = vmatprep.subr.bf16.mxu0 %v3111
    %3586 = vmatpush1.bf16.msra.mxu0 %v3110
    %3587 = vmatprep.subr.bf16.mxu0 %v3114
    %3588 = vmatpush1.bf16.msra.mxu0 %v3113
    %3589 = vmatprep.subr.bf16.mxu0 %v3117
    %3590 = vmatpush1.bf16.msra.mxu0 %v3116
    %3591 = vmatprep.subr.bf16.mxu0 0
    %3592 = vmatpush1.bf16.msra.mxu0 0
    %3593 = vmatprep.subr.bf16.mxu0 0
    %3594 = vmatpush1.bf16.msra.mxu0 0
    %3595 = vmatprep.subr.bf16.mxu0 0
    %3596 = vmatpush1.bf16.msra.mxu0 0
    %3597 = vmatprep.subr.bf16.mxu0 0
    %3598 = vmatpush1.bf16.msra.mxu0 0
    %3599 = vmatprep.subr.bf16.mxu0 0
    %3600 = vmatpush1.bf16.msra.mxu0 0
    %3601 = vmatprep.subr.bf16.mxu0 0
    %3602 = vmatpush1.bf16.msra.mxu0 0
    %3603 = vmatprep.subr.bf16.mxu0 0
    %3604 = vmatpush1.bf16.msra.mxu0 0
    %3605 = vmatprep.subr.bf16.mxu0 0
    %3606 = vmatpush1.bf16.msra.mxu0 0
    %3607 = vmatprep.mubr.bf16.mxu0 0
    %3608 = vmatmul.mubr.bf16.gmra.mrb[0].mxu0 %v3574
    %v3609 = vpop.f32.mrb[0].mxu0
    %v3610 = vadd.f32 0.0, %v3609
    %v3611 = vpop.f32.mrb[0].mxu0
    %v3612 = vadd.f32 0.0, %v3611
    %v3613 = vpop.f32.mrb[0].mxu0
    %v3614 = vpop.f32.mrb[0].mxu0
    %3615 = vdwg.mxu0
    %3616 = vmatprep.subr.bf16.mxu0 0
    %3617 = vmatpush1.bf16.msra.mxu0 %v3097
    %3618 = vmatprep.subr.bf16.mxu0 0
    %3619 = vmatpush1.bf16.msra.mxu0 %v3100
    %3620 = vmatprep.subr.bf16.mxu0 0
    %3621 = vmatpush1.bf16.msra.mxu0 %v3103
    %3622 = vmatprep.subr.bf16.mxu0 0
    %3623 = vmatpush1.bf16.msra.mxu0 %v3106
    %3624 = vmatprep.subr.bf16.mxu0 0
    %3625 = vmatpush1.bf16.msra.mxu0 %v3109
    %3626 = vmatprep.subr.bf16.mxu0 0
    %3627 = vmatpush1.bf16.msra.mxu0 %v3112
    %3628 = vmatprep.subr.bf16.mxu0 0
    %3629 = vmatpush1.bf16.msra.mxu0 %v3115
    %3630 = vmatprep.subr.bf16.mxu0 0
    %3631 = vmatpush1.bf16.msra.mxu0 %v3118
    %3632 = vmatprep.subr.bf16.mxu0 0
    %3633 = vmatpush1.bf16.msra.mxu0 0
    %3634 = vmatprep.subr.bf16.mxu0 0
    %3635 = vmatpush1.bf16.msra.mxu0 0
    %3636 = vmatprep.subr.bf16.mxu0 0
    %3637 = vmatpush1.bf16.msra.mxu0 0
    %3638 = vmatprep.subr.bf16.mxu0 0
    %3639 = vmatpush1.bf16.msra.mxu0 0
    %3640 = vmatprep.subr.bf16.mxu0 0
    %3641 = vmatpush1.bf16.msra.mxu0 0
    %3642 = vmatprep.subr.bf16.mxu0 0
    %3643 = vmatpush1.bf16.msra.mxu0 0
    %3644 = vmatprep.subr.bf16.mxu0 0
    %3645 = vmatpush1.bf16.msra.mxu0 0
    %3646 = vmatprep.subr.bf16.mxu0 0
    %3647 = vmatpush1.bf16.msra.mxu0 0
    %3648 = vmatprep.mubr.bf16.mxu0 0
    %3649 = vmatmul.mubr.bf16.gmra.mrb[0].mxu0 %v3574
    %v3650 = vpop.f32.mrb[0].mxu0
    %v3651 = vadd.f32 0.0, %v3650
    %v3652 = vpop.f32.mrb[0].mxu0
    %v3653 = vpop.f32.mrb[0].mxu0
    %v3654 = vpop.f32.mrb[0].mxu0
    %3655 = vdwg.mxu0
    %v3656 = vunpack.c.l.bf16 %v3572
    %v3657 = vunpack.c.h.bf16 %v3572
    %v3658 = vadd.f32 %v3656, %v3610
    %v3659 = vadd.f32 %v3657, %v3612
    %v3660 = vxor.u32 %v3658, 2147483648
    %v3661 = vxor.u32 %v3659, 2147483648
    %v3662 = vmul.f32 %v3660, 1.442695
    %v3663 = vpow.pop %v3662
    %v3664 = vmul.f32 %v3661, 1.442695
    %v3665 = vpow.pop %v3664
    %v3666 = vadd.f32 %v3663, 1.0
    %v3667 = vadd.f32 %v3665, 1.0
    %v3668 = vrcp.pop %v3666
    %v3669 = vmul.f32 1.0, %v3668
    %v3670 = vrcp.pop %v3667
    %v3671 = vmul.f32 1.0, %v3670
    %v3672 = vadd.f32 %v3651, %v3011
    %v3673 = vmul.f32 %v3669, %v3672
    %v3674 = vunpack.c.l.bf16 %v3573
    %v3675 = vadd.f32 %v3674, %v3673
    %v3676 = vtanh.pop %v3675
    %v3677 = vsub.f32 %v3571, %v3676
    %v3678 = vmul.f32 %v3671, %v3677
    %v3679 = vadd.f32 %v3676, %v3678
    %v3680 = vld [vmem:[%s768] sm:$0xff]
    %v3681 = vld [vmem:[%s768 + $0x8] sm:$0xf]
    %v3682 = vpack.c.bf16 %v3679, %v3679
    %3683 = vmatprep.subr.bf16.mxu0 %v3096
    %3684 = vmatpush1.bf16.msra.mxu0 %v3095
    %3685 = vmatprep.subr.bf16.mxu0 %v3099
    %3686 = vmatpush1.bf16.msra.mxu0 %v3098
    %3687 = vmatprep.subr.bf16.mxu0 %v3102
    %3688 = vmatpush1.bf16.msra.mxu0 %v3101
    %3689 = vmatprep.subr.bf16.mxu0 %v3105
    %3690 = vmatpush1.bf16.msra.mxu0 %v3104
    %3691 = vmatprep.subr.bf16.mxu0 %v3108
    %3692 = vmatpush1.bf16.msra.mxu0 %v3107
    %3693 = vmatprep.subr.bf16.mxu0 %v3111
    %3694 = vmatpush1.bf16.msra.mxu0 %v3110
    %3695 = vmatprep.subr.bf16.mxu0 %v3114
    %3696 = vmatpush1.bf16.msra.mxu0 %v3113
    %3697 = vmatprep.subr.bf16.mxu0 %v3117
    %3698 = vmatpush1.bf16.msra.mxu0 %v3116
    %3699 = vmatprep.subr.bf16.mxu0 0
    %3700 = vmatpush1.bf16.msra.mxu0 0
    %3701 = vmatprep.subr.bf16.mxu0 0
    %3702 = vmatpush1.bf16.msra.mxu0 0
    %3703 = vmatprep.subr.bf16.mxu0 0
    %3704 = vmatpush1.bf16.msra.mxu0 0
    %3705 = vmatprep.subr.bf16.mxu0 0
    %3706 = vmatpush1.bf16.msra.mxu0 0
    %3707 = vmatprep.subr.bf16.mxu0 0
    %3708 = vmatpush1.bf16.msra.mxu0 0
    %3709 = vmatprep.subr.bf16.mxu0 0
    %3710 = vmatpush1.bf16.msra.mxu0 0
    %3711 = vmatprep.subr.bf16.mxu0 0
    %3712 = vmatpush1.bf16.msra.mxu0 0
    %3713 = vmatprep.subr.bf16.mxu0 0
    %3714 = vmatpush1.bf16.msra.mxu0 0
    %3715 = vmatprep.mubr.bf16.mxu0 0
    %3716 = vmatmul.mubr.bf16.gmra.mrb[0].mxu0 %v3682
    %v3717 = vpop.f32.mrb[0].mxu0
    %v3718 = vadd.f32 0.0, %v3717
    %v3719 = vpop.f32.mrb[0].mxu0
    %v3720 = vadd.f32 0.0, %v3719
    %v3721 = vpop.f32.mrb[0].mxu0
    %v3722 = vpop.f32.mrb[0].mxu0
    %3723 = vdwg.mxu0
    %3724 = vmatprep.subr.bf16.mxu0 0
    %3725 = vmatpush1.bf16.msra.mxu0 %v3097
    %3726 = vmatprep.subr.bf16.mxu0 0
    %3727 = vmatpush1.bf16.msra.mxu0 %v3100
    %3728 = vmatprep.subr.bf16.mxu0 0
    %3729 = vmatpush1.bf16.msra.mxu0 %v3103
    %3730 = vmatprep.subr.bf16.mxu0 0
    %3731 = vmatpush1.bf16.msra.mxu0 %v3106
    %3732 = vmatprep.subr.bf16.mxu0 0
    %3733 = vmatpush1.bf16.msra.mxu0 %v3109
    %3734 = vmatprep.subr.bf16.mxu0 0
    %3735 = vmatpush1.bf16.msra.mxu0 %v3112
    %3736 = vmatprep.subr.bf16.mxu0 0
    %3737 = vmatpush1.bf16.msra.mxu0 %v3115
    %3738 = vmatprep.subr.bf16.mxu0 0
    %3739 = vmatpush1.bf16.msra.mxu0 %v3118
    %3740 = vmatprep.subr.bf16.mxu0 0
    %3741 = vmatpush1.bf16.msra.mxu0 0
    %3742 = vmatprep.subr.bf16.mxu0 0
    %3743 = vmatpush1.bf16.msra.mxu0 0
    %3744 = vmatprep.subr.bf16.mxu0 0
    %3745 = vmatpush1.bf16.msra.mxu0 0
    %3746 = vmatprep.subr.bf16.mxu0 0
    %3747 = vmatpush1.bf16.msra.mxu0 0
    %3748 = vmatprep.subr.bf16.mxu0 0
    %3749 = vmatpush1.bf16.msra.mxu0 0
    %3750 = vmatprep.subr.bf16.mxu0 0
    %3751 = vmatpush1.bf16.msra.mxu0 0
    %3752 = vmatprep.subr.bf16.mxu0 0
    %3753 = vmatpush1.bf16.msra.mxu0 0
    %3754 = vmatprep.subr.bf16.mxu0 0
    %3755 = vmatpush1.bf16.msra.mxu0 0
    %3756 = vmatprep.mubr.bf16.mxu0 0
    %3757 = vmatmul.mubr.bf16.gmra.mrb[0].mxu0 %v3682
    %v3758 = vpop.f32.mrb[0].mxu0
    %v3759 = vadd.f32 0.0, %v3758
    %v3760 = vpop.f32.mrb[0].mxu0
    %v3761 = vpop.f32.mrb[0].mxu0
    %v3762 = vpop.f32.mrb[0].mxu0
    %3763 = vdwg.mxu0
    %v3764 = vunpack.c.l.bf16 %v3680
    %v3765 = vunpack.c.h.bf16 %v3680
    %v3766 = vadd.f32 %v3764, %v3718
    %v3767 = vadd.f32 %v3765, %v3720
    %v3768 = vxor.u32 %v3766, 2147483648
    %v3769 = vxor.u32 %v3767, 2147483648
    %v3770 = vmul.f32 %v3768, 1.442695
    %v3771 = vpow.pop %v3770
    %v3772 = vmul.f32 %v3769, 1.442695
    %v3773 = vpow.pop %v3772
    %v3774 = vadd.f32 %v3771, 1.0
    %v3775 = vadd.f32 %v3773, 1.0
    %v3776 = vrcp.pop %v3774
    %v3777 = vmul.f32 1.0, %v3776
    %v3778 = vrcp.pop %v3775
    %v3779 = vmul.f32 1.0, %v3778
    %v3780 = vadd.f32 %v3759, %v3011
    %v3781 = vmul.f32 %v3777, %v3780
    %v3782 = vunpack.c.l.bf16 %v3681
    %v3783 = vadd.f32 %v3782, %v3781
    %v3784 = vtanh.pop %v3783
    %v3785 = vsub.f32 %v3679, %v3784
    %v3786 = vmul.f32 %v3779, %v3785
    %v3787 = vadd.f32 %v3784, %v3786
    %v3788 = vld [vmem:[%s870] sm:$0xff]
    %v3789 = vld [vmem:[%s870 + $0x8] sm:$0xf]
    %v3790 = vpack.c.bf16 %v3787, %v3787
    %3791 = vmatprep.subr.bf16.mxu0 %v3096
    %3792 = vmatpush1.bf16.msra.mxu0 %v3095
    %3793 = vmatprep.subr.bf16.mxu0 %v3099
    %3794 = vmatpush1.bf16.msra.mxu0 %v3098
    %3795 = vmatprep.subr.bf16.mxu0 %v3102
    %3796 = vmatpush1.bf16.msra.mxu0 %v3101
    %3797 = vmatprep.subr.bf16.mxu0 %v3105
    %3798 = vmatpush1.bf16.msra.mxu0 %v3104
    %3799 = vmatprep.subr.bf16.mxu0 %v3108
    %3800 = vmatpush1.bf16.msra.mxu0 %v3107
    %3801 = vmatprep.subr.bf16.mxu0 %v3111
    %3802 = vmatpush1.bf16.msra.mxu0 %v3110
    %3803 = vmatprep.subr.bf16.mxu0 %v3114
    %3804 = vmatpush1.bf16.msra.mxu0 %v3113
    %3805 = vmatprep.subr.bf16.mxu0 %v3117
    %3806 = vmatpush1.bf16.msra.mxu0 %v3116
    %3807 = vmatprep.subr.bf16.mxu0 0
    %3808 = vmatpush1.bf16.msra.mxu0 0
    %3809 = vmatprep.subr.bf16.mxu0 0
    %3810 = vmatpush1.bf16.msra.mxu0 0
    %3811 = vmatprep.subr.bf16.mxu0 0
    %3812 = vmatpush1.bf16.msra.mxu0 0
    %3813 = vmatprep.subr.bf16.mxu0 0
    %3814 = vmatpush1.bf16.msra.mxu0 0
    %3815 = vmatprep.subr.bf16.mxu0 0
    %3816 = vmatpush1.bf16.msra.mxu0 0
    %3817 = vmatprep.subr.bf16.mxu0 0
    %3818 = vmatpush1.bf16.msra.mxu0 0
    %3819 = vmatprep.subr.bf16.mxu0 0
    %3820 = vmatpush1.bf16.msra.mxu0 0
    %3821 = vmatprep.subr.bf16.mxu0 0
    %3822 = vmatpush1.bf16.msra.mxu0 0
    %3823 = vmatprep.mubr.bf16.mxu0 0
    %3824 = vmatmul.mubr.bf16.gmra.mrb[0].mxu0 %v3790
    %v3825 = vpop.f32.mrb[0].mxu0
    %v3826 = vadd.f32 0.0, %v3825
    %v3827 = vpop.f32.mrb[0].mxu0
    %v3828 = vadd.f32 0.0, %v3827
    %v3829 = vpop.f32.mrb[0].mxu0
    %v3830 = vpop.f32.mrb[0].mxu0
    %3831 = vdwg.mxu0
    %3832 = vmatprep.subr.bf16.mxu0 0
    %3833 = vmatpush1.bf16.msra.mxu0 %v3097
    %3834 = vmatprep.subr.bf16.mxu0 0
    %3835 = vmatpush1.bf16.msra.mxu0 %v3100
    %3836 = vmatprep.subr.bf16.mxu0 0
    %3837 = vmatpush1.bf16.msra.mxu0 %v3103
    %3838 = vmatprep.subr.bf16.mxu0 0
    %3839 = vmatpush1.bf16.msra.mxu0 %v3106
    %3840 = vmatprep.subr.bf16.mxu0 0
    %3841 = vmatpush1.bf16.msra.mxu0 %v3109
    %3842 = vmatprep.subr.bf16.mxu0 0
    %3843 = vmatpush1.bf16.msra.mxu0 %v3112
    %3844 = vmatprep.subr.bf16.mxu0 0
    %3845 = vmatpush1.bf16.msra.mxu0 %v3115
    %3846 = vmatprep.subr.bf16.mxu0 0
    %3847 = vmatpush1.bf16.msra.mxu0 %v3118
    %3848 = vmatprep.subr.bf16.mxu0 0
    %3849 = vmatpush1.bf16.msra.mxu0 0
    %3850 = vmatprep.subr.bf16.mxu0 0
    %3851 = vmatpush1.bf16.msra.mxu0 0
    %3852 = vmatprep.subr.bf16.mxu0 0
    %3853 = vmatpush1.bf16.msra.mxu0 0
    %3854 = vmatprep.subr.bf16.mxu0 0
    %3855 = vmatpush1.bf16.msra.mxu0 0
    %3856 = vmatprep.subr.bf16.mxu0 0
    %3857 = vmatpush1.bf16.msra.mxu0 0
    %3858 = vmatprep.subr.bf16.mxu0 0
    %3859 = vmatpush1.bf16.msra.mxu0 0
    %3860 = vmatprep.subr.bf16.mxu0 0
    %3861 = vmatpush1.bf16.msra.mxu0 0
    %3862 = vmatprep.subr.bf16.mxu0 0
    %3863 = vmatpush1.bf16.msra.mxu0 0
    %3864 = vmatprep.mubr.bf16.mxu0 0
    %3865 = vmatmul.mubr.bf16.gmra.mrb[0].mxu0 %v3790
    %v3866 = vpop.f32.mrb[0].mxu0
    %v3867 = vadd.f32 0.0, %v3866
    %v3868 = vpop.f32.mrb[0].mxu0
    %v3869 = vpop.f32.mrb[0].mxu0
    %v3870 = vpop.f32.mrb[0].mxu0
    %3871 = vdwg.mxu0
    %v3872 = vunpack.c.l.bf16 %v3788
    %v3873 = vunpack.c.h.bf16 %v3788
    %v3874 = vadd.f32 %v3872, %v3826
    %v3875 = vadd.f32 %v3873, %v3828
    %v3876 = vxor.u32 %v3874, 2147483648
    %v3877 = vxor.u32 %v3875, 2147483648
    %v3878 = vmul.f32 %v3876, 1.442695
    %v3879 = vpow.pop %v3878
    %v3880 = vmul.f32 %v3877, 1.442695
    %v3881 = vpow.pop %v3880
    %v3882 = vadd.f32 %v3879, 1.0
    %v3883 = vadd.f32 %v3881, 1.0
    %v3884 = vrcp.pop %v3882
    %v3885 = vmul.f32 1.0, %v3884
    %v3886 = vrcp.pop %v3883
    %v3887 = vmul.f32 1.0, %v3886
    %v3888 = vadd.f32 %v3867, %v3011
    %v3889 = vmul.f32 %v3885, %v3888
    %v3890 = vunpack.c.l.bf16 %v3789
    %v3891 = vadd.f32 %v3890, %v3889
    %v3892 = vtanh.pop %v3891
    %v3893 = vsub.f32 %v3787, %v3892
    %v3894 = vmul.f32 %v3887, %v3893
    %v3895 = vadd.f32 %v3892, %v3894
    %v3896 = vld [vmem:[%s972] sm:$0xff]
    %v3897 = vld [vmem:[%s972 + $0x8] sm:$0xf]
    %v3898 = vpack.c.bf16 %v3895, %v3895
    %3899 = vmatprep.subr.bf16.mxu0 %v3096
    %3900 = vmatpush1.bf16.msra.mxu0 %v3095
    %3901 = vmatprep.subr.bf16.mxu0 %v3099
    %3902 = vmatpush1.bf16.msra.mxu0 %v3098
    %3903 = vmatprep.subr.bf16.mxu0 %v3102
    %3904 = vmatpush1.bf16.msra.mxu0 %v3101
    %3905 = vmatprep.subr.bf16.mxu0 %v3105
    %3906 = vmatpush1.bf16.msra.mxu0 %v3104
    %3907 = vmatprep.subr.bf16.mxu0 %v3108
    %3908 = vmatpush1.bf16.msra.mxu0 %v3107
    %3909 = vmatprep.subr.bf16.mxu0 %v3111
    %3910 = vmatpush1.bf16.msra.mxu0 %v3110
    %3911 = vmatprep.subr.bf16.mxu0 %v3114
    %3912 = vmatpush1.bf16.msra.mxu0 %v3113
    %3913 = vmatprep.subr.bf16.mxu0 %v3117
    %3914 = vmatpush1.bf16.msra.mxu0 %v3116
    %3915 = vmatprep.subr.bf16.mxu0 0
    %3916 = vmatpush1.bf16.msra.mxu0 0
    %3917 = vmatprep.subr.bf16.mxu0 0
    %3918 = vmatpush1.bf16.msra.mxu0 0
    %3919 = vmatprep.subr.bf16.mxu0 0
    %3920 = vmatpush1.bf16.msra.mxu0 0
    %3921 = vmatprep.subr.bf16.mxu0 0
    %3922 = vmatpush1.bf16.msra.mxu0 0
    %3923 = vmatprep.subr.bf16.mxu0 0
    %3924 = vmatpush1.bf16.msra.mxu0 0
    %3925 = vmatprep.subr.bf16.mxu0 0
    %3926 = vmatpush1.bf16.msra.mxu0 0
    %3927 = vmatprep.subr.bf16.mxu0 0
    %3928 = vmatpush1.bf16.msra.mxu0 0
    %3929 = vmatprep.subr.bf16.mxu0 0
    %3930 = vmatpush1.bf16.msra.mxu0 0
    %3931 = vmatprep.mubr.bf16.mxu0 0
    %3932 = vmatmul.mubr.bf16.gmra.mrb[0].mxu0 %v3898
    %v3933 = vpop.f32.mrb[0].mxu0
    %v3934 = vadd.f32 0.0, %v3933
    %v3935 = vpop.f32.mrb[0].mxu0
    %v3936 = vadd.f32 0.0, %v3935
    %v3937 = vpop.f32.mrb[0].mxu0
    %v3938 = vpop.f32.mrb[0].mxu0
    %3939 = vdwg.mxu0
    %3940 = vmatprep.subr.bf16.mxu0 0
    %3941 = vmatpush1.bf16.msra.mxu0 %v3097
    %3942 = vmatprep.subr.bf16.mxu0 0
    %3943 = vmatpush1.bf16.msra.mxu0 %v3100
    %3944 = vmatprep.subr.bf16.mxu0 0
    %3945 = vmatpush1.bf16.msra.mxu0 %v3103
    %3946 = vmatprep.subr.bf16.mxu0 0
    %3947 = vmatpush1.bf16.msra.mxu0 %v3106
    %3948 = vmatprep.subr.bf16.mxu0 0
    %3949 = vmatpush1.bf16.msra.mxu0 %v3109
    %3950 = vmatprep.subr.bf16.mxu0 0
    %3951 = vmatpush1.bf16.msra.mxu0 %v3112
    %3952 = vmatprep.subr.bf16.mxu0 0
    %3953 = vmatpush1.bf16.msra.mxu0 %v3115
    %3954 = vmatprep.subr.bf16.mxu0 0
    %3955 = vmatpush1.bf16.msra.mxu0 %v3118
    %3956 = vmatprep.subr.bf16.mxu0 0
    %3957 = vmatpush1.bf16.msra.mxu0 0
    %3958 = vmatprep.subr.bf16.mxu0 0
    %3959 = vmatpush1.bf16.msra.mxu0 0
    %3960 = vmatprep.subr.bf16.mxu0 0
    %3961 = vmatpush1.bf16.msra.mxu0 0
    %3962 = vmatprep.subr.bf16.mxu0 0
    %3963 = vmatpush1.bf16.msra.mxu0 0
    %3964 = vmatprep.subr.bf16.mxu0 0
    %3965 = vmatpush1.bf16.msra.mxu0 0
    %3966 = vmatprep.subr.bf16.mxu0 0
    %3967 = vmatpush1.bf16.msra.mxu0 0
    %3968 = vmatprep.subr.bf16.mxu0 0
    %3969 = vmatpush1.bf16.msra.mxu0 0
    %3970 = vmatprep.subr.bf16.mxu0 0
    %3971 = vmatpush1.bf16.msra.mxu0 0
    %3972 = vmatprep.mubr.bf16.mxu0 0
    %3973 = vmatmul.mubr.bf16.gmra.mrb[0].mxu0 %v3898
    %v3974 = vpop.f32.mrb[0].mxu0
    %v3975 = vadd.f32 0.0, %v3974
    %v3976 = vpop.f32.mrb[0].mxu0
    %v3977 = vpop.f32.mrb[0].mxu0
    %v3978 = vpop.f32.mrb[0].mxu0
    %3979 = vdwg.mxu0
    %v3980 = vunpack.c.l.bf16 %v3896
    %v3981 = vunpack.c.h.bf16 %v3896
    %v3982 = vadd.f32 %v3980, %v3934
    %v3983 = vadd.f32 %v3981, %v3936
    %v3984 = vxor.u32 %v3982, 2147483648
    %v3985 = vxor.u32 %v3983, 2147483648
    %v3986 = vmul.f32 %v3984, 1.442695
    %v3987 = vpow.pop %v3986
    %v3988 = vmul.f32 %v3985, 1.442695
    %v3989 = vpow.pop %v3988
    %v3990 = vadd.f32 %v3987, 1.0
    %v3991 = vadd.f32 %v3989, 1.0
    %v3992 = vrcp.pop %v3990
    %v3993 = vmul.f32 1.0, %v3992
    %v3994 = vrcp.pop %v3991
    %v3995 = vmul.f32 1.0, %v3994
    %v3996 = vadd.f32 %v3975, %v3011
    %v3997 = vmul.f32 %v3993, %v3996
    %v3998 = vunpack.c.l.bf16 %v3897
    %v3999 = vadd.f32 %v3998, %v3997
    %v4000 = vtanh.pop %v3999
    %v4001 = vsub.f32 %v3895, %v4000
    %v4002 = vmul.f32 %v3995, %v4001
    %v4003 = vadd.f32 %v4000, %v4002
    %v4004 = vpack.c.bf16 %v4003, %v4003
    %v4005 = vld [vmem:[%s9] sm:$0xf]
    %v4006 = vld [vmem:[%s9 + $0x4] sm:$0xf]
    %v4007 = vld [vmem:[%s9 + $0x8] sm:$0xf]
    %v4008 = vld [vmem:[%s9 + $0xc] sm:$0xf]
    %v4009 = vld [vmem:[%s9 + $0x10] sm:$0xf]
    %v4010 = vld [vmem:[%s9 + $0x14] sm:$0xf]
    %v4011 = vld [vmem:[%s9 + $0x18] sm:$0xf]
    %v4012 = vld [vmem:[%s9 + $0x1c] sm:$0xf]
    %v4013 = vld [vmem:[%s9 + $0x20] sm:$0xf]
    %v4014 = vld [vmem:[%s9 + $0x24] sm:$0xf]
    %v4015 = vld [vmem:[%s9 + $0x28] sm:$0xf]
    %v4016 = vld [vmem:[%s9 + $0x2c] sm:$0xf]
    %v4017 = vld [vmem:[%s9 + $0x30] sm:$0xf]
    %v4018 = vld [vmem:[%s9 + $0x34] sm:$0xf]
    %v4019 = vld [vmem:[%s9 + $0x38] sm:$0xf]
    %v4020 = vld [vmem:[%s9 + $0x3c] sm:$0xf]
    %v4021 = vld [vmem:[%s10] sm:$0x1]
    %v4023 = vlaneseq
    %v4024 = vshrl.u32 %v4023, 7
    %v4025 = vsub.s32 0, %v4024
    %v4026 = vrot.slane %v4021, %v4025
    %v4044 = vunpack.c.l.b16 %v4005
    %v4045 = vunpack.c.l.b16 %v4006
    %v4046 = vunpack.c.l.b16 %v4007
    %v4047 = vunpack.c.l.b16 %v4008
    %v4048 = vunpack.c.l.b16 %v4009
    %v4049 = vunpack.c.l.b16 %v4010
    %v4050 = vunpack.c.l.b16 %v4011
    %v4051 = vunpack.c.l.b16 %v4012
    %v4052 = vunpack.c.l.b16 %v4013
    %v4053 = vunpack.c.l.b16 %v4014
    %v4054 = vunpack.c.l.b16 %v4015
    %v4055 = vunpack.c.l.b16 %v4016
    %v4056 = vunpack.c.l.b16 %v4017
    %v4057 = vunpack.c.l.b16 %v4018
    %v4058 = vunpack.c.l.b16 %v4019
    %v4059 = vunpack.c.l.b16 %v4020
    %v4060 = vpack.c.b16 %v4045, %v4044
    %v4061 = vpack.c.b16 %v4047, %v4046
    %v4062 = vpack.c.b16 %v4049, %v4048
    %v4063 = vpack.c.b16 %v4051, %v4050
    %v4064 = vpack.c.b16 %v4053, %v4052
    %v4065 = vpack.c.b16 %v4055, %v4054
    %v4066 = vpack.c.b16 %v4057, %v4056
    %v4067 = vpack.c.b16 %v4059, %v4058
    %4076 = vmatprep.subr.bf16.mxu0 0
    %4077 = vmatpush1.bf16.msra.mxu0 %v4060
    %4078 = vmatprep.subr.bf16.mxu0 0
    %4079 = vmatpush1.bf16.msra.mxu0 %v4061
    %4080 = vmatprep.subr.bf16.mxu0 0
    %4081 = vmatpush1.bf16.msra.mxu0 %v4062
    %4082 = vmatprep.subr.bf16.mxu0 0
    %4083 = vmatpush1.bf16.msra.mxu0 %v4063
    %4084 = vmatprep.subr.bf16.mxu0 0
    %4085 = vmatpush1.bf16.msra.mxu0 %v4064
    %4086 = vmatprep.subr.bf16.mxu0 0
    %4087 = vmatpush1.bf16.msra.mxu0 %v4065
    %4088 = vmatprep.subr.bf16.mxu0 0
    %4089 = vmatpush1.bf16.msra.mxu0 %v4066
    %4090 = vmatprep.subr.bf16.mxu0 0
    %4091 = vmatpush1.bf16.msra.mxu0 %v4067
    %4092 = vmatprep.subr.bf16.mxu0 0
    %4093 = vmatpush1.bf16.msra.mxu0 0
    %4094 = vmatprep.subr.bf16.mxu0 0
    %4095 = vmatpush1.bf16.msra.mxu0 0
    %4096 = vmatprep.subr.bf16.mxu0 0
    %4097 = vmatpush1.bf16.msra.mxu0 0
    %4098 = vmatprep.subr.bf16.mxu0 0
    %4099 = vmatpush1.bf16.msra.mxu0 0
    %4100 = vmatprep.subr.bf16.mxu0 0
    %4101 = vmatpush1.bf16.msra.mxu0 0
    %4102 = vmatprep.subr.bf16.mxu0 0
    %4103 = vmatpush1.bf16.msra.mxu0 0
    %4104 = vmatprep.subr.bf16.mxu0 0
    %4105 = vmatpush1.bf16.msra.mxu0 0
    %4106 = vmatprep.subr.bf16.mxu0 0
    %4107 = vmatpush1.bf16.msra.mxu0 0
    %4108 = vmatprep.mubr.bf16.mxu0 0
    %4109 = vmatmul.mubr.bf16.gmra.mrb[0].mxu0 %v4004
    %v4110 = vpop.f32.mrb[0].mxu0
    %v4111 = vadd.f32 %v4026, %v4110
    %v4112 = vpop.f32.mrb[0].mxu0
    %v4113 = vpop.f32.mrb[0].mxu0
    %v4114 = vpop.f32.mrb[0].mxu0
    %4115 = vdwg.mxu0
    %4116 = vst [vmem:[%s11] sm:$0xff] %v4111
    // Predicated region
    $region66: #{emotion_gru_forward.1} parent=1 // pred_check
      _
    $region67: #{emotion_gru_forward.1} parent=1 // pred_check_branch
      %4118 = sbr.rel (0) target = $region69
    $region68: #{emotion_gru_forward.1} parent=1 // pred_region
      _
    $region69: #{emotion_gru_forward.1} parent=1 // pred_fallthru
      _
    // Predicated region
    $region70: #{emotion_gru_forward.1} parent=1 // pred_check
      _
    $region71: #{emotion_gru_forward.1} parent=1 // pred_check_branch
      %4120 = sbr.rel (0) target = $region73
    $region72: #{emotion_gru_forward.1} parent=1 // pred_region
      _
    $region73: #{emotion_gru_forward.1} parent=1 // pred_fallthru
      _
    %4121 = vsyncpa [#allocation5], 1
    %4122 = vsyncpa [#allocation7], 1
    %4123 = vsyncpa [#allocation10], 1

</llo_original>
